<compile_context>
chip_gen: v6e
topology: v6e:2x2x1
jax: 0.10.0
libtpu: 0.0.40
codegen_flags: <defaults>
</compile_context>

<pallas_src>
import functools

import jax
import jax.numpy as jnp
from jax.experimental import pallas as pl
from jax.experimental.pallas import tpu as pltpu


# --------------------------------------------------------------------------
# One-time weight preprocessing (hoisted out of the forward pass)
# --------------------------------------------------------------------------
def _conv_blockdiag(w, b, width):
    """Conv2d(k=2, s=2) weight (O, C, 2, 2) -> stack of two block-diagonal
    matrices (2, width*C, (width//2)*O), one per kernel row di, plus a bias
    row.  Input lane = w*C + c; output lane = (w//2)*O + o."""
    O, C = w.shape[0], w.shape[1]
    J = width // 2
    blk = jnp.transpose(w, (2, 3, 1, 0))               # (di, dj, C, O)
    eye = jnp.eye(J, dtype=w.dtype)

    def bd(di):
        t = jnp.einsum("jk,dco->jdcko", eye, blk[di])   # (J, 2, C, J, O)
        return t.reshape(J * 2 * C, J * O)

    wstack = jnp.stack([bd(0), bd(1)]).astype(jnp.bfloat16)
    brow = jnp.tile(b, J).reshape(1, J * O).astype(jnp.float32)
    return wstack, brow


def _conv1_packed(w, b, width):
    """First conv: both kernel rows are packed along LANES of the input
    (lane = di*width*C + w*C + c), so conv1 is a single (2*width*C, J*O)
    matmul against a lane-dense (>=128 lanes) input block."""
    wstack, brow = _conv_blockdiag(w, b, width)
    return jnp.concatenate([wstack[0], wstack[1]], axis=0), brow


def _convT_blockdiag(w, b, width):
    """ConvTranspose2d(k=2, s=2) weight (C, O, 2, 2) -> stack of two
    block-diagonal matrices (2, width*C, width*2*O), one per OUTPUT row
    parity di, plus a bias row.  Output lane = (2*j + dj)*O + o."""
    C, O = w.shape[0], w.shape[1]
    blk = jnp.transpose(w, (2, 0, 3, 1))               # (di, C, dj, O)
    eye = jnp.eye(width, dtype=w.dtype)

    def bd(di):
        t = jnp.einsum("jk,cdo->jckdo", eye, blk[di])   # (width, C, width, 2, O)
        return t.reshape(width * C, width * 2 * O)

    wstack = jnp.stack([bd(0), bd(1)]).astype(jnp.bfloat16)
    brow = jnp.tile(b, 2 * width).reshape(1, 2 * width * O).astype(jnp.float32)
    return wstack, brow


def _enc_linear_split(w, b, s):
    """nn.Linear(num_features, code) weight (code, 128*s*s) -> (s, s*128, code):
    one matrix per final spatial row hh, rows in the kernel's (ww, c) lane
    order."""
    code = w.shape[0]
    wr = w.reshape(code, 128, s, s)                    # (m, c, hh, ww)
    mats = [jnp.transpose(wr[:, :, hh, :], (2, 1, 0)).reshape(s * 128, code)
            for hh in range(s)]
    return (jnp.stack(mats).astype(jnp.bfloat16),
            b.reshape(1, code).astype(jnp.float32))


def _dec_linear_packed(w, b, s):
    """nn.Linear(code, num_features) weight (128*s*s, code) -> ONE matrix
    (code, s*s*128) with output lane = hh*s*128 + ww*128 + c (plus the bias
    row in the same lane order), so the decode is a single matmul."""
    code = w.shape[1]
    wr = w.reshape(128, s, s, code)                    # (c, hh, ww, m)
    dlw = jnp.transpose(wr, (3, 1, 2, 0)).reshape(code, s * s * 128)
    br = jnp.transpose(b.reshape(128, s, s), (1, 2, 0)).reshape(1, s * s * 128)
    return dlw.astype(jnp.bfloat16), br.astype(jnp.float32)


def prepare_weights(params, img_size):
    """Lower PyTorch-layout parameters into the fused kernel's matmul
    operands (block-diag, pre-transposed, bf16).  Runs once at init."""
    assert img_size % 8 == 0, "img_size must be divisible by 8"
    s = img_size // 8
    w1, b1 = _conv1_packed(params["conv1_w"], params["conv1_b"], img_size)
    w2, b2 = _conv_blockdiag(params["conv2_w"], params["conv2_b"], img_size // 2)
    w3, b3 = _conv_blockdiag(params["conv3_w"], params["conv3_b"], img_size // 4)
    al, bl = _enc_linear_split(params["enc_lin_w"], params["enc_lin_b"], s)
    wd, bd = _dec_linear_packed(params["dec_lin_w"], params["dec_lin_b"], s)
    t1, bt1 = _convT_blockdiag(params["convT1_w"], params["convT1_b"], s)
    t2, bt2 = _convT_blockdiag(params["convT2_w"], params["convT2_b"], 2 * s)
    t3, bt3 = _convT_blockdiag(params["convT3_w"], params["convT3_b"], 4 * s)
    return (w1, b1, w2, b2, w3, b3, al, bl, wd, bd, t1, bt1, t2, bt2, t3, bt3)


# --------------------------------------------------------------------------
# Fused Pallas kernel: whole autoencoder forward for one batch block
# --------------------------------------------------------------------------
def _convnet_kernel(B, s, W, C,
                    x_ref, cw1, cb1, cw2, cb2, cw3, cb3, elw, elb, dlw, dlb,
                    tw1, tb1, tw2, tb2, tw3, tb3,
                    out_ref, dbuf1, dbuf2, dbuf3):
    f32, bf16 = jnp.float32, jnp.bfloat16
    relu = lambda v: jnp.maximum(v, 0.0)

    def conv_pair(xv, w_ref, b_ref):
        # Conv2d(k=2, s=2): first/second half of the rows hold the even/odd
        # spatial input row of every output row (paired by position).
        # Two bf16 MXU matmuls with M = rows/2, f32 accumulate/bias/ReLU.
        half = xv.shape[0] // 2
        acc = jnp.dot(xv[:half].astype(bf16), w_ref[0],
                      preferred_element_type=f32)
        acc = acc + jnp.dot(xv[half:].astype(bf16), w_ref[1],
                            preferred_element_type=f32)
        return relu(acc + b_ref[...])

    # ------------------------------ encoder --------------------------------
    # conv1: both kernel rows packed along lanes -> ONE matmul, M = B*H/2.
    a1 = relu(jnp.dot(x_ref[...].astype(bf16), cw1[...],
                      preferred_element_type=f32) + cb1[...])   # (B*H/2, W/2*32)
    a2 = conv_pair(a1, cw2, cb2)                                # (B*H/4, W/4*64)
    a3 = conv_pair(a2, cw3, cb3)                                # (B*s,  s*128) rows (hh, n)

    # encoder Linear: s INDEPENDENT (B, s*128)x(s*128, code) matmuls (rows of
    # each hh are a contiguous static slice), summed in f32 -- no serial
    # M=1 accumulation chain.
    partials = [jnp.dot(a3[hh * B:(hh + 1) * B].astype(bf16), elw[hh],
                        preferred_element_type=f32) for hh in range(s)]
    code = sum(partials) + elb[...]                             # (B, code) f32

    # ------------------------------ decoder --------------------------------
    # decoder Linear: ONE (B, code)x(code, s*s*128) matmul.
    d_full = (jnp.dot(code.astype(bf16), dlw[...],
                      preferred_element_type=f32) + dlb[...])   # (B, s*s*128)

    # Move hh from lanes to rows via static VMEM-scratch stores (lane slices
    # are 128-aligned) -- no sublane concatenates anywhere in the decoder.
    for hh in range(s):
        dbuf1[hh * B:(hh + 1) * B, :] = d_full[:, hh * s * 128:(hh + 1) * s * 128]

    def convT_pair(src_ref, w_ref, b_ref, act):
        # ConvTranspose2d(k=2, s=2): every input row independently emits an
        # even (di=0) and an odd (di=1) output spatial row.
        xv = src_ref[...].astype(bf16)
        e = act(jnp.dot(xv, w_ref[0], preferred_element_type=f32) + b_ref[...])
        o = act(jnp.dot(xv, w_ref[1], preferred_element_type=f32) + b_ref[...])
        return e, o

    m1 = s * B
    e1, o1 = convT_pair(dbuf1, tw1, tb1, relu)                  # (s*B,  2s*64)
    dbuf2[:m1, :] = e1
    dbuf2[m1:, :] = o1

    m2 = 2 * s * B
    e2, o2 = convT_pair(dbuf2, tw2, tb2, relu)                  # (2s*B, 4s*32)
    dbuf3[:m2, :] = e2
    dbuf3[m2:, :] = o2

    e3, o3 = convT_pair(dbuf3, tw3, tb3, jnp.tanh)              # (4s*B, W*C)
    # Final parity packed along lanes: two disjoint lane-slice stores into the
    # lane-dense (2*W*C) output block -- no concatenate.
    WC = W * C
    out_ref[:, :WC] = e3
    out_ref[:, WC:] = o3


def _whole_spec(arr):
    # Constant block index: the pipeliner skips the re-copy when the block
    # index does not change across grid steps, so the invariant weights are
    # DMA'd into VMEM only once.
    nd = arr.ndim
    return pl.BlockSpec(arr.shape, lambda n, _nd=nd: (0,) * _nd)


def _pick_block_batch(N, H, requested=None):
    """Samples per grid step.  Target ~256 rows for the first conv matmul
    (MXU-filling M), while keeping >= 2 grid steps when the batch allows so
    both v7x TensorCores get whole steps."""
    if requested is not None:
        bb = max(1, min(int(requested), N))
    else:
        bb = max(1, min(N, 512 // H if H <= 512 else 1))
    while N % bb != 0:
        bb -= 1
    if N // bb < 2 and bb > 1:
        cand = bb // 2
        while cand > 1 and N % cand != 0:
            cand -= 1
        bb = max(1, cand)
    return bb


# --------------------------------------------------------------------------
# Forward pass wrapper (one input layout transform, one output transform)
# --------------------------------------------------------------------------
def convnet_forward(prepped, x, *, img_size, num_channels, block_batch=None):
    (w1, b1, w2, b2, w3, b3, al, bl, wd, bd,
     t1, bt1, t2, bt2, t3, bt3) = prepped
    assert img_size % 8 == 0
    N = x.shape[0]
    H = W = img_size
    C = num_channels
    s = img_size // 8

    B = _pick_block_batch(N, H, block_batch)
    Nb = N // B
    rows_blk = B * H // 2            # rows per grid step (also = 4*s*B out rows)
    lanes_in = 2 * W * C             # conv1 parity packed along lanes
    lanes_out = 2 * W * C            # convT3 parity packed along lanes

    # ---- single NCHW -> (row-blocked, lane-packed) input transform ---------
    # rows ordered (block, b1, b2, hh, n); lanes = (b0, w, c).
    xh = jnp.transpose(x, (0, 2, 3, 1)).reshape(Nb, B, s, 2, 2, 2, W * C)
    x0 = jnp.transpose(xh, (0, 4, 3, 2, 1, 5, 6)).reshape(Nb * rows_blk, lanes_in)
    x0 = x0.astype(jnp.float32)

    kernel = functools.partial(_convnet_kernel, B, s, W, C)

    in_specs = [pl.BlockSpec((rows_blk, lanes_in), lambda n: (n, 0))]
    in_specs += [_whole_spec(a) for a in prepped]

    scratch_shapes = [
        pltpu.VMEM((s * B, s * 128), jnp.float32),            # convT1 input
        pltpu.VMEM((2 * s * B, 2 * s * 64), jnp.float32),     # convT2 input
        pltpu.VMEM((4 * s * B, 4 * s * 32), jnp.float32),     # convT3 input
    ]

    # VMEM budget: double-buffered I/O blocks + double-buffered invariant
    # weights + scratch, with 2x headroom, clamped to [32 MiB, 96 MiB].
    weight_bytes = sum(int(a.size) * a.dtype.itemsize for a in prepped)
    block_bytes = rows_blk * (lanes_in + lanes_out) * 4
    scratch_bytes = 7 * s * B * (s * 128) * 4
    vmem_need = 2 * block_bytes + 2 * weight_bytes + scratch_bytes
    vmem_limit = int(min(96 * 2**20, max(32 * 2**20, 2 * vmem_need)))

    # Advisory cost estimate with the TRUE dense-conv flop count.
    code = bl.shape[-1]
    nf = 128 * s * s
    flops_per_sample = (
        2 * (H // 2) * (W // 2) * 32 * (4 * C)
        + 2 * (H // 4) * (W // 4) * 64 * (4 * 32)
        + 2 * s * s * 128 * (4 * 64)
        + 2 * nf * code * 2
        + 2 * (2 * s) * (2 * s) * 64 * 128
        + 2 * (4 * s) * (4 * s) * 32 * 64
        + 2 * (8 * s) * (8 * s) * C * 32)
    bytes_accessed = int(x0.size) * 4 + N * (H // 2) * lanes_out * 4 + weight_bytes

    kernel_out = pl.pallas_call(
        kernel,
        out_shape=jax.ShapeDtypeStruct((Nb * rows_blk, lanes_out), jnp.float32),
        grid=(Nb,),
        in_specs=in_specs,
        out_specs=pl.BlockSpec((rows_blk, lanes_out), lambda n: (n, 0)),
        scratch_shapes=scratch_shapes,
        compiler_params=pltpu.CompilerParams(
            dimension_semantics=("parallel",),
            vmem_limit_bytes=vmem_limit),
        cost_estimate=pl.CostEstimate(
            flops=N * flops_per_sample,
            transcendentals=N * H * W * C,
            bytes_accessed=int(bytes_accessed)),
    )(x0, *prepped)

    # ---- single output transform: undo row/lane parity packing -> NCHW -----
    y = kernel_out.reshape(Nb, 2, 2, s, B, 2, W, C)    # (nb,d2,d1,hh,n,d3,w,c)
    y = jnp.transpose(y, (0, 4, 7, 3, 2, 1, 5, 6))     # (nb,n,c,hh,d1,d2,d3,w)
    return y.reshape(N, C, H, W)


# --------------------------------------------------------------------------
# Parameter init (deterministic, PyTorch-style uniform fan-in init)
# --------------------------------------------------------------------------
def init_params(key, code_size, img_size, num_channels):
    s = img_size // 8
    num_features = 128 * s * s
    ks = iter(jax.random.split(key, 16))

    def u(shape, fan_in):
        bound = 1.0 / jnp.sqrt(jnp.float32(fan_in))
        return jax.random.uniform(next(ks), shape, jnp.float32, -bound, bound)

    return {
        "conv1_w": u((32, num_channels, 2, 2), num_channels * 4),
        "conv1_b": u((32,), num_channels * 4),
        "conv2_w": u((64, 32, 2, 2), 32 * 4),
        "conv2_b": u((64,), 32 * 4),
        "conv3_w": u((128, 64, 2, 2), 64 * 4),
        "conv3_b": u((128,), 64 * 4),
        "enc_lin_w": u((code_size, num_features), num_features),
        "enc_lin_b": u((code_size,), num_features),
        "dec_lin_w": u((num_features, code_size), code_size),
        "dec_lin_b": u((num_features,), code_size),
        "convT1_w": u((128, 64, 2, 2), 128 * 4),
        "convT1_b": u((64,), 128 * 4),
        "convT2_w": u((64, 32, 2, 2), 64 * 4),
        "convT2_b": u((32,), 64 * 4),
        "convT3_w": u((32, num_channels, 2, 2), 32 * 4),
        "convT3_b": u((num_channels,), 32 * 4),
    }


# --------------------------------------------------------------------------
# Pure-JAX f32 reference (for numerical verification)
# --------------------------------------------------------------------------
def _ref_conv(x, w, b):
    n, c, h, wd_ = x.shape
    xp = x.reshape(n, c, h // 2, 2, wd_ // 2, 2)
    y = jnp.einsum("ncidje,ocde->noij", xp, w, precision="highest")
    return y + b[None, :, None, None]


def _ref_convT(x, w, b):
    n, c, h, wd_ = x.shape
    o = w.shape[1]
    y = jnp.einsum("ncij,code->noidje", x, w, precision="highest")
    return y.reshape(n, o, 2 * h, 2 * wd_) + b[None, :, None, None]


def reference_forward(params, x, img_size):
    n = x.shape[0]
    s = img_size // 8
    num_features = 128 * s * s
    h = jax.nn.relu(_ref_conv(x, params["conv1_w"], params["conv1_b"]))
    h = jax.nn.relu(_ref_conv(h, params["conv2_w"], params["conv2_b"]))
    h = jax.nn.relu(_ref_conv(h, params["conv3_w"], params["conv3_b"]))
    code = jnp.dot(h.reshape(n, num_features), params["enc_lin_w"].T,
                   precision="highest") + params["enc_lin_b"]
    f = jnp.dot(code, params["dec_lin_w"].T,
                precision="highest") + params["dec_lin_b"]
    f = f.reshape(n, 128, s, s)
    d = jax.nn.relu(_ref_convT(f, params["convT1_w"], params["convT1_b"]))
    d = jax.nn.relu(_ref_convT(d, params["convT2_w"], params["convT2_b"]))
    return jnp.tanh(_ref_convT(d, params["convT3_w"], params["convT3_b"]))


# --------------------------------------------------------------------------
if __name__ == "__main__":
    key = jax.random.PRNGKey(0)
    pkey, xkey = jax.random.split(key)

    batch, num_channels, img_size, code_size = 2, 4, 16, 32

    params = init_params(pkey, code_size, img_size, num_channels)
    x = jax.random.normal(xkey, (batch, num_channels, img_size, img_size),
                          jnp.float32)

    # One-time weight preprocessing (NOT part of the per-step forward graph).
    prepped = jax.block_until_ready(prepare_weights(params, img_size))

    fwd = jax.jit(functools.partial(convnet_forward, img_size=img_size,
                                    num_channels=num_channels))
    y = jax.block_until_ready(fwd(prepped, x))

    assert y.shape == x.shape, (y.shape, x.shape)
    assert y.dtype == jnp.float32
    assert bool(jnp.all(jnp.isfinite(y)))

    # Verify against a pure-JAX f32 reference (kernel matmuls run in bf16).
    y_ref = reference_forward(params, x, img_size)
    err = float(jnp.max(jnp.abs(y - y_ref)))
    assert err < 3e-2, f"max abs error vs reference too large: {err}"

    print("KERNEL_OK")
</pallas_src>

<mosaic_0001>
module attributes {stable_mosaic.version = 11 : i64} {
  func.func @_convnet_kernel(%arg0: i32, %arg1: memref<8x128xf32, #tpu.memory_space<vmem>>, %arg2: memref<128x256xbf16, #tpu.memory_space<vmem>>, %arg3: memref<1x256xf32, #tpu.memory_space<vmem>>, %arg4: memref<2x256x256xbf16, #tpu.memory_space<vmem>>, %arg5: memref<1x256xf32, #tpu.memory_space<vmem>>, %arg6: memref<2x256x256xbf16, #tpu.memory_space<vmem>>, %arg7: memref<1x256xf32, #tpu.memory_space<vmem>>, %arg8: memref<2x256x32xbf16, #tpu.memory_space<vmem>>, %arg9: memref<1x32xf32, #tpu.memory_space<vmem>>, %arg10: memref<32x512xbf16, #tpu.memory_space<vmem>>, %arg11: memref<1x512xf32, #tpu.memory_space<vmem>>, %arg12: memref<2x256x256xbf16, #tpu.memory_space<vmem>>, %arg13: memref<1x256xf32, #tpu.memory_space<vmem>>, %arg14: memref<2x256x256xbf16, #tpu.memory_space<vmem>>, %arg15: memref<1x256xf32, #tpu.memory_space<vmem>>, %arg16: memref<2x256x64xbf16, #tpu.memory_space<vmem>>, %arg17: memref<1x64xf32, #tpu.memory_space<vmem>>, %arg18: memref<8x128xf32, #tpu.memory_space<vmem>>, %arg19: memref<2x256xf32, #tpu.memory_space<vmem>>, %arg20: memref<4x256xf32, #tpu.memory_space<vmem>>, %arg21: memref<8x256xf32, #tpu.memory_space<vmem>>) attributes {dimension_semantics = [#tpu.dimension_semantics<parallel>], iteration_bounds = array<i64: 2>, scalar_prefetch = 0 : i64, scratch_operands = 3 : i64, tpu.core_type = #tpu.core_type<tc>, window_params = [{transform_indices = @transform_0, window_bounds = array<i64: 8, 128>}, {pipeline_mode = #tpu.pipeline_mode<synchronous>, transform_indices = @transform_1, window_bounds = array<i64: 128, 256>}, {pipeline_mode = #tpu.pipeline_mode<synchronous>, transform_indices = @transform_2, window_bounds = array<i64: 1, 256>}, {pipeline_mode = #tpu.pipeline_mode<synchronous>, transform_indices = @transform_3, window_bounds = array<i64: 2, 256, 256>}, {pipeline_mode = #tpu.pipeline_mode<synchronous>, transform_indices = @transform_4, window_bounds = array<i64: 1, 256>}, {pipeline_mode = #tpu.pipeline_mode<synchronous>, transform_indices = @transform_5, window_bounds = array<i64: 2, 256, 256>}, {pipeline_mode = #tpu.pipeline_mode<synchronous>, transform_indices = @transform_6, window_bounds = array<i64: 1, 256>}, {pipeline_mode = #tpu.pipeline_mode<synchronous>, transform_indices = @transform_7, window_bounds = array<i64: 2, 256, 32>}, {pipeline_mode = #tpu.pipeline_mode<synchronous>, transform_indices = @transform_8, window_bounds = array<i64: 1, 32>}, {pipeline_mode = #tpu.pipeline_mode<synchronous>, transform_indices = @transform_9, window_bounds = array<i64: 32, 512>}, {pipeline_mode = #tpu.pipeline_mode<synchronous>, transform_indices = @transform_10, window_bounds = array<i64: 1, 512>}, {pipeline_mode = #tpu.pipeline_mode<synchronous>, transform_indices = @transform_11, window_bounds = array<i64: 2, 256, 256>}, {pipeline_mode = #tpu.pipeline_mode<synchronous>, transform_indices = @transform_12, window_bounds = array<i64: 1, 256>}, {pipeline_mode = #tpu.pipeline_mode<synchronous>, transform_indices = @transform_13, window_bounds = array<i64: 2, 256, 256>}, {pipeline_mode = #tpu.pipeline_mode<synchronous>, transform_indices = @transform_14, window_bounds = array<i64: 1, 256>}, {pipeline_mode = #tpu.pipeline_mode<synchronous>, transform_indices = @transform_15, window_bounds = array<i64: 2, 256, 64>}, {pipeline_mode = #tpu.pipeline_mode<synchronous>, transform_indices = @transform_16, window_bounds = array<i64: 1, 64>}, {transform_indices = @transform_17, window_bounds = array<i64: 8, 128>}]} {
    %c0 = arith.constant 0 : index
    %c0_0 = arith.constant 0 : index
    %0 = vector.load %arg1[%c0, %c0_0] : memref<8x128xf32, #tpu.memory_space<vmem>>, vector<8x128xf32>
    %1 = arith.truncf %0 : vector<8x128xf32> to vector<8x128xbf16>
    %c0_1 = arith.constant 0 : index
    %c0_2 = arith.constant 0 : index
    %2 = vector.load %arg2[%c0_1, %c0_2] : memref<128x256xbf16, #tpu.memory_space<vmem>>, vector<128x256xbf16>
    %cst = arith.constant dense<0.000000e+00> : vector<8x256xf32>
    %3 = tpu.matmul %1, %2, %cst {dimension_numbers = #tpu.dot_dimension_numbers<[1], [0], [0], [1], [0, 0, 1, 1], [], []>} : vector<8x128xbf16>, vector<128x256xbf16>, vector<8x256xf32> -> vector<8x256xf32>
    %c0_3 = arith.constant 0 : index
    %c0_4 = arith.constant 0 : index
    %4 = vector.load %arg3[%c0_3, %c0_4] : memref<1x256xf32, #tpu.memory_space<vmem>>, vector<1x256xf32>
    %5 = vector.broadcast %4 : vector<1x256xf32> to vector<8x256xf32>
    %6 = arith.addf %3, %5 : vector<8x256xf32>
    %cst_5 = arith.constant 0.000000e+00 : f32
    %7 = vector.broadcast %cst_5 : f32 to vector<8x256xf32>
    %8 = arith.maximumf %6, %7 : vector<8x256xf32>
    %9 = vector.extract_strided_slice %8 {offsets = [0, 0], sizes = [4, 256], strides = [1, 1]} : vector<8x256xf32> to vector<4x256xf32>
    %10 = arith.truncf %9 : vector<4x256xf32> to vector<4x256xbf16>
    %c0_6 = arith.constant 0 : index
    %c0_7 = arith.constant 0 : index
    %c0_8 = arith.constant 0 : index
    %11 = vector.load %arg4[%c0_6, %c0_7, %c0_8] : memref<2x256x256xbf16, #tpu.memory_space<vmem>>, vector<1x256x256xbf16>
    %12 = vector.shape_cast %11 : vector<1x256x256xbf16> to vector<256x256xbf16>
    %cst_9 = arith.constant dense<0.000000e+00> : vector<4x256xf32>
    %13 = tpu.matmul %10, %12, %cst_9 {dimension_numbers = #tpu.dot_dimension_numbers<[1], [0], [0], [1], [0, 0, 1, 1], [], []>} : vector<4x256xbf16>, vector<256x256xbf16>, vector<4x256xf32> -> vector<4x256xf32>
    %14 = vector.extract_strided_slice %8 {offsets = [4, 0], sizes = [4, 256], strides = [1, 1]} : vector<8x256xf32> to vector<4x256xf32>
    %15 = arith.truncf %14 : vector<4x256xf32> to vector<4x256xbf16>
    %c1 = arith.constant 1 : index
    %c0_10 = arith.constant 0 : index
    %c0_11 = arith.constant 0 : index
    %16 = vector.load %arg4[%c1, %c0_10, %c0_11] : memref<2x256x256xbf16, #tpu.memory_space<vmem>>, vector<1x256x256xbf16>
    %17 = vector.shape_cast %16 : vector<1x256x256xbf16> to vector<256x256xbf16>
    %cst_12 = arith.constant dense<0.000000e+00> : vector<4x256xf32>
    %18 = tpu.matmul %15, %17, %cst_12 {dimension_numbers = #tpu.dot_dimension_numbers<[1], [0], [0], [1], [0, 0, 1, 1], [], []>} : vector<4x256xbf16>, vector<256x256xbf16>, vector<4x256xf32> -> vector<4x256xf32>
    %19 = arith.addf %13, %18 : vector<4x256xf32>
    %c0_13 = arith.constant 0 : index
    %c0_14 = arith.constant 0 : index
    %20 = vector.load %arg5[%c0_13, %c0_14] : memref<1x256xf32, #tpu.memory_space<vmem>>, vector<1x256xf32>
    %21 = vector.broadcast %20 : vector<1x256xf32> to vector<4x256xf32>
    %22 = arith.addf %19, %21 : vector<4x256xf32>
    %cst_15 = arith.constant 0.000000e+00 : f32
    %23 = vector.broadcast %cst_15 : f32 to vector<4x256xf32>
    %24 = arith.maximumf %22, %23 : vector<4x256xf32>
    %25 = vector.extract_strided_slice %24 {offsets = [0, 0], sizes = [2, 256], strides = [1, 1]} : vector<4x256xf32> to vector<2x256xf32>
    %26 = arith.truncf %25 : vector<2x256xf32> to vector<2x256xbf16>
    %c0_16 = arith.constant 0 : index
    %c0_17 = arith.constant 0 : index
    %c0_18 = arith.constant 0 : index
    %27 = vector.load %arg6[%c0_16, %c0_17, %c0_18] : memref<2x256x256xbf16, #tpu.memory_space<vmem>>, vector<1x256x256xbf16>
    %28 = vector.shape_cast %27 : vector<1x256x256xbf16> to vector<256x256xbf16>
    %cst_19 = arith.constant dense<0.000000e+00> : vector<2x256xf32>
    %29 = tpu.matmul %26, %28, %cst_19 {dimension_numbers = #tpu.dot_dimension_numbers<[1], [0], [0], [1], [0, 0, 1, 1], [], []>} : vector<2x256xbf16>, vector<256x256xbf16>, vector<2x256xf32> -> vector<2x256xf32>
    %30 = vector.extract_strided_slice %24 {offsets = [2, 0], sizes = [2, 256], strides = [1, 1]} : vector<4x256xf32> to vector<2x256xf32>
    %31 = arith.truncf %30 : vector<2x256xf32> to vector<2x256xbf16>
    %c1_20 = arith.constant 1 : index
    %c0_21 = arith.constant 0 : index
    %c0_22 = arith.constant 0 : index
    %32 = vector.load %arg6[%c1_20, %c0_21, %c0_22] : memref<2x256x256xbf16, #tpu.memory_space<vmem>>, vector<1x256x256xbf16>
    %33 = vector.shape_cast %32 : vector<1x256x256xbf16> to vector<256x256xbf16>
    %cst_23 = arith.constant dense<0.000000e+00> : vector<2x256xf32>
    %34 = tpu.matmul %31, %33, %cst_23 {dimension_numbers = #tpu.dot_dimension_numbers<[1], [0], [0], [1], [0, 0, 1, 1], [], []>} : vector<2x256xbf16>, vector<256x256xbf16>, vector<2x256xf32> -> vector<2x256xf32>
    %35 = arith.addf %29, %34 : vector<2x256xf32>
    %c0_24 = arith.constant 0 : index
    %c0_25 = arith.constant 0 : index
    %36 = vector.load %arg7[%c0_24, %c0_25] : memref<1x256xf32, #tpu.memory_space<vmem>>, vector<1x256xf32>
    %37 = vector.broadcast %36 : vector<1x256xf32> to vector<2x256xf32>
    %38 = arith.addf %35, %37 : vector<2x256xf32>
    %cst_26 = arith.constant 0.000000e+00 : f32
    %39 = vector.broadcast %cst_26 : f32 to vector<2x256xf32>
    %40 = arith.maximumf %38, %39 : vector<2x256xf32>
    %41 = vector.extract_strided_slice %40 {offsets = [0, 0], sizes = [1, 256], strides = [1, 1]} : vector<2x256xf32> to vector<1x256xf32>
    %42 = arith.truncf %41 : vector<1x256xf32> to vector<1x256xbf16>
    %c0_27 = arith.constant 0 : index
    %c0_28 = arith.constant 0 : index
    %c0_29 = arith.constant 0 : index
    %43 = vector.load %arg8[%c0_27, %c0_28, %c0_29] : memref<2x256x32xbf16, #tpu.memory_space<vmem>>, vector<1x256x32xbf16>
    %44 = vector.shape_cast %43 : vector<1x256x32xbf16> to vector<256x32xbf16>
    %cst_30 = arith.constant dense<0.000000e+00> : vector<1x32xf32>
    %45 = tpu.matmul %42, %44, %cst_30 {dimension_numbers = #tpu.dot_dimension_numbers<[1], [0], [0], [1], [0, 0, 1, 1], [], []>} : vector<1x256xbf16>, vector<256x32xbf16>, vector<1x32xf32> -> vector<1x32xf32>
    %46 = vector.extract_strided_slice %40 {offsets = [1, 0], sizes = [1, 256], strides = [1, 1]} : vector<2x256xf32> to vector<1x256xf32>
    %47 = arith.truncf %46 : vector<1x256xf32> to vector<1x256xbf16>
    %c1_31 = arith.constant 1 : index
    %c0_32 = arith.constant 0 : index
    %c0_33 = arith.constant 0 : index
    %48 = vector.load %arg8[%c1_31, %c0_32, %c0_33] : memref<2x256x32xbf16, #tpu.memory_space<vmem>>, vector<1x256x32xbf16>
    %49 = vector.shape_cast %48 : vector<1x256x32xbf16> to vector<256x32xbf16>
    %cst_34 = arith.constant dense<0.000000e+00> : vector<1x32xf32>
    %50 = tpu.matmul %47, %49, %cst_34 {dimension_numbers = #tpu.dot_dimension_numbers<[1], [0], [0], [1], [0, 0, 1, 1], [], []>} : vector<1x256xbf16>, vector<256x32xbf16>, vector<1x32xf32> -> vector<1x32xf32>
    %cst_35 = arith.constant 0.000000e+00 : f32
    %51 = vector.broadcast %cst_35 : f32 to vector<1x32xf32>
    %52 = arith.addf %51, %45 : vector<1x32xf32>
    %53 = arith.addf %52, %50 : vector<1x32xf32>
    %c0_36 = arith.constant 0 : index
    %c0_37 = arith.constant 0 : index
    %54 = vector.load %arg9[%c0_36, %c0_37] : memref<1x32xf32, #tpu.memory_space<vmem>>, vector<1x32xf32>
    %55 = arith.addf %53, %54 : vector<1x32xf32>
    %56 = arith.truncf %55 : vector<1x32xf32> to vector<1x32xbf16>
    %c0_38 = arith.constant 0 : index
    %c0_39 = arith.constant 0 : index
    %57 = vector.load %arg10[%c0_38, %c0_39] : memref<32x512xbf16, #tpu.memory_space<vmem>>, vector<32x512xbf16>
    %cst_40 = arith.constant dense<0.000000e+00> : vector<1x512xf32>
    %58 = tpu.matmul %56, %57, %cst_40 {dimension_numbers = #tpu.dot_dimension_numbers<[1], [0], [0], [1], [0, 0, 1, 1], [], []>} : vector<1x32xbf16>, vector<32x512xbf16>, vector<1x512xf32> -> vector<1x512xf32>
    %c0_41 = arith.constant 0 : index
    %c0_42 = arith.constant 0 : index
    %59 = vector.load %arg11[%c0_41, %c0_42] : memref<1x512xf32, #tpu.memory_space<vmem>>, vector<1x512xf32>
    %60 = arith.addf %58, %59 : vector<1x512xf32>
    %61 = vector.extract_strided_slice %60 {offsets = [0, 0], sizes = [1, 256], strides = [1, 1]} : vector<1x512xf32> to vector<1x256xf32>
    %c0_43 = arith.constant 0 : index
    %c0_44 = arith.constant 0 : index
    %62 = vector.load %arg19[%c0_43, %c0_44] : memref<2x256xf32, #tpu.memory_space<vmem>>, vector<1x256xf32>
    tpu.vector_store %arg19[%c0_43, %c0_44], %61 {strides = array<i32>} : memref<2x256xf32, #tpu.memory_space<vmem>>, vector<1x256xf32>,
    %63 = vector.extract_strided_slice %60 {offsets = [0, 256], sizes = [1, 256], strides = [1, 1]} : vector<1x512xf32> to vector<1x256xf32>
    %c1_45 = arith.constant 1 : index
    %c0_46 = arith.constant 0 : index
    %64 = vector.load %arg19[%c1_45, %c0_46] : memref<2x256xf32, #tpu.memory_space<vmem>>, vector<1x256xf32>
    tpu.vector_store %arg19[%c1_45, %c0_46], %63 {strides = array<i32>} : memref<2x256xf32, #tpu.memory_space<vmem>>, vector<1x256xf32>,
    %c0_47 = arith.constant 0 : index
    %c0_48 = arith.constant 0 : index
    %65 = vector.load %arg19[%c0_47, %c0_48] : memref<2x256xf32, #tpu.memory_space<vmem>>, vector<2x256xf32>
    %66 = arith.truncf %65 : vector<2x256xf32> to vector<2x256xbf16>
    %c0_49 = arith.constant 0 : index
    %c0_50 = arith.constant 0 : index
    %c0_51 = arith.constant 0 : index
    %67 = vector.load %arg12[%c0_49, %c0_50, %c0_51] : memref<2x256x256xbf16, #tpu.memory_space<vmem>>, vector<1x256x256xbf16>
    %68 = vector.shape_cast %67 : vector<1x256x256xbf16> to vector<256x256xbf16>
    %cst_52 = arith.constant dense<0.000000e+00> : vector<2x256xf32>
    %69 = tpu.matmul %66, %68, %cst_52 {dimension_numbers = #tpu.dot_dimension_numbers<[1], [0], [0], [1], [0, 0, 1, 1], [], []>} : vector<2x256xbf16>, vector<256x256xbf16>, vector<2x256xf32> -> vector<2x256xf32>
    %c0_53 = arith.constant 0 : index
    %c0_54 = arith.constant 0 : index
    %70 = vector.load %arg13[%c0_53, %c0_54] : memref<1x256xf32, #tpu.memory_space<vmem>>, vector<1x256xf32>
    %71 = vector.broadcast %70 : vector<1x256xf32> to vector<2x256xf32>
    %72 = arith.addf %69, %71 : vector<2x256xf32>
    %cst_55 = arith.constant 0.000000e+00 : f32
    %73 = vector.broadcast %cst_55 : f32 to vector<2x256xf32>
    %74 = arith.maximumf %72, %73 : vector<2x256xf32>
    %c1_56 = arith.constant 1 : index
    %c0_57 = arith.constant 0 : index
    %c0_58 = arith.constant 0 : index
    %75 = vector.load %arg12[%c1_56, %c0_57, %c0_58] : memref<2x256x256xbf16, #tpu.memory_space<vmem>>, vector<1x256x256xbf16>
    %76 = vector.shape_cast %75 : vector<1x256x256xbf16> to vector<256x256xbf16>
    %cst_59 = arith.constant dense<0.000000e+00> : vector<2x256xf32>
    %77 = tpu.matmul %66, %76, %cst_59 {dimension_numbers = #tpu.dot_dimension_numbers<[1], [0], [0], [1], [0, 0, 1, 1], [], []>} : vector<2x256xbf16>, vector<256x256xbf16>, vector<2x256xf32> -> vector<2x256xf32>
    %c0_60 = arith.constant 0 : index
    %c0_61 = arith.constant 0 : index
    %78 = vector.load %arg13[%c0_60, %c0_61] : memref<1x256xf32, #tpu.memory_space<vmem>>, vector<1x256xf32>
    %79 = vector.broadcast %78 : vector<1x256xf32> to vector<2x256xf32>
    %80 = arith.addf %77, %79 : vector<2x256xf32>
    %cst_62 = arith.constant 0.000000e+00 : f32
    %81 = vector.broadcast %cst_62 : f32 to vector<2x256xf32>
    %82 = arith.maximumf %80, %81 : vector<2x256xf32>
    %c0_63 = arith.constant 0 : index
    %c0_64 = arith.constant 0 : index
    %83 = vector.load %arg20[%c0_63, %c0_64] : memref<4x256xf32, #tpu.memory_space<vmem>>, vector<2x256xf32>
    tpu.vector_store %arg20[%c0_63, %c0_64], %74 {strides = array<i32>} : memref<4x256xf32, #tpu.memory_space<vmem>>, vector<2x256xf32>,
    %c2 = arith.constant 2 : index
    %c0_65 = arith.constant 0 : index
    %84 = vector.load %arg20[%c2, %c0_65] : memref<4x256xf32, #tpu.memory_space<vmem>>, vector<2x256xf32>
    tpu.vector_store %arg20[%c2, %c0_65], %82 {strides = array<i32>} : memref<4x256xf32, #tpu.memory_space<vmem>>, vector<2x256xf32>,
    %c0_66 = arith.constant 0 : index
    %c0_67 = arith.constant 0 : index
    %85 = vector.load %arg20[%c0_66, %c0_67] : memref<4x256xf32, #tpu.memory_space<vmem>>, vector<4x256xf32>
    %86 = arith.truncf %85 : vector<4x256xf32> to vector<4x256xbf16>
    %c0_68 = arith.constant 0 : index
    %c0_69 = arith.constant 0 : index
    %c0_70 = arith.constant 0 : index
    %87 = vector.load %arg14[%c0_68, %c0_69, %c0_70] : memref<2x256x256xbf16, #tpu.memory_space<vmem>>, vector<1x256x256xbf16>
    %88 = vector.shape_cast %87 : vector<1x256x256xbf16> to vector<256x256xbf16>
    %cst_71 = arith.constant dense<0.000000e+00> : vector<4x256xf32>
    %89 = tpu.matmul %86, %88, %cst_71 {dimension_numbers = #tpu.dot_dimension_numbers<[1], [0], [0], [1], [0, 0, 1, 1], [], []>} : vector<4x256xbf16>, vector<256x256xbf16>, vector<4x256xf32> -> vector<4x256xf32>
    %c0_72 = arith.constant 0 : index
    %c0_73 = arith.constant 0 : index
    %90 = vector.load %arg15[%c0_72, %c0_73] : memref<1x256xf32, #tpu.memory_space<vmem>>, vector<1x256xf32>
    %91 = vector.broadcast %90 : vector<1x256xf32> to vector<4x256xf32>
    %92 = arith.addf %89, %91 : vector<4x256xf32>
    %cst_74 = arith.constant 0.000000e+00 : f32
    %93 = vector.broadcast %cst_74 : f32 to vector<4x256xf32>
    %94 = arith.maximumf %92, %93 : vector<4x256xf32>
    %c1_75 = arith.constant 1 : index
    %c0_76 = arith.constant 0 : index
    %c0_77 = arith.constant 0 : index
    %95 = vector.load %arg14[%c1_75, %c0_76, %c0_77] : memref<2x256x256xbf16, #tpu.memory_space<vmem>>, vector<1x256x256xbf16>
    %96 = vector.shape_cast %95 : vector<1x256x256xbf16> to vector<256x256xbf16>
    %cst_78 = arith.constant dense<0.000000e+00> : vector<4x256xf32>
    %97 = tpu.matmul %86, %96, %cst_78 {dimension_numbers = #tpu.dot_dimension_numbers<[1], [0], [0], [1], [0, 0, 1, 1], [], []>} : vector<4x256xbf16>, vector<256x256xbf16>, vector<4x256xf32> -> vector<4x256xf32>
    %c0_79 = arith.constant 0 : index
    %c0_80 = arith.constant 0 : index
    %98 = vector.load %arg15[%c0_79, %c0_80] : memref<1x256xf32, #tpu.memory_space<vmem>>, vector<1x256xf32>
    %99 = vector.broadcast %98 : vector<1x256xf32> to vector<4x256xf32>
    %100 = arith.addf %97, %99 : vector<4x256xf32>
    %cst_81 = arith.constant 0.000000e+00 : f32
    %101 = vector.broadcast %cst_81 : f32 to vector<4x256xf32>
    %102 = arith.maximumf %100, %101 : vector<4x256xf32>
    %c0_82 = arith.constant 0 : index
    %c0_83 = arith.constant 0 : index
    %103 = vector.load %arg21[%c0_82, %c0_83] : memref<8x256xf32, #tpu.memory_space<vmem>>, vector<4x256xf32>
    tpu.vector_store %arg21[%c0_82, %c0_83], %94 {strides = array<i32>} : memref<8x256xf32, #tpu.memory_space<vmem>>, vector<4x256xf32>,
    %c4 = arith.constant 4 : index
    %c0_84 = arith.constant 0 : index
    %104 = vector.load %arg21[%c4, %c0_84] : memref<8x256xf32, #tpu.memory_space<vmem>>, vector<4x256xf32>
    tpu.vector_store %arg21[%c4, %c0_84], %102 {strides = array<i32>} : memref<8x256xf32, #tpu.memory_space<vmem>>, vector<4x256xf32>,
    %c0_85 = arith.constant 0 : index
    %c0_86 = arith.constant 0 : index
    %105 = vector.load %arg21[%c0_85, %c0_86] : memref<8x256xf32, #tpu.memory_space<vmem>>, vector<8x256xf32>
    %106 = arith.truncf %105 : vector<8x256xf32> to vector<8x256xbf16>
    %c0_87 = arith.constant 0 : index
    %c0_88 = arith.constant 0 : index
    %c0_89 = arith.constant 0 : index
    %107 = vector.load %arg16[%c0_87, %c0_88, %c0_89] : memref<2x256x64xbf16, #tpu.memory_space<vmem>>, vector<1x256x64xbf16>
    %108 = vector.shape_cast %107 : vector<1x256x64xbf16> to vector<256x64xbf16>
    %cst_90 = arith.constant dense<0.000000e+00> : vector<8x64xf32>
    %109 = tpu.matmul %106, %108, %cst_90 {dimension_numbers = #tpu.dot_dimension_numbers<[1], [0], [0], [1], [0, 0, 1, 1], [], []>} : vector<8x256xbf16>, vector<256x64xbf16>, vector<8x64xf32> -> vector<8x64xf32>
    %c0_91 = arith.constant 0 : index
    %c0_92 = arith.constant 0 : index
    %110 = vector.load %arg17[%c0_91, %c0_92] : memref<1x64xf32, #tpu.memory_space<vmem>>, vector<1x64xf32>
    %111 = vector.broadcast %110 : vector<1x64xf32> to vector<8x64xf32>
    %112 = arith.addf %109, %111 : vector<8x64xf32>
    %113 = math.tanh %112 : vector<8x64xf32>
    %c1_93 = arith.constant 1 : index
    %c0_94 = arith.constant 0 : index
    %c0_95 = arith.constant 0 : index
    %114 = vector.load %arg16[%c1_93, %c0_94, %c0_95] : memref<2x256x64xbf16, #tpu.memory_space<vmem>>, vector<1x256x64xbf16>
    %115 = vector.shape_cast %114 : vector<1x256x64xbf16> to vector<256x64xbf16>
    %cst_96 = arith.constant dense<0.000000e+00> : vector<8x64xf32>
    %116 = tpu.matmul %106, %115, %cst_96 {dimension_numbers = #tpu.dot_dimension_numbers<[1], [0], [0], [1], [0, 0, 1, 1], [], []>} : vector<8x256xbf16>, vector<256x64xbf16>, vector<8x64xf32> -> vector<8x64xf32>
    %c0_97 = arith.constant 0 : index
    %c0_98 = arith.constant 0 : index
    %117 = vector.load %arg17[%c0_97, %c0_98] : memref<1x64xf32, #tpu.memory_space<vmem>>, vector<1x64xf32>
    %118 = vector.broadcast %117 : vector<1x64xf32> to vector<8x64xf32>
    %119 = arith.addf %116, %118 : vector<8x64xf32>
    %120 = math.tanh %119 : vector<8x64xf32>
    %c0_99 = arith.constant 0 : index
    %c0_100 = arith.constant 0 : index
    %121 = vector.load %arg18[%c0_99, %c0_100] : memref<8x128xf32, #tpu.memory_space<vmem>>, vector<8x64xf32>
    tpu.vector_store %arg18[%c0_99, %c0_100], %113 {strides = array<i32>} : memref<8x128xf32, #tpu.memory_space<vmem>>, vector<8x64xf32>,
    %c0_101 = arith.constant 0 : index
    %c64 = arith.constant 64 : index
    %122 = vector.load %arg18[%c0_101, %c64] : memref<8x128xf32, #tpu.memory_space<vmem>>, vector<8x64xf32>
    tpu.vector_store %arg18[%c0_101, %c64], %120 {strides = array<i32>} : memref<8x128xf32, #tpu.memory_space<vmem>>, vector<8x64xf32>,
    return
  }
  func.func @transform_0(%arg0: i32) -> (i32, i32) {
    %c0_i32 = arith.constant 0 : i32
    %c0_i32_0 = arith.constant 0 : i32
    return %arg0, %c0_i32 : i32, i32
  }
  func.func @transform_1(%arg0: i32) -> (i32, i32) {
    %c0_i32 = arith.constant 0 : i32
    %c0_i32_0 = arith.constant 0 : i32
    %c0_i32_1 = arith.constant 0 : i32
    return %c0_i32, %c0_i32_0 : i32, i32
  }
  func.func @transform_2(%arg0: i32) -> (i32, i32) {
    %c0_i32 = arith.constant 0 : i32
    %c0_i32_0 = arith.constant 0 : i32
    %c0_i32_1 = arith.constant 0 : i32
    return %c0_i32, %c0_i32_0 : i32, i32
  }
  func.func @transform_3(%arg0: i32) -> (i32, i32, i32) {
    %c0_i32 = arith.constant 0 : i32
    %c0_i32_0 = arith.constant 0 : i32
    %c0_i32_1 = arith.constant 0 : i32
    %c0_i32_2 = arith.constant 0 : i32
    return %c0_i32, %c0_i32_0, %c0_i32_1 : i32, i32, i32
  }
  func.func @transform_4(%arg0: i32) -> (i32, i32) {
    %c0_i32 = arith.constant 0 : i32
    %c0_i32_0 = arith.constant 0 : i32
    %c0_i32_1 = arith.constant 0 : i32
    return %c0_i32, %c0_i32_0 : i32, i32
  }
  func.func @transform_5(%arg0: i32) -> (i32, i32, i32) {
    %c0_i32 = arith.constant 0 : i32
    %c0_i32_0 = arith.constant 0 : i32
    %c0_i32_1 = arith.constant 0 : i32
    %c0_i32_2 = arith.constant 0 : i32
    return %c0_i32, %c0_i32_0, %c0_i32_1 : i32, i32, i32
  }
  func.func @transform_6(%arg0: i32) -> (i32, i32) {
    %c0_i32 = arith.constant 0 : i32
    %c0_i32_0 = arith.constant 0 : i32
    %c0_i32_1 = arith.constant 0 : i32
    return %c0_i32, %c0_i32_0 : i32, i32
  }
  func.func @transform_7(%arg0: i32) -> (i32, i32, i32) {
    %c0_i32 = arith.constant 0 : i32
    %c0_i32_0 = arith.constant 0 : i32
    %c0_i32_1 = arith.constant 0 : i32
    %c0_i32_2 = arith.constant 0 : i32
    return %c0_i32, %c0_i32_0, %c0_i32_1 : i32, i32, i32
  }
  func.func @transform_8(%arg0: i32) -> (i32, i32) {
    %c0_i32 = arith.constant 0 : i32
    %c0_i32_0 = arith.constant 0 : i32
    %c0_i32_1 = arith.constant 0 : i32
    return %c0_i32, %c0_i32_0 : i32, i32
  }
  func.func @transform_9(%arg0: i32) -> (i32, i32) {
    %c0_i32 = arith.constant 0 : i32
    %c0_i32_0 = arith.constant 0 : i32
    %c0_i32_1 = arith.constant 0 : i32
    return %c0_i32, %c0_i32_0 : i32, i32
  }
  func.func @transform_10(%arg0: i32) -> (i32, i32) {
    %c0_i32 = arith.constant 0 : i32
    %c0_i32_0 = arith.constant 0 : i32
    %c0_i32_1 = arith.constant 0 : i32
    return %c0_i32, %c0_i32_0 : i32, i32
  }
  func.func @transform_11(%arg0: i32) -> (i32, i32, i32) {
    %c0_i32 = arith.constant 0 : i32
    %c0_i32_0 = arith.constant 0 : i32
    %c0_i32_1 = arith.constant 0 : i32
    %c0_i32_2 = arith.constant 0 : i32
    return %c0_i32, %c0_i32_0, %c0_i32_1 : i32, i32, i32
  }
  func.func @transform_12(%arg0: i32) -> (i32, i32) {
    %c0_i32 = arith.constant 0 : i32
    %c0_i32_0 = arith.constant 0 : i32
    %c0_i32_1 = arith.constant 0 : i32
    return %c0_i32, %c0_i32_0 : i32, i32
  }
  func.func @transform_13(%arg0: i32) -> (i32, i32, i32) {
    %c0_i32 = arith.constant 0 : i32
    %c0_i32_0 = arith.constant 0 : i32
    %c0_i32_1 = arith.constant 0 : i32
    %c0_i32_2 = arith.constant 0 : i32
    return %c0_i32, %c0_i32_0, %c0_i32_1 : i32, i32, i32
  }
  func.func @transform_14(%arg0: i32) -> (i32, i32) {
    %c0_i32 = arith.constant 0 : i32
    %c0_i32_0 = arith.constant 0 : i32
    %c0_i32_1 = arith.constant 0 : i32
    return %c0_i32, %c0_i32_0 : i32, i32
  }
  func.func @transform_15(%arg0: i32) -> (i32, i32, i32) {
    %c0_i32 = arith.constant 0 : i32
    %c0_i32_0 = arith.constant 0 : i32
    %c0_i32_1 = arith.constant 0 : i32
    %c0_i32_2 = arith.constant 0 : i32
    return %c0_i32, %c0_i32_0, %c0_i32_1 : i32, i32, i32
  }
  func.func @transform_16(%arg0: i32) -> (i32, i32) {
    %c0_i32 = arith.constant 0 : i32
    %c0_i32_0 = arith.constant 0 : i32
    %c0_i32_1 = arith.constant 0 : i32
    return %c0_i32, %c0_i32_0 : i32, i32
  }
  func.func @transform_17(%arg0: i32) -> (i32, i32) {
    %c0_i32 = arith.constant 0 : i32
    %c0_i32_0 = arith.constant 0 : i32
    return %arg0, %c0_i32 : i32, i32
  }
}

</mosaic_0001>

<llo_original>
// kernel: convnet_forward.1
$region0: #{convnet_forward.1}
  #allocation0 [shape = 'u32[]', space=smem, size = 0x4, offset = 0x4, fixed_abs, tag = 'smem constant byte address 0x4 - core index']
  #allocation1 [shape = 'u32[144,128]{1,0:T(1,128)}', space=vmem, size = 0x12000, scoped, tag = 'internal scratch']
  #allocation2 [shape = 'f32[2,256]{1,0:T(2,128)}', space=vmem, size = 0x800, scoped, tag = 'scratch operand']
  #allocation3 [shape = 'f32[4,256]{1,0:T(4,128)}', space=vmem, size = 0x1000, scoped, tag = 'scratch operand']
  #allocation4 [shape = 'f32[8,256]{1,0:T(8,128)}', space=vmem, size = 0x2000, scoped, tag = 'scratch operand']
  %s0 = inlined_call_operand.vmem [shape: f32[16,128], index: 0, kind: input, shape index: {}]
  %s1 = inlined_call_operand.vmem [shape: bf16[128,256], index: 1, kind: input, shape index: {}]
  %s2 = inlined_call_operand.vmem [shape: f32[1,256], index: 2, kind: input, shape index: {}]
  %s3 = inlined_call_operand.vmem [shape: bf16[2,256,256], index: 3, kind: input, shape index: {}]
  %s4 = inlined_call_operand.vmem [shape: f32[1,256], index: 4, kind: input, shape index: {}]
  %s5 = inlined_call_operand.vmem [shape: bf16[2,256,256], index: 5, kind: input, shape index: {}]
  %s6 = inlined_call_operand.vmem [shape: f32[1,256], index: 6, kind: input, shape index: {}]
  %s7 = inlined_call_operand.vmem [shape: bf16[2,256,32], index: 7, kind: input, shape index: {}]
  %s8 = inlined_call_operand.vmem [shape: f32[1,32], index: 8, kind: input, shape index: {}]
  %s9 = inlined_call_operand.vmem [shape: bf16[32,512], index: 9, kind: input, shape index: {}]
  %s10 = inlined_call_operand.vmem [shape: f32[1,512], index: 10, kind: input, shape index: {}]
  %s11 = inlined_call_operand.vmem [shape: bf16[2,256,256], index: 11, kind: input, shape index: {}]
  %s12 = inlined_call_operand.vmem [shape: f32[1,256], index: 12, kind: input, shape index: {}]
  %s13 = inlined_call_operand.hbm [shape: bf16[2,256,256], index: 13, kind: input, shape index: {}]
  %s14 = inlined_call_operand.vmem [shape: f32[1,256], index: 14, kind: input, shape index: {}]
  %s15 = inlined_call_operand.vmem [shape: bf16[2,256,64], index: 15, kind: input, shape index: {}]
  %s16 = inlined_call_operand.vmem [shape: f32[1,64], index: 16, kind: input, shape index: {}]
  %s17 = inlined_call_operand.vmem [shape: f32[16,128], index: 17, kind: output, shape index: {}]
  %s18 = sld [smem:[#allocation0]]
  $region105: #{convnet_forward.1} parent=0
    _
  %s20 = ssub.s32 1, %s18
  %s21 = scalar_select 0, %s20, %s18
  $region1: #{convnet_forward.1} parent=0
    #allocation5 [shape = 'u8[262144]{0}', space=vmem, size = 0x40000, scoped, tag = 'input window, operand 13, single buffered']
    #allocation6 [shape = 's32[2]{0}', space=sflag, size = 0x8, scoped, tag = 'scoped memory for convnet_forward.1']
    %22 = vsyncpa [#allocation6], 0
    loop: start=0, step=1, limit=4
    $region2: #{convnet_forward.1} parent=1 // loop_pre_header
      _
    $region3: #{convnet_forward.1} parent=1 // loop_header
      %s24 = sphi 0, %s28
      %p25 = scmp.ge.s32.totalorder %s24, 4
      %s34 = sphi 0, %s36
      %s37 = sphi 0, %s34
      %s38 = sphi 0, %s37
      %s54 = sphi 0, %s38
      %s58 = sphi 0, %s58
      %s60 = sphi 0, %s58
      %s61 = sphi 0, %s60
      %s75 = sphi 0, %s61
      %s79 = sphi 0, %s79
      %s81 = sphi 0, %s79
      %s82 = sphi 0, %s81
      %s96 = sphi 0, %s82
      %s100 = sphi 0, %s100
      %s102 = sphi 0, %s100
      %s103 = sphi 0, %s102
      %s117 = sphi 0, %s103
      %s121 = sphi 0, %s121
      %s123 = sphi 0, %s121
      %s124 = sphi 0, %s123
      %s138 = sphi 0, %s124
      %s142 = sphi 0, %s142
      %s144 = sphi 0, %s142
      %s145 = sphi 0, %s144
      %s159 = sphi 0, %s145
      %s163 = sphi 0, %s163
      %s165 = sphi 0, %s163
      %s166 = sphi 0, %s165
      %s180 = sphi 0, %s166
      %s184 = sphi 0, %s184
      %s186 = sphi 0, %s184
      %s187 = sphi 0, %s186
      %s201 = sphi 0, %s187
      %s205 = sphi 0, %s205
      %s207 = sphi 0, %s205
      %s208 = sphi 0, %s207
      %s222 = sphi 0, %s208
      %s226 = sphi 0, %s226
      %s228 = sphi 0, %s226
      %s229 = sphi 0, %s228
      %s243 = sphi 0, %s229
      %s247 = sphi 0, %s247
      %s249 = sphi 0, %s247
      %s250 = sphi 0, %s249
      %s264 = sphi 0, %s250
      %s268 = sphi 0, %s268
      %s270 = sphi 0, %s268
      %s271 = sphi 0, %s270
      %s285 = sphi 0, %s271
      %s289 = sphi 0, %s289
      %s291 = sphi 0, %s289
      %s292 = sphi 0, %s291
      %s306 = sphi 0, %s292
      %s310 = sphi 0, %s310
      %s312 = sphi 0, %s310
      %s313 = sphi 0, %s312
      %s327 = sphi 0, %s313
      %s331 = sphi 0, %s331
      %s333 = sphi 0, %s331
      %s334 = sphi 0, %s333
      %s348 = sphi 0, %s334
      %s352 = sphi 0, %s352
      %s354 = sphi 0, %s352
      %s355 = sphi 0, %s354
      %s369 = sphi 0, %s355
      %s373 = sphi 0, %s373
      %s375 = sphi 0, %s373
      %s376 = sphi 0, %s375
      %s390 = sphi 0, %s376
      %s396 = sphi 0, %s398
      %s399 = sphi 0, %s396
      %s400 = sphi 0, %s399
      %s416 = sphi 0, %s400
    $region4: #{convnet_forward.1} parent=1 // loop_header_branch
      %27 = sbr.rel (%p25) target = $region8
    $region5: #{convnet_forward.1} parent=1 // loop_body
      %s29 = ssub.s32 %s24, 1
      %s30 = ssub.s32 %s24, 2
      %s31 = sadd.s32 %s24, 1
      %s32 = ssub.s32 %s24, %s31
      %p33 = scmp.eq.s32.totalorder %s32, 0
      %s35 = sadd.s32 %s34, 1
      %s36 = scalar_select %p33, %s34, %s35
      %p39 = pneg %p33
      %p40 = scmp.eq.s32.totalorder %s24, 1
      %p41 = por %p39, %p40
      %p42 = scmp.ne.s32.totalorder %s34, %s37
      %p43 = scmp.eq.s32.totalorder %s24, 0
      %p44 = por %p42, %p43
      %p45 = scmp.ne.s32.totalorder %s34, %s37
      %p46 = scmp.eq.s32.totalorder %s29, 1
      %p47 = por %p45, %p46
      %p48 = scmp.ne.s32.totalorder %s37, %s38
      %p49 = scmp.eq.s32.totalorder %s29, 0
      %p50 = por %p48, %p49
      %p51 = scmp.ne.s32.totalorder %s37, %s38
      %p52 = scmp.eq.s32.totalorder %s30, 1
      %p53 = por %p51, %p52
      %p55 = scmp.ne.s32.totalorder %s38, %s54
      %p56 = scmp.eq.s32.totalorder %s30, 0
      %p57 = por %p55, %p56
      %s59 = sadd.s32 %s58, 1
      %p62 = scmp.eq.s32.totalorder %s24, 1
      %p63 = scmp.ne.s32.totalorder %s58, %s60
      %p64 = scmp.eq.s32.totalorder %s24, 0
      %p65 = por %p63, %p64
      %p66 = scmp.ne.s32.totalorder %s58, %s60
      %p67 = scmp.eq.s32.totalorder %s29, 1
      %p68 = por %p66, %p67
      %p69 = scmp.ne.s32.totalorder %s60, %s61
      %p70 = scmp.eq.s32.totalorder %s29, 0
      %p71 = por %p69, %p70
      %p72 = scmp.ne.s32.totalorder %s60, %s61
      %p73 = scmp.eq.s32.totalorder %s30, 1
      %p74 = por %p72, %p73
      %p76 = scmp.ne.s32.totalorder %s61, %s75
      %p77 = scmp.eq.s32.totalorder %s30, 0
      %p78 = por %p76, %p77
      %s80 = sadd.s32 %s79, 1
      %p83 = scmp.eq.s32.totalorder %s24, 1
      %p84 = scmp.ne.s32.totalorder %s79, %s81
      %p85 = scmp.eq.s32.totalorder %s24, 0
      %p86 = por %p84, %p85
      %p87 = scmp.ne.s32.totalorder %s79, %s81
      %p88 = scmp.eq.s32.totalorder %s29, 1
      %p89 = por %p87, %p88
      %p90 = scmp.ne.s32.totalorder %s81, %s82
      %p91 = scmp.eq.s32.totalorder %s29, 0
      %p92 = por %p90, %p91
      %p93 = scmp.ne.s32.totalorder %s81, %s82
      %p94 = scmp.eq.s32.totalorder %s30, 1
      %p95 = por %p93, %p94
      %p97 = scmp.ne.s32.totalorder %s82, %s96
      %p98 = scmp.eq.s32.totalorder %s30, 0
      %p99 = por %p97, %p98
      %s101 = sadd.s32 %s100, 1
      %p104 = scmp.eq.s32.totalorder %s24, 1
      %p105 = scmp.ne.s32.totalorder %s100, %s102
      %p106 = scmp.eq.s32.totalorder %s24, 0
      %p107 = por %p105, %p106
      %p108 = scmp.ne.s32.totalorder %s100, %s102
      %p109 = scmp.eq.s32.totalorder %s29, 1
      %p110 = por %p108, %p109
      %p111 = scmp.ne.s32.totalorder %s102, %s103
      %p112 = scmp.eq.s32.totalorder %s29, 0
      %p113 = por %p111, %p112
      %p114 = scmp.ne.s32.totalorder %s102, %s103
      %p115 = scmp.eq.s32.totalorder %s30, 1
      %p116 = por %p114, %p115
      %p118 = scmp.ne.s32.totalorder %s103, %s117
      %p119 = scmp.eq.s32.totalorder %s30, 0
      %p120 = por %p118, %p119
      %s122 = sadd.s32 %s121, 1
      %p125 = scmp.eq.s32.totalorder %s24, 1
      %p126 = scmp.ne.s32.totalorder %s121, %s123
      %p127 = scmp.eq.s32.totalorder %s24, 0
      %p128 = por %p126, %p127
      %p129 = scmp.ne.s32.totalorder %s121, %s123
      %p130 = scmp.eq.s32.totalorder %s29, 1
      %p131 = por %p129, %p130
      %p132 = scmp.ne.s32.totalorder %s123, %s124
      %p133 = scmp.eq.s32.totalorder %s29, 0
      %p134 = por %p132, %p133
      %p135 = scmp.ne.s32.totalorder %s123, %s124
      %p136 = scmp.eq.s32.totalorder %s30, 1
      %p137 = por %p135, %p136
      %p139 = scmp.ne.s32.totalorder %s124, %s138
      %p140 = scmp.eq.s32.totalorder %s30, 0
      %p141 = por %p139, %p140
      %s143 = sadd.s32 %s142, 1
      %p146 = scmp.eq.s32.totalorder %s24, 1
      %p147 = scmp.ne.s32.totalorder %s142, %s144
      %p148 = scmp.eq.s32.totalorder %s24, 0
      %p149 = por %p147, %p148
      %p150 = scmp.ne.s32.totalorder %s142, %s144
      %p151 = scmp.eq.s32.totalorder %s29, 1
      %p152 = por %p150, %p151
      %p153 = scmp.ne.s32.totalorder %s144, %s145
      %p154 = scmp.eq.s32.totalorder %s29, 0
      %p155 = por %p153, %p154
      %p156 = scmp.ne.s32.totalorder %s144, %s145
      %p157 = scmp.eq.s32.totalorder %s30, 1
      %p158 = por %p156, %p157
      %p160 = scmp.ne.s32.totalorder %s145, %s159
      %p161 = scmp.eq.s32.totalorder %s30, 0
      %p162 = por %p160, %p161
      %s164 = sadd.s32 %s163, 1
      %p167 = scmp.eq.s32.totalorder %s24, 1
      %p168 = scmp.ne.s32.totalorder %s163, %s165
      %p169 = scmp.eq.s32.totalorder %s24, 0
      %p170 = por %p168, %p169
      %p171 = scmp.ne.s32.totalorder %s163, %s165
      %p172 = scmp.eq.s32.totalorder %s29, 1
      %p173 = por %p171, %p172
      %p174 = scmp.ne.s32.totalorder %s165, %s166
      %p175 = scmp.eq.s32.totalorder %s29, 0
      %p176 = por %p174, %p175
      %p177 = scmp.ne.s32.totalorder %s165, %s166
      %p178 = scmp.eq.s32.totalorder %s30, 1
      %p179 = por %p177, %p178
      %p181 = scmp.ne.s32.totalorder %s166, %s180
      %p182 = scmp.eq.s32.totalorder %s30, 0
      %p183 = por %p181, %p182
      %s185 = sadd.s32 %s184, 1
      %p188 = scmp.eq.s32.totalorder %s24, 1
      %p189 = scmp.ne.s32.totalorder %s184, %s186
      %p190 = scmp.eq.s32.totalorder %s24, 0
      %p191 = por %p189, %p190
      %p192 = scmp.ne.s32.totalorder %s184, %s186
      %p193 = scmp.eq.s32.totalorder %s29, 1
      %p194 = por %p192, %p193
      %p195 = scmp.ne.s32.totalorder %s186, %s187
      %p196 = scmp.eq.s32.totalorder %s29, 0
      %p197 = por %p195, %p196
      %p198 = scmp.ne.s32.totalorder %s186, %s187
      %p199 = scmp.eq.s32.totalorder %s30, 1
      %p200 = por %p198, %p199
      %p202 = scmp.ne.s32.totalorder %s187, %s201
      %p203 = scmp.eq.s32.totalorder %s30, 0
      %p204 = por %p202, %p203
      %s206 = sadd.s32 %s205, 1
      %p209 = scmp.eq.s32.totalorder %s24, 1
      %p210 = scmp.ne.s32.totalorder %s205, %s207
      %p211 = scmp.eq.s32.totalorder %s24, 0
      %p212 = por %p210, %p211
      %p213 = scmp.ne.s32.totalorder %s205, %s207
      %p214 = scmp.eq.s32.totalorder %s29, 1
      %p215 = por %p213, %p214
      %p216 = scmp.ne.s32.totalorder %s207, %s208
      %p217 = scmp.eq.s32.totalorder %s29, 0
      %p218 = por %p216, %p217
      %p219 = scmp.ne.s32.totalorder %s207, %s208
      %p220 = scmp.eq.s32.totalorder %s30, 1
      %p221 = por %p219, %p220
      %p223 = scmp.ne.s32.totalorder %s208, %s222
      %p224 = scmp.eq.s32.totalorder %s30, 0
      %p225 = por %p223, %p224
      %s227 = sadd.s32 %s226, 1
      %p230 = scmp.eq.s32.totalorder %s24, 1
      %p231 = scmp.ne.s32.totalorder %s226, %s228
      %p232 = scmp.eq.s32.totalorder %s24, 0
      %p233 = por %p231, %p232
      %p234 = scmp.ne.s32.totalorder %s226, %s228
      %p235 = scmp.eq.s32.totalorder %s29, 1
      %p236 = por %p234, %p235
      %p237 = scmp.ne.s32.totalorder %s228, %s229
      %p238 = scmp.eq.s32.totalorder %s29, 0
      %p239 = por %p237, %p238
      %p240 = scmp.ne.s32.totalorder %s228, %s229
      %p241 = scmp.eq.s32.totalorder %s30, 1
      %p242 = por %p240, %p241
      %p244 = scmp.ne.s32.totalorder %s229, %s243
      %p245 = scmp.eq.s32.totalorder %s30, 0
      %p246 = por %p244, %p245
      %s248 = sadd.s32 %s247, 1
      %p251 = scmp.eq.s32.totalorder %s24, 1
      %p252 = scmp.ne.s32.totalorder %s247, %s249
      %p253 = scmp.eq.s32.totalorder %s24, 0
      %p254 = por %p252, %p253
      %p255 = scmp.ne.s32.totalorder %s247, %s249
      %p256 = scmp.eq.s32.totalorder %s29, 1
      %p257 = por %p255, %p256
      %p258 = scmp.ne.s32.totalorder %s249, %s250
      %p259 = scmp.eq.s32.totalorder %s29, 0
      %p260 = por %p258, %p259
      %p261 = scmp.ne.s32.totalorder %s249, %s250
      %p262 = scmp.eq.s32.totalorder %s30, 1
      %p263 = por %p261, %p262
      %p265 = scmp.ne.s32.totalorder %s250, %s264
      %p266 = scmp.eq.s32.totalorder %s30, 0
      %p267 = por %p265, %p266
      %s269 = sadd.s32 %s268, 1
      %p272 = scmp.eq.s32.totalorder %s24, 1
      %p273 = scmp.ne.s32.totalorder %s268, %s270
      %p274 = scmp.eq.s32.totalorder %s24, 0
      %p275 = por %p273, %p274
      %p276 = scmp.ne.s32.totalorder %s268, %s270
      %p277 = scmp.eq.s32.totalorder %s29, 1
      %p278 = por %p276, %p277
      %p279 = scmp.ne.s32.totalorder %s270, %s271
      %p280 = scmp.eq.s32.totalorder %s29, 0
      %p281 = por %p279, %p280
      %p282 = scmp.ne.s32.totalorder %s270, %s271
      %p283 = scmp.eq.s32.totalorder %s30, 1
      %p284 = por %p282, %p283
      %p286 = scmp.ne.s32.totalorder %s271, %s285
      %p287 = scmp.eq.s32.totalorder %s30, 0
      %p288 = por %p286, %p287
      %s290 = sadd.s32 %s289, 1
      %p293 = scmp.eq.s32.totalorder %s24, 1
      %p294 = scmp.ne.s32.totalorder %s289, %s291
      %p295 = scmp.eq.s32.totalorder %s24, 0
      %p296 = por %p294, %p295
      %p297 = scmp.ne.s32.totalorder %s289, %s291
      %p298 = scmp.eq.s32.totalorder %s29, 1
      %p299 = por %p297, %p298
      %p300 = scmp.ne.s32.totalorder %s291, %s292
      %p301 = scmp.eq.s32.totalorder %s29, 0
      %p302 = por %p300, %p301
      %p303 = scmp.ne.s32.totalorder %s291, %s292
      %p304 = scmp.eq.s32.totalorder %s30, 1
      %p305 = por %p303, %p304
      %p307 = scmp.ne.s32.totalorder %s292, %s306
      %p308 = scmp.eq.s32.totalorder %s30, 0
      %p309 = por %p307, %p308
      %s311 = sadd.s32 %s310, 1
      %p314 = scmp.eq.s32.totalorder %s24, 1
      %p315 = scmp.ne.s32.totalorder %s310, %s312
      %p316 = scmp.eq.s32.totalorder %s24, 0
      %p317 = por %p315, %p316
      %p318 = scmp.ne.s32.totalorder %s310, %s312
      %p319 = scmp.eq.s32.totalorder %s29, 1
      %p320 = por %p318, %p319
      %p321 = scmp.ne.s32.totalorder %s312, %s313
      %p322 = scmp.eq.s32.totalorder %s29, 0
      %p323 = por %p321, %p322
      %p324 = scmp.ne.s32.totalorder %s312, %s313
      %p325 = scmp.eq.s32.totalorder %s30, 1
      %p326 = por %p324, %p325
      %p328 = scmp.ne.s32.totalorder %s313, %s327
      %p329 = scmp.eq.s32.totalorder %s30, 0
      %p330 = por %p328, %p329
      %s332 = sadd.s32 %s331, 1
      %p335 = scmp.eq.s32.totalorder %s24, 1
      %p336 = scmp.ne.s32.totalorder %s331, %s333
      %p337 = scmp.eq.s32.totalorder %s24, 0
      %p338 = por %p336, %p337
      %p339 = scmp.ne.s32.totalorder %s331, %s333
      %p340 = scmp.eq.s32.totalorder %s29, 1
      %p341 = por %p339, %p340
      %p342 = scmp.ne.s32.totalorder %s333, %s334
      %p343 = scmp.eq.s32.totalorder %s29, 0
      %p344 = por %p342, %p343
      %p345 = scmp.ne.s32.totalorder %s333, %s334
      %p346 = scmp.eq.s32.totalorder %s30, 1
      %p347 = por %p345, %p346
      %p349 = scmp.ne.s32.totalorder %s334, %s348
      %p350 = scmp.eq.s32.totalorder %s30, 0
      %p351 = por %p349, %p350
      %s353 = sadd.s32 %s352, 1
      %p356 = scmp.eq.s32.totalorder %s24, 1
      %p357 = scmp.ne.s32.totalorder %s352, %s354
      %p358 = scmp.eq.s32.totalorder %s24, 0
      %p359 = por %p357, %p358
      %p360 = scmp.ne.s32.totalorder %s352, %s354
      %p361 = scmp.eq.s32.totalorder %s29, 1
      %p362 = por %p360, %p361
      %p363 = scmp.ne.s32.totalorder %s354, %s355
      %p364 = scmp.eq.s32.totalorder %s29, 0
      %p365 = por %p363, %p364
      %p366 = scmp.ne.s32.totalorder %s354, %s355
      %p367 = scmp.eq.s32.totalorder %s30, 1
      %p368 = por %p366, %p367
      %p370 = scmp.ne.s32.totalorder %s355, %s369
      %p371 = scmp.eq.s32.totalorder %s30, 0
      %p372 = por %p370, %p371
      %s374 = sadd.s32 %s373, 1
      %p377 = scmp.eq.s32.totalorder %s24, 1
      %p378 = scmp.ne.s32.totalorder %s373, %s375
      %p379 = scmp.eq.s32.totalorder %s24, 0
      %p380 = por %p378, %p379
      %p381 = scmp.ne.s32.totalorder %s373, %s375
      %p382 = scmp.eq.s32.totalorder %s29, 1
      %p383 = por %p381, %p382
      %p384 = scmp.ne.s32.totalorder %s375, %s376
      %p385 = scmp.eq.s32.totalorder %s29, 0
      %p386 = por %p384, %p385
      %p387 = scmp.ne.s32.totalorder %s375, %s376
      %p388 = scmp.eq.s32.totalorder %s30, 1
      %p389 = por %p387, %p388
      %p391 = scmp.ne.s32.totalorder %s376, %s390
      %p392 = scmp.eq.s32.totalorder %s30, 0
      %p393 = por %p391, %p392
      %s394 = ssub.s32 %s24, %s31
      %p395 = scmp.eq.s32.totalorder %s394, 0
      %s397 = sadd.s32 %s396, 1
      %s398 = scalar_select %p395, %s396, %s397
      %p401 = pneg %p395
      %p402 = scmp.eq.s32.totalorder %s24, 1
      %p403 = por %p401, %p402
      %p404 = scmp.ne.s32.totalorder %s396, %s399
      %p405 = scmp.eq.s32.totalorder %s24, 0
      %p406 = por %p404, %p405
      %p407 = scmp.ne.s32.totalorder %s396, %s399
      %p408 = scmp.eq.s32.totalorder %s29, 1
      %p409 = por %p407, %p408
      %p410 = scmp.ne.s32.totalorder %s399, %s400
      %p411 = scmp.eq.s32.totalorder %s29, 0
      %p412 = por %p410, %p411
      %p413 = scmp.ne.s32.totalorder %s399, %s400
      %p414 = scmp.eq.s32.totalorder %s30, 1
      %p415 = por %p413, %p414
      %p417 = scmp.ne.s32.totalorder %s400, %s416
      %p418 = scmp.eq.s32.totalorder %s30, 0
      %p419 = por %p417, %p418
      %p420 = scmp.le.s32.totalorder 1, %s24
      %p421 = scmp.lt.s32.totalorder %s24, 3
      %p422 = pnand %p420, %p421
      %p423 = pneg %p422
      // Predicated region
      $region9: #{convnet_forward.1} parent=5 // pred_check
        _
      $region10: #{convnet_forward.1} parent=5 // pred_check_branch
        %425 = sbr.rel (%p422) target = $region12
      $region11: #{convnet_forward.1} parent=5 // pred_region
        %s426 = ssub.s32 %s24, 1
        // Predicated region
        $region13: #{convnet_forward.1} parent=11 // pred_check
          %p427 = pneg %p71
        $region14: #{convnet_forward.1} parent=11 // pred_check_branch
          %429 = sbr.rel (%p427) target = $region16
        $region15: #{convnet_forward.1} parent=11 // pred_region
          _
        $region16: #{convnet_forward.1} parent=11 // pred_fallthru
          _
        // Predicated region
        $region17: #{convnet_forward.1} parent=11 // pred_check
          %p430 = pneg %p92
        $region18: #{convnet_forward.1} parent=11 // pred_check_branch
          %432 = sbr.rel (%p430) target = $region20
        $region19: #{convnet_forward.1} parent=11 // pred_region
          _
        $region20: #{convnet_forward.1} parent=11 // pred_fallthru
          _
        // Predicated region
        $region21: #{convnet_forward.1} parent=11 // pred_check
          %p433 = pneg %p113
        $region22: #{convnet_forward.1} parent=11 // pred_check_branch
          %435 = sbr.rel (%p433) target = $region24
        $region23: #{convnet_forward.1} parent=11 // pred_region
          _
        $region24: #{convnet_forward.1} parent=11 // pred_fallthru
          _
        // Predicated region
        $region25: #{convnet_forward.1} parent=11 // pred_check
          %p436 = pneg %p134
        $region26: #{convnet_forward.1} parent=11 // pred_check_branch
          %438 = sbr.rel (%p436) target = $region28
        $region27: #{convnet_forward.1} parent=11 // pred_region
          _
        $region28: #{convnet_forward.1} parent=11 // pred_fallthru
          _
        // Predicated region
        $region29: #{convnet_forward.1} parent=11 // pred_check
          %p439 = pneg %p155
        $region30: #{convnet_forward.1} parent=11 // pred_check_branch
          %441 = sbr.rel (%p439) target = $region32
        $region31: #{convnet_forward.1} parent=11 // pred_region
          _
        $region32: #{convnet_forward.1} parent=11 // pred_fallthru
          _
        // Predicated region
        $region33: #{convnet_forward.1} parent=11 // pred_check
          %p442 = pneg %p176
        $region34: #{convnet_forward.1} parent=11 // pred_check_branch
          %444 = sbr.rel (%p442) target = $region36
        $region35: #{convnet_forward.1} parent=11 // pred_region
          _
        $region36: #{convnet_forward.1} parent=11 // pred_fallthru
          _
        // Predicated region
        $region37: #{convnet_forward.1} parent=11 // pred_check
          %p445 = pneg %p197
        $region38: #{convnet_forward.1} parent=11 // pred_check_branch
          %447 = sbr.rel (%p445) target = $region40
        $region39: #{convnet_forward.1} parent=11 // pred_region
          _
        $region40: #{convnet_forward.1} parent=11 // pred_fallthru
          _
        // Predicated region
        $region41: #{convnet_forward.1} parent=11 // pred_check
          %p448 = pneg %p218
        $region42: #{convnet_forward.1} parent=11 // pred_check_branch
          %450 = sbr.rel (%p448) target = $region44
        $region43: #{convnet_forward.1} parent=11 // pred_region
          _
        $region44: #{convnet_forward.1} parent=11 // pred_fallthru
          _
        // Predicated region
        $region45: #{convnet_forward.1} parent=11 // pred_check
          %p451 = pneg %p239
        $region46: #{convnet_forward.1} parent=11 // pred_check_branch
          %453 = sbr.rel (%p451) target = $region48
        $region47: #{convnet_forward.1} parent=11 // pred_region
          _
        $region48: #{convnet_forward.1} parent=11 // pred_fallthru
          _
        // Predicated region
        $region49: #{convnet_forward.1} parent=11 // pred_check
          %p454 = pneg %p260
        $region50: #{convnet_forward.1} parent=11 // pred_check_branch
          %456 = sbr.rel (%p454) target = $region52
        $region51: #{convnet_forward.1} parent=11 // pred_region
          _
        $region52: #{convnet_forward.1} parent=11 // pred_fallthru
          _
        // Predicated region
        $region53: #{convnet_forward.1} parent=11 // pred_check
          %p457 = pneg %p281
        $region54: #{convnet_forward.1} parent=11 // pred_check_branch
          %459 = sbr.rel (%p457) target = $region56
        $region55: #{convnet_forward.1} parent=11 // pred_region
          _
        $region56: #{convnet_forward.1} parent=11 // pred_fallthru
          _
        // Predicated region
        $region57: #{convnet_forward.1} parent=11 // pred_check
          %p460 = pneg %p302
        $region58: #{convnet_forward.1} parent=11 // pred_check_branch
          %462 = sbr.rel (%p460) target = $region60
        $region59: #{convnet_forward.1} parent=11 // pred_region
          _
        $region60: #{convnet_forward.1} parent=11 // pred_fallthru
          _
        // Predicated region
        $region61: #{convnet_forward.1} parent=11 // pred_check
          %p463 = pneg %p323
        $region62: #{convnet_forward.1} parent=11 // pred_check_branch
          %465 = sbr.rel (%p463) target = $region64
        $region63: #{convnet_forward.1} parent=11 // pred_region
          %s467 = ssub.s32 8192, 8192
          %468 = vsyncadd [#allocation6], %s467
          %s469 = sshll.u32 [#allocation5], 4
          %s470 = int_to_ptr.vmem [resolvable:$true] %s469
          %475 = dma.hbm_to_vmem [thread:$0]  %s13, 8192, %s470, [#allocation6], 128, 128, 8
        $region64: #{convnet_forward.1} parent=11 // pred_fallthru
          _
        // Predicated region
        $region65: #{convnet_forward.1} parent=11 // pred_check
          %p476 = pneg %p344
        $region66: #{convnet_forward.1} parent=11 // pred_check_branch
          %478 = sbr.rel (%p476) target = $region68
        $region67: #{convnet_forward.1} parent=11 // pred_region
          _
        $region68: #{convnet_forward.1} parent=11 // pred_fallthru
          _
        // Predicated region
        $region69: #{convnet_forward.1} parent=11 // pred_check
          %p479 = pneg %p365
        $region70: #{convnet_forward.1} parent=11 // pred_check_branch
          %481 = sbr.rel (%p479) target = $region72
        $region71: #{convnet_forward.1} parent=11 // pred_region
          _
        $region72: #{convnet_forward.1} parent=11 // pred_fallthru
          _
        // Predicated region
        $region73: #{convnet_forward.1} parent=11 // pred_check
          %p482 = pneg %p386
        $region74: #{convnet_forward.1} parent=11 // pred_check_branch
          %484 = sbr.rel (%p482) target = $region76
        $region75: #{convnet_forward.1} parent=11 // pred_region
          _
        $region76: #{convnet_forward.1} parent=11 // pred_fallthru
          _
      $region12: #{convnet_forward.1} parent=5 // pred_fallthru
        _
      %p485 = scmp.lt.s32.totalorder %s24, 2
      // Predicated region
      $region77: #{convnet_forward.1} parent=5 // pred_check
        %p486 = pneg %p485
      $region78: #{convnet_forward.1} parent=5 // pred_check_branch
        %488 = sbr.rel (%p486) target = $region80
      $region79: #{convnet_forward.1} parent=5 // pred_region
        // Predicated region
        $region81: #{convnet_forward.1} parent=79 // pred_check
          %p489 = pneg %p44
        $region82: #{convnet_forward.1} parent=79 // pred_check_branch
          %491 = sbr.rel (%p489) target = $region84
        $region83: #{convnet_forward.1} parent=79 // pred_region
          %p492 = scmp.lt.s32.totalorder %s24, 1
          %s493 = scalar_select %p492, %s24, 1
          %s494 = smul.addr %s493, 8
          %s495 = scalar_lea.vmem %s0, %s494
        $region84: #{convnet_forward.1} parent=79 // pred_fallthru
          _
      $region80: #{convnet_forward.1} parent=5 // pred_fallthru
        _
      %p496 = scmp.le.s32.totalorder 1, %s24
      %p497 = scmp.lt.s32.totalorder %s24, 3
      %p498 = pnand %p496, %p497
      %p499 = pneg %p498
      // Predicated region
      $region85: #{convnet_forward.1} parent=5 // pred_check
        _
      $region86: #{convnet_forward.1} parent=5 // pred_check_branch
        %501 = sbr.rel (%p498) target = $region88
      $region87: #{convnet_forward.1} parent=5 // pred_region
        %s502 = ssub.s32 %s24, 1
        // Predicated region
        $region89: #{convnet_forward.1} parent=87 // pred_check
          %p503 = pneg %p323
        $region90: #{convnet_forward.1} parent=87 // pred_check_branch
          %505 = sbr.rel (%p503) target = $region92
        $region91: #{convnet_forward.1} parent=87 // pred_region
          %506 = dma.done [#allocation6], 8192
        $region92: #{convnet_forward.1} parent=87 // pred_fallthru
          _
        %p507 = scmp.lt.s32.totalorder %s29, 1
        %s508 = scalar_select %p507, %s29, 1
        %s509 = smul.addr %s508, 8
        %s510 = scalar_lea.vmem %s0, %s509
        %p511 = pneg %p50
        %p512 = pneg %p47
        %p513 = pneg %p71
        %p514 = pneg %p68
        %p515 = pneg %p92
        %p516 = pneg %p89
        %p517 = pneg %p113
        %p518 = pneg %p110
        %p519 = pneg %p134
        %p520 = pneg %p131
        %p521 = pneg %p155
        %p522 = pneg %p152
        %p523 = pneg %p176
        %p524 = pneg %p173
        %p525 = pneg %p197
        %p526 = pneg %p194
        %p527 = pneg %p218
        %p528 = pneg %p215
        %p529 = pneg %p239
        %p530 = pneg %p236
        %p531 = pneg %p260
        %p532 = pneg %p257
        %p533 = pneg %p281
        %p534 = pneg %p278
        %p535 = pneg %p302
        %p536 = pneg %p299
        %p537 = pneg %p323
        %p538 = pneg %p320
        %p539 = pneg %p344
        %p540 = pneg %p341
        %p541 = pneg %p365
        %p542 = pneg %p362
        %p543 = pneg %p386
        %p544 = pneg %p383
        %p545 = pneg %p412
        %p546 = pneg %p409
        %p547 = scmp.lt.s32.totalorder %s29, 1
        %s548 = scalar_select %p547, %s29, 1
        %s549 = smul.addr %s548, 8
        %s550 = scalar_lea.vmem %s17, %s549
        %p551 = scmp.lt.s32.totalorder %s29, 1
        %s552 = scalar_select %p551, %s29, 1
        %s553 = smul.addr %s552, 8
        %s554 = scalar_lea.vmem %s0, %s553
        %p555 = scmp.lt.s32.totalorder %s29, 1
        %s556 = scalar_select %p555, %s29, 1
        %s557 = smul.addr %s556, 8
        %s558 = scalar_lea.vmem %s17, %s557
        %v560 = vld [vmem:[%s554] sm:$0xff]
        %v561 = vpack.c.bf16 %v560, %v560
        %v562 = vld [vmem:[%s1] sm:$0xff]
        %v563 = vld [vmem:[%s1 + $0x8] sm:$0xff]
        %v564 = vld [vmem:[%s1 + $0x10] sm:$0xff]
        %v565 = vld [vmem:[%s1 + $0x18] sm:$0xff]
        %v566 = vld [vmem:[%s1 + $0x20] sm:$0xff]
        %v567 = vld [vmem:[%s1 + $0x28] sm:$0xff]
        %v568 = vld [vmem:[%s1 + $0x30] sm:$0xff]
        %v569 = vld [vmem:[%s1 + $0x38] sm:$0xff]
        %v570 = vld [vmem:[%s1 + $0x40] sm:$0xff]
        %v571 = vld [vmem:[%s1 + $0x48] sm:$0xff]
        %v572 = vld [vmem:[%s1 + $0x50] sm:$0xff]
        %v573 = vld [vmem:[%s1 + $0x58] sm:$0xff]
        %v574 = vld [vmem:[%s1 + $0x60] sm:$0xff]
        %v575 = vld [vmem:[%s1 + $0x68] sm:$0xff]
        %v576 = vld [vmem:[%s1 + $0x70] sm:$0xff]
        %v577 = vld [vmem:[%s1 + $0x78] sm:$0xff]
        %v578 = vld [vmem:[%s2] sm:$0x3]
        %v580 = vlaneseq
        %v581 = vshrl.u32 %v580, 7
        %v582 = vsub.s32 0, %v581
        %v583 = vrot.slane %v578, %v582
        %v584 = vlaneseq
        %v585 = vshrl.u32 %v584, 7
        %v586 = vsub.s32 1, %v585
        %v587 = vrot.slane %v578, %v586
        %v606 = vunpack.c.l.b16 %v562
        %v607 = vunpack.c.h.b16 %v562
        %v608 = vunpack.c.l.b16 %v563
        %v609 = vunpack.c.h.b16 %v563
        %v610 = vunpack.c.l.b16 %v564
        %v611 = vunpack.c.h.b16 %v564
        %v612 = vunpack.c.l.b16 %v565
        %v613 = vunpack.c.h.b16 %v565
        %v614 = vunpack.c.l.b16 %v566
        %v615 = vunpack.c.h.b16 %v566
        %v616 = vunpack.c.l.b16 %v567
        %v617 = vunpack.c.h.b16 %v567
        %v618 = vunpack.c.l.b16 %v568
        %v619 = vunpack.c.h.b16 %v568
        %v620 = vunpack.c.l.b16 %v569
        %v621 = vunpack.c.h.b16 %v569
        %v622 = vunpack.c.l.b16 %v570
        %v623 = vunpack.c.h.b16 %v570
        %v624 = vunpack.c.l.b16 %v571
        %v625 = vunpack.c.h.b16 %v571
        %v626 = vunpack.c.l.b16 %v572
        %v627 = vunpack.c.h.b16 %v572
        %v628 = vunpack.c.l.b16 %v573
        %v629 = vunpack.c.h.b16 %v573
        %v630 = vunpack.c.l.b16 %v574
        %v631 = vunpack.c.h.b16 %v574
        %v632 = vunpack.c.l.b16 %v575
        %v633 = vunpack.c.h.b16 %v575
        %v634 = vunpack.c.l.b16 %v576
        %v635 = vunpack.c.h.b16 %v576
        %v636 = vunpack.c.l.b16 %v577
        %v637 = vunpack.c.h.b16 %v577
        %v638 = vpack.c.b16 %v608, %v606
        %v639 = vpack.c.b16 %v609, %v607
        %v640 = vpack.c.b16 %v612, %v610
        %v641 = vpack.c.b16 %v613, %v611
        %v642 = vpack.c.b16 %v616, %v614
        %v643 = vpack.c.b16 %v617, %v615
        %v644 = vpack.c.b16 %v620, %v618
        %v645 = vpack.c.b16 %v621, %v619
        %v646 = vpack.c.b16 %v624, %v622
        %v647 = vpack.c.b16 %v625, %v623
        %v648 = vpack.c.b16 %v628, %v626
        %v649 = vpack.c.b16 %v629, %v627
        %v650 = vpack.c.b16 %v632, %v630
        %v651 = vpack.c.b16 %v633, %v631
        %v652 = vpack.c.b16 %v636, %v634
        %v653 = vpack.c.b16 %v637, %v635
        %670 = vmatprep.subr.bf16.mxu0 %v653
        %671 = vmatpush1.bf16.msra.mxu0 %v652
        %672 = vmatprep.subr.bf16.mxu0 %v651
        %673 = vmatpush1.bf16.msra.mxu0 %v650
        %674 = vmatprep.subr.bf16.mxu0 %v649
        %675 = vmatpush1.bf16.msra.mxu0 %v648
        %676 = vmatprep.subr.bf16.mxu0 %v647
        %677 = vmatpush1.bf16.msra.mxu0 %v646
        %678 = vmatprep.subr.bf16.mxu0 %v645
        %679 = vmatpush1.bf16.msra.mxu0 %v644
        %680 = vmatprep.subr.bf16.mxu0 %v643
        %681 = vmatpush1.bf16.msra.mxu0 %v642
        %682 = vmatprep.subr.bf16.mxu0 %v641
        %683 = vmatpush1.bf16.msra.mxu0 %v640
        %684 = vmatprep.subr.bf16.mxu0 %v639
        %685 = vmatpush1.bf16.msra.mxu0 %v638
        %686 = vmatprep.subr.bf16.mxu0 0
        %687 = vmatpush2.bf16.msra.mxu0 0
        %688 = vmatprep.subr.bf16.mxu0 0
        %689 = vmatpush2.bf16.msra.mxu0 0
        %690 = vmatprep.subr.bf16.mxu0 0
        %691 = vmatpush2.bf16.msra.mxu0 0
        %692 = vmatprep.subr.bf16.mxu0 0
        %693 = vmatpush2.bf16.msra.mxu0 0
        %694 = vmatprep.subr.bf16.mxu0 0
        %695 = vmatpush2.bf16.msra.mxu0 0
        %696 = vmatprep.subr.bf16.mxu0 0
        %697 = vmatpush2.bf16.msra.mxu0 0
        %698 = vmatprep.subr.bf16.mxu0 0
        %699 = vmatpush2.bf16.msra.mxu0 0
        %700 = vmatprep.subr.bf16.mxu0 0
        %701 = vmatpush2.bf16.msra.mxu0 0
        %702 = vmatprep.mubr.bf16.mxu0 0
        %703 = vmatmul.mubr.bf16.gmra.mxu0 %v561
        %v704 = vpop.f32.mrf.mxu0
        %v705 = vadd.f32 %v583, %v704
        %v706 = vpop.f32.mrf.mxu0
        %v707 = vadd.f32 %v587, %v706
        %v708 = vpop.f32.mrf.mxu0
        %v709 = vpop.f32.mrf.mxu0
        %710 = vdwg.mxu0
        %v711 = vmax.f32 %v705, 0.0
        %v712 = vmax.f32 %v707, 0.0
        %v713 = vpack.c.bf16 %v711, %v711
        %v714 = vpack.c.bf16 %v712, %v712
        %v715 = vld [vmem:[%s3] sm:$0xff]
        %v716 = vld [vmem:[%s3 + $0x8] sm:$0xff]
        %v717 = vld [vmem:[%s3 + $0x10] sm:$0xff]
        %v718 = vld [vmem:[%s3 + $0x18] sm:$0xff]
        %v719 = vld [vmem:[%s3 + $0x20] sm:$0xff]
        %v720 = vld [vmem:[%s3 + $0x28] sm:$0xff]
        %v721 = vld [vmem:[%s3 + $0x30] sm:$0xff]
        %v722 = vld [vmem:[%s3 + $0x38] sm:$0xff]
        %v723 = vld [vmem:[%s3 + $0x40] sm:$0xff]
        %v724 = vld [vmem:[%s3 + $0x48] sm:$0xff]
        %v725 = vld [vmem:[%s3 + $0x50] sm:$0xff]
        %v726 = vld [vmem:[%s3 + $0x58] sm:$0xff]
        %v727 = vld [vmem:[%s3 + $0x60] sm:$0xff]
        %v728 = vld [vmem:[%s3 + $0x68] sm:$0xff]
        %v729 = vld [vmem:[%s3 + $0x70] sm:$0xff]
        %v730 = vld [vmem:[%s3 + $0x78] sm:$0xff]
        %v731 = vld [vmem:[%s3 + $0x80] sm:$0xff]
        %v732 = vld [vmem:[%s3 + $0x88] sm:$0xff]
        %v733 = vld [vmem:[%s3 + $0x90] sm:$0xff]
        %v734 = vld [vmem:[%s3 + $0x98] sm:$0xff]
        %v735 = vld [vmem:[%s3 + $0xa0] sm:$0xff]
        %v736 = vld [vmem:[%s3 + $0xa8] sm:$0xff]
        %v737 = vld [vmem:[%s3 + $0xb0] sm:$0xff]
        %v738 = vld [vmem:[%s3 + $0xb8] sm:$0xff]
        %v739 = vld [vmem:[%s3 + $0xc0] sm:$0xff]
        %v740 = vld [vmem:[%s3 + $0xc8] sm:$0xff]
        %v741 = vld [vmem:[%s3 + $0xd0] sm:$0xff]
        %v742 = vld [vmem:[%s3 + $0xd8] sm:$0xff]
        %v743 = vld [vmem:[%s3 + $0xe0] sm:$0xff]
        %v744 = vld [vmem:[%s3 + $0xe8] sm:$0xff]
        %v745 = vld [vmem:[%s3 + $0xf0] sm:$0xff]
        %v746 = vld [vmem:[%s3 + $0xf8] sm:$0xff]
        %s747 = scalar_lea.vmem %s3, 256
        %v748 = vld [vmem:[%s747] sm:$0xff]
        %v749 = vld [vmem:[%s747 + $0x8] sm:$0xff]
        %v750 = vld [vmem:[%s747 + $0x10] sm:$0xff]
        %v751 = vld [vmem:[%s747 + $0x18] sm:$0xff]
        %v752 = vld [vmem:[%s747 + $0x20] sm:$0xff]
        %v753 = vld [vmem:[%s747 + $0x28] sm:$0xff]
        %v754 = vld [vmem:[%s747 + $0x30] sm:$0xff]
        %v755 = vld [vmem:[%s747 + $0x38] sm:$0xff]
        %v756 = vld [vmem:[%s747 + $0x40] sm:$0xff]
        %v757 = vld [vmem:[%s747 + $0x48] sm:$0xff]
        %v758 = vld [vmem:[%s747 + $0x50] sm:$0xff]
        %v759 = vld [vmem:[%s747 + $0x58] sm:$0xff]
        %v760 = vld [vmem:[%s747 + $0x60] sm:$0xff]
        %v761 = vld [vmem:[%s747 + $0x68] sm:$0xff]
        %v762 = vld [vmem:[%s747 + $0x70] sm:$0xff]
        %v763 = vld [vmem:[%s747 + $0x78] sm:$0xff]
        %v764 = vld [vmem:[%s747 + $0x80] sm:$0xff]
        %v765 = vld [vmem:[%s747 + $0x88] sm:$0xff]
        %v766 = vld [vmem:[%s747 + $0x90] sm:$0xff]
        %v767 = vld [vmem:[%s747 + $0x98] sm:$0xff]
        %v768 = vld [vmem:[%s747 + $0xa0] sm:$0xff]
        %v769 = vld [vmem:[%s747 + $0xa8] sm:$0xff]
        %v770 = vld [vmem:[%s747 + $0xb0] sm:$0xff]
        %v771 = vld [vmem:[%s747 + $0xb8] sm:$0xff]
        %v772 = vld [vmem:[%s747 + $0xc0] sm:$0xff]
        %v773 = vld [vmem:[%s747 + $0xc8] sm:$0xff]
        %v774 = vld [vmem:[%s747 + $0xd0] sm:$0xff]
        %v775 = vld [vmem:[%s747 + $0xd8] sm:$0xff]
        %v776 = vld [vmem:[%s747 + $0xe0] sm:$0xff]
        %v777 = vld [vmem:[%s747 + $0xe8] sm:$0xff]
        %v778 = vld [vmem:[%s747 + $0xf0] sm:$0xff]
        %v779 = vld [vmem:[%s747 + $0xf8] sm:$0xff]
        %v782 = vrot.slane %v713, 2
        %v783 = vrot.slane %v714, 2
        %v818 = vunpack.c.l.b16 %v748
        %v819 = vunpack.c.h.b16 %v748
        %v820 = vunpack.c.l.b16 %v749
        %v821 = vunpack.c.h.b16 %v749
        %v822 = vunpack.c.l.b16 %v750
        %v823 = vunpack.c.h.b16 %v750
        %v824 = vunpack.c.l.b16 %v751
        %v825 = vunpack.c.h.b16 %v751
        %v826 = vunpack.c.l.b16 %v752
        %v827 = vunpack.c.h.b16 %v752
        %v828 = vunpack.c.l.b16 %v753
        %v829 = vunpack.c.h.b16 %v753
        %v830 = vunpack.c.l.b16 %v754
        %v831 = vunpack.c.h.b16 %v754
        %v832 = vunpack.c.l.b16 %v755
        %v833 = vunpack.c.h.b16 %v755
        %v834 = vunpack.c.l.b16 %v756
        %v835 = vunpack.c.h.b16 %v756
        %v836 = vunpack.c.l.b16 %v757
        %v837 = vunpack.c.h.b16 %v757
        %v838 = vunpack.c.l.b16 %v758
        %v839 = vunpack.c.h.b16 %v758
        %v840 = vunpack.c.l.b16 %v759
        %v841 = vunpack.c.h.b16 %v759
        %v842 = vunpack.c.l.b16 %v760
        %v843 = vunpack.c.h.b16 %v760
        %v844 = vunpack.c.l.b16 %v761
        %v845 = vunpack.c.h.b16 %v761
        %v846 = vunpack.c.l.b16 %v762
        %v847 = vunpack.c.h.b16 %v762
        %v848 = vunpack.c.l.b16 %v763
        %v849 = vunpack.c.h.b16 %v763
        %v850 = vunpack.c.l.b16 %v764
        %v851 = vunpack.c.h.b16 %v764
        %v852 = vunpack.c.l.b16 %v765
        %v853 = vunpack.c.h.b16 %v765
        %v854 = vunpack.c.l.b16 %v766
        %v855 = vunpack.c.h.b16 %v766
        %v856 = vunpack.c.l.b16 %v767
        %v857 = vunpack.c.h.b16 %v767
        %v858 = vunpack.c.l.b16 %v768
        %v859 = vunpack.c.h.b16 %v768
        %v860 = vunpack.c.l.b16 %v769
        %v861 = vunpack.c.h.b16 %v769
        %v862 = vunpack.c.l.b16 %v770
        %v863 = vunpack.c.h.b16 %v770
        %v864 = vunpack.c.l.b16 %v771
        %v865 = vunpack.c.h.b16 %v771
        %v866 = vunpack.c.l.b16 %v772
        %v867 = vunpack.c.h.b16 %v772
        %v868 = vunpack.c.l.b16 %v773
        %v869 = vunpack.c.h.b16 %v773
        %v870 = vunpack.c.l.b16 %v774
        %v871 = vunpack.c.h.b16 %v774
        %v872 = vunpack.c.l.b16 %v775
        %v873 = vunpack.c.h.b16 %v775
        %v874 = vunpack.c.l.b16 %v776
        %v875 = vunpack.c.h.b16 %v776
        %v876 = vunpack.c.l.b16 %v777
        %v877 = vunpack.c.h.b16 %v777
        %v878 = vunpack.c.l.b16 %v778
        %v879 = vunpack.c.h.b16 %v778
        %v880 = vunpack.c.l.b16 %v779
        %v881 = vunpack.c.h.b16 %v779
        %v882 = vpack.c.b16 %v820, %v818
        %v883 = vpack.c.b16 %v821, %v819
        %v884 = vpack.c.b16 %v824, %v822
        %v885 = vpack.c.b16 %v825, %v823
        %v886 = vpack.c.b16 %v828, %v826
        %v887 = vpack.c.b16 %v829, %v827
        %v888 = vpack.c.b16 %v832, %v830
        %v889 = vpack.c.b16 %v833, %v831
        %v890 = vpack.c.b16 %v836, %v834
        %v891 = vpack.c.b16 %v837, %v835
        %v892 = vpack.c.b16 %v840, %v838
        %v893 = vpack.c.b16 %v841, %v839
        %v894 = vpack.c.b16 %v844, %v842
        %v895 = vpack.c.b16 %v845, %v843
        %v896 = vpack.c.b16 %v848, %v846
        %v897 = vpack.c.b16 %v849, %v847
        %v898 = vpack.c.b16 %v852, %v850
        %v899 = vpack.c.b16 %v853, %v851
        %v900 = vpack.c.b16 %v856, %v854
        %v901 = vpack.c.b16 %v857, %v855
        %v902 = vpack.c.b16 %v860, %v858
        %v903 = vpack.c.b16 %v861, %v859
        %v904 = vpack.c.b16 %v864, %v862
        %v905 = vpack.c.b16 %v865, %v863
        %v906 = vpack.c.b16 %v868, %v866
        %v907 = vpack.c.b16 %v869, %v867
        %v908 = vpack.c.b16 %v872, %v870
        %v909 = vpack.c.b16 %v873, %v871
        %v910 = vpack.c.b16 %v876, %v874
        %v911 = vpack.c.b16 %v877, %v875
        %v912 = vpack.c.b16 %v880, %v878
        %v913 = vpack.c.b16 %v881, %v879
        %946 = vmatprep.subr.bf16.mxu0 %v897
        %947 = vmatpush1.bf16.msra.mxu0 %v896
        %948 = vmatprep.subr.bf16.mxu0 %v895
        %949 = vmatpush1.bf16.msra.mxu0 %v894
        %950 = vmatprep.subr.bf16.mxu0 %v893
        %951 = vmatpush1.bf16.msra.mxu0 %v892
        %952 = vmatprep.subr.bf16.mxu0 %v891
        %953 = vmatpush1.bf16.msra.mxu0 %v890
        %954 = vmatprep.subr.bf16.mxu0 %v889
        %955 = vmatpush1.bf16.msra.mxu0 %v888
        %956 = vmatprep.subr.bf16.mxu0 %v887
        %957 = vmatpush1.bf16.msra.mxu0 %v886
        %958 = vmatprep.subr.bf16.mxu0 %v885
        %959 = vmatpush1.bf16.msra.mxu0 %v884
        %960 = vmatprep.subr.bf16.mxu0 %v883
        %961 = vmatpush1.bf16.msra.mxu0 %v882
        %962 = vmatprep.subr.bf16.mxu0 %v913
        %963 = vmatpush2.bf16.msra.mxu0 %v912
        %964 = vmatprep.subr.bf16.mxu0 %v911
        %965 = vmatpush2.bf16.msra.mxu0 %v910
        %966 = vmatprep.subr.bf16.mxu0 %v909
        %967 = vmatpush2.bf16.msra.mxu0 %v908
        %968 = vmatprep.subr.bf16.mxu0 %v907
        %969 = vmatpush2.bf16.msra.mxu0 %v906
        %970 = vmatprep.subr.bf16.mxu0 %v905
        %971 = vmatpush2.bf16.msra.mxu0 %v904
        %972 = vmatprep.subr.bf16.mxu0 %v903
        %973 = vmatpush2.bf16.msra.mxu0 %v902
        %974 = vmatprep.subr.bf16.mxu0 %v901
        %975 = vmatpush2.bf16.msra.mxu0 %v900
        %976 = vmatprep.subr.bf16.mxu0 %v899
        %977 = vmatpush2.bf16.msra.mxu0 %v898
        %978 = vmatprep.mubr.bf16.mxu0 %v783
        %979 = vmatmul.mubr.bf16.gmra.mxu0 %v782
        %v980 = vpop.f32.mrf.mxu0
        %v981 = vadd.f32 0.0, %v980
        %v982 = vpop.f32.mrf.mxu0
        %v983 = vadd.f32 0.0, %v982
        %v984 = vpop.f32.mrf.mxu0
        %v985 = vpop.f32.mrf.mxu0
        %986 = vdwg.mxu0
        %v1019 = vunpack.c.l.b16 %v715
        %v1020 = vunpack.c.h.b16 %v715
        %v1021 = vunpack.c.l.b16 %v716
        %v1022 = vunpack.c.h.b16 %v716
        %v1023 = vunpack.c.l.b16 %v717
        %v1024 = vunpack.c.h.b16 %v717
        %v1025 = vunpack.c.l.b16 %v718
        %v1026 = vunpack.c.h.b16 %v718
        %v1027 = vunpack.c.l.b16 %v719
        %v1028 = vunpack.c.h.b16 %v719
        %v1029 = vunpack.c.l.b16 %v720
        %v1030 = vunpack.c.h.b16 %v720
        %v1031 = vunpack.c.l.b16 %v721
        %v1032 = vunpack.c.h.b16 %v721
        %v1033 = vunpack.c.l.b16 %v722
        %v1034 = vunpack.c.h.b16 %v722
        %v1035 = vunpack.c.l.b16 %v723
        %v1036 = vunpack.c.h.b16 %v723
        %v1037 = vunpack.c.l.b16 %v724
        %v1038 = vunpack.c.h.b16 %v724
        %v1039 = vunpack.c.l.b16 %v725
        %v1040 = vunpack.c.h.b16 %v725
        %v1041 = vunpack.c.l.b16 %v726
        %v1042 = vunpack.c.h.b16 %v726
        %v1043 = vunpack.c.l.b16 %v727
        %v1044 = vunpack.c.h.b16 %v727
        %v1045 = vunpack.c.l.b16 %v728
        %v1046 = vunpack.c.h.b16 %v728
        %v1047 = vunpack.c.l.b16 %v729
        %v1048 = vunpack.c.h.b16 %v729
        %v1049 = vunpack.c.l.b16 %v730
        %v1050 = vunpack.c.h.b16 %v730
        %v1051 = vunpack.c.l.b16 %v731
        %v1052 = vunpack.c.h.b16 %v731
        %v1053 = vunpack.c.l.b16 %v732
        %v1054 = vunpack.c.h.b16 %v732
        %v1055 = vunpack.c.l.b16 %v733
        %v1056 = vunpack.c.h.b16 %v733
        %v1057 = vunpack.c.l.b16 %v734
        %v1058 = vunpack.c.h.b16 %v734
        %v1059 = vunpack.c.l.b16 %v735
        %v1060 = vunpack.c.h.b16 %v735
        %v1061 = vunpack.c.l.b16 %v736
        %v1062 = vunpack.c.h.b16 %v736
        %v1063 = vunpack.c.l.b16 %v737
        %v1064 = vunpack.c.h.b16 %v737
        %v1065 = vunpack.c.l.b16 %v738
        %v1066 = vunpack.c.h.b16 %v738
        %v1067 = vunpack.c.l.b16 %v739
        %v1068 = vunpack.c.h.b16 %v739
        %v1069 = vunpack.c.l.b16 %v740
        %v1070 = vunpack.c.h.b16 %v740
        %v1071 = vunpack.c.l.b16 %v741
        %v1072 = vunpack.c.h.b16 %v741
        %v1073 = vunpack.c.l.b16 %v742
        %v1074 = vunpack.c.h.b16 %v742
        %v1075 = vunpack.c.l.b16 %v743
        %v1076 = vunpack.c.h.b16 %v743
        %v1077 = vunpack.c.l.b16 %v744
        %v1078 = vunpack.c.h.b16 %v744
        %v1079 = vunpack.c.l.b16 %v745
        %v1080 = vunpack.c.h.b16 %v745
        %v1081 = vunpack.c.l.b16 %v746
        %v1082 = vunpack.c.h.b16 %v746
        %v1083 = vpack.c.b16 %v1021, %v1019
        %v1084 = vpack.c.b16 %v1022, %v1020
        %v1085 = vpack.c.b16 %v1025, %v1023
        %v1086 = vpack.c.b16 %v1026, %v1024
        %v1087 = vpack.c.b16 %v1029, %v1027
        %v1088 = vpack.c.b16 %v1030, %v1028
        %v1089 = vpack.c.b16 %v1033, %v1031
        %v1090 = vpack.c.b16 %v1034, %v1032
        %v1091 = vpack.c.b16 %v1037, %v1035
        %v1092 = vpack.c.b16 %v1038, %v1036
        %v1093 = vpack.c.b16 %v1041, %v1039
        %v1094 = vpack.c.b16 %v1042, %v1040
        %v1095 = vpack.c.b16 %v1045, %v1043
        %v1096 = vpack.c.b16 %v1046, %v1044
        %v1097 = vpack.c.b16 %v1049, %v1047
        %v1098 = vpack.c.b16 %v1050, %v1048
        %v1099 = vpack.c.b16 %v1053, %v1051
        %v1100 = vpack.c.b16 %v1054, %v1052
        %v1101 = vpack.c.b16 %v1057, %v1055
        %v1102 = vpack.c.b16 %v1058, %v1056
        %v1103 = vpack.c.b16 %v1061, %v1059
        %v1104 = vpack.c.b16 %v1062, %v1060
        %v1105 = vpack.c.b16 %v1065, %v1063
        %v1106 = vpack.c.b16 %v1066, %v1064
        %v1107 = vpack.c.b16 %v1069, %v1067
        %v1108 = vpack.c.b16 %v1070, %v1068
        %v1109 = vpack.c.b16 %v1073, %v1071
        %v1110 = vpack.c.b16 %v1074, %v1072
        %v1111 = vpack.c.b16 %v1077, %v1075
        %v1112 = vpack.c.b16 %v1078, %v1076
        %v1113 = vpack.c.b16 %v1081, %v1079
        %v1114 = vpack.c.b16 %v1082, %v1080
        %1147 = vmatprep.subr.bf16.mxu0 %v1098
        %1148 = vmatpush1.bf16.msra.mxu0 %v1097
        %1149 = vmatprep.subr.bf16.mxu0 %v1096
        %1150 = vmatpush1.bf16.msra.mxu0 %v1095
        %1151 = vmatprep.subr.bf16.mxu0 %v1094
        %1152 = vmatpush1.bf16.msra.mxu0 %v1093
        %1153 = vmatprep.subr.bf16.mxu0 %v1092
        %1154 = vmatpush1.bf16.msra.mxu0 %v1091
        %1155 = vmatprep.subr.bf16.mxu0 %v1090
        %1156 = vmatpush1.bf16.msra.mxu0 %v1089
        %1157 = vmatprep.subr.bf16.mxu0 %v1088
        %1158 = vmatpush1.bf16.msra.mxu0 %v1087
        %1159 = vmatprep.subr.bf16.mxu0 %v1086
        %1160 = vmatpush1.bf16.msra.mxu0 %v1085
        %1161 = vmatprep.subr.bf16.mxu0 %v1084
        %1162 = vmatpush1.bf16.msra.mxu0 %v1083
        %1163 = vmatprep.subr.bf16.mxu0 %v1114
        %1164 = vmatpush2.bf16.msra.mxu0 %v1113
        %1165 = vmatprep.subr.bf16.mxu0 %v1112
        %1166 = vmatpush2.bf16.msra.mxu0 %v1111
        %1167 = vmatprep.subr.bf16.mxu0 %v1110
        %1168 = vmatpush2.bf16.msra.mxu0 %v1109
        %1169 = vmatprep.subr.bf16.mxu0 %v1108
        %1170 = vmatpush2.bf16.msra.mxu0 %v1107
        %1171 = vmatprep.subr.bf16.mxu0 %v1106
        %1172 = vmatpush2.bf16.msra.mxu0 %v1105
        %1173 = vmatprep.subr.bf16.mxu0 %v1104
        %1174 = vmatpush2.bf16.msra.mxu0 %v1103
        %1175 = vmatprep.subr.bf16.mxu0 %v1102
        %1176 = vmatpush2.bf16.msra.mxu0 %v1101
        %1177 = vmatprep.subr.bf16.mxu0 %v1100
        %1178 = vmatpush2.bf16.msra.mxu0 %v1099
        %1179 = vmatprep.mubr.bf16.mxu0 %v714
        %1180 = vmatmul.mubr.bf16.gmra.mxu0 %v713
        %v1181 = vpop.f32.mrf.mxu0
        %v1182 = vadd.f32 %v981, %v1181
        %v1183 = vpop.f32.mrf.mxu0
        %v1184 = vadd.f32 %v983, %v1183
        %v1185 = vpop.f32.mrf.mxu0
        %v1186 = vpop.f32.mrf.mxu0
        %1187 = vdwg.mxu0
        %v1188 = vld [vmem:[%s4] sm:$0x3]
        %v1190 = vlaneseq
        %v1191 = vshrl.u32 %v1190, 7
        %v1192 = vsub.s32 0, %v1191
        %v1193 = vrot.slane %v1188, %v1192
        %v1194 = vlaneseq
        %v1195 = vshrl.u32 %v1194, 7
        %v1196 = vsub.s32 1, %v1195
        %v1197 = vrot.slane %v1188, %v1196
        %v1200 = vadd.f32 %v1182, %v1193
        %v1201 = vadd.f32 %v1184, %v1197
        %v1202 = vmax.f32 %v1200, 0.0
        %v1203 = vmax.f32 %v1201, 0.0
        %v1204 = vpack.c.bf16 %v1202, %v1202
        %v1205 = vpack.c.bf16 %v1203, %v1203
        %v1206 = vld [vmem:[%s5] sm:$0xff]
        %v1207 = vld [vmem:[%s5 + $0x8] sm:$0xff]
        %v1208 = vld [vmem:[%s5 + $0x10] sm:$0xff]
        %v1209 = vld [vmem:[%s5 + $0x18] sm:$0xff]
        %v1210 = vld [vmem:[%s5 + $0x20] sm:$0xff]
        %v1211 = vld [vmem:[%s5 + $0x28] sm:$0xff]
        %v1212 = vld [vmem:[%s5 + $0x30] sm:$0xff]
        %v1213 = vld [vmem:[%s5 + $0x38] sm:$0xff]
        %v1214 = vld [vmem:[%s5 + $0x40] sm:$0xff]
        %v1215 = vld [vmem:[%s5 + $0x48] sm:$0xff]
        %v1216 = vld [vmem:[%s5 + $0x50] sm:$0xff]
        %v1217 = vld [vmem:[%s5 + $0x58] sm:$0xff]
        %v1218 = vld [vmem:[%s5 + $0x60] sm:$0xff]
        %v1219 = vld [vmem:[%s5 + $0x68] sm:$0xff]
        %v1220 = vld [vmem:[%s5 + $0x70] sm:$0xff]
        %v1221 = vld [vmem:[%s5 + $0x78] sm:$0xff]
        %v1222 = vld [vmem:[%s5 + $0x80] sm:$0xff]
        %v1223 = vld [vmem:[%s5 + $0x88] sm:$0xff]
        %v1224 = vld [vmem:[%s5 + $0x90] sm:$0xff]
        %v1225 = vld [vmem:[%s5 + $0x98] sm:$0xff]
        %v1226 = vld [vmem:[%s5 + $0xa0] sm:$0xff]
        %v1227 = vld [vmem:[%s5 + $0xa8] sm:$0xff]
        %v1228 = vld [vmem:[%s5 + $0xb0] sm:$0xff]
        %v1229 = vld [vmem:[%s5 + $0xb8] sm:$0xff]
        %v1230 = vld [vmem:[%s5 + $0xc0] sm:$0xff]
        %v1231 = vld [vmem:[%s5 + $0xc8] sm:$0xff]
        %v1232 = vld [vmem:[%s5 + $0xd0] sm:$0xff]
        %v1233 = vld [vmem:[%s5 + $0xd8] sm:$0xff]
        %v1234 = vld [vmem:[%s5 + $0xe0] sm:$0xff]
        %v1235 = vld [vmem:[%s5 + $0xe8] sm:$0xff]
        %v1236 = vld [vmem:[%s5 + $0xf0] sm:$0xff]
        %v1237 = vld [vmem:[%s5 + $0xf8] sm:$0xff]
        %s1238 = scalar_lea.vmem %s5, 256
        %v1239 = vld [vmem:[%s1238] sm:$0xff]
        %v1240 = vld [vmem:[%s1238 + $0x8] sm:$0xff]
        %v1241 = vld [vmem:[%s1238 + $0x10] sm:$0xff]
        %v1242 = vld [vmem:[%s1238 + $0x18] sm:$0xff]
        %v1243 = vld [vmem:[%s1238 + $0x20] sm:$0xff]
        %v1244 = vld [vmem:[%s1238 + $0x28] sm:$0xff]
        %v1245 = vld [vmem:[%s1238 + $0x30] sm:$0xff]
        %v1246 = vld [vmem:[%s1238 + $0x38] sm:$0xff]
        %v1247 = vld [vmem:[%s1238 + $0x40] sm:$0xff]
        %v1248 = vld [vmem:[%s1238 + $0x48] sm:$0xff]
        %v1249 = vld [vmem:[%s1238 + $0x50] sm:$0xff]
        %v1250 = vld [vmem:[%s1238 + $0x58] sm:$0xff]
        %v1251 = vld [vmem:[%s1238 + $0x60] sm:$0xff]
        %v1252 = vld [vmem:[%s1238 + $0x68] sm:$0xff]
        %v1253 = vld [vmem:[%s1238 + $0x70] sm:$0xff]
        %v1254 = vld [vmem:[%s1238 + $0x78] sm:$0xff]
        %v1255 = vld [vmem:[%s1238 + $0x80] sm:$0xff]
        %v1256 = vld [vmem:[%s1238 + $0x88] sm:$0xff]
        %v1257 = vld [vmem:[%s1238 + $0x90] sm:$0xff]
        %v1258 = vld [vmem:[%s1238 + $0x98] sm:$0xff]
        %v1259 = vld [vmem:[%s1238 + $0xa0] sm:$0xff]
        %v1260 = vld [vmem:[%s1238 + $0xa8] sm:$0xff]
        %v1261 = vld [vmem:[%s1238 + $0xb0] sm:$0xff]
        %v1262 = vld [vmem:[%s1238 + $0xb8] sm:$0xff]
        %v1263 = vld [vmem:[%s1238 + $0xc0] sm:$0xff]
        %v1264 = vld [vmem:[%s1238 + $0xc8] sm:$0xff]
        %v1265 = vld [vmem:[%s1238 + $0xd0] sm:$0xff]
        %v1266 = vld [vmem:[%s1238 + $0xd8] sm:$0xff]
        %v1267 = vld [vmem:[%s1238 + $0xe0] sm:$0xff]
        %v1268 = vld [vmem:[%s1238 + $0xe8] sm:$0xff]
        %v1269 = vld [vmem:[%s1238 + $0xf0] sm:$0xff]
        %v1270 = vld [vmem:[%s1238 + $0xf8] sm:$0xff]
        %v1273 = vrot.slane %v1204, 1
        %v1274 = vrot.slane %v1205, 1
        %v1309 = vunpack.c.l.b16 %v1239
        %v1310 = vunpack.c.h.b16 %v1239
        %v1311 = vunpack.c.l.b16 %v1240
        %v1312 = vunpack.c.h.b16 %v1240
        %v1313 = vunpack.c.l.b16 %v1241
        %v1314 = vunpack.c.h.b16 %v1241
        %v1315 = vunpack.c.l.b16 %v1242
        %v1316 = vunpack.c.h.b16 %v1242
        %v1317 = vunpack.c.l.b16 %v1243
        %v1318 = vunpack.c.h.b16 %v1243
        %v1319 = vunpack.c.l.b16 %v1244
        %v1320 = vunpack.c.h.b16 %v1244
        %v1321 = vunpack.c.l.b16 %v1245
        %v1322 = vunpack.c.h.b16 %v1245
        %v1323 = vunpack.c.l.b16 %v1246
        %v1324 = vunpack.c.h.b16 %v1246
        %v1325 = vunpack.c.l.b16 %v1247
        %v1326 = vunpack.c.h.b16 %v1247
        %v1327 = vunpack.c.l.b16 %v1248
        %v1328 = vunpack.c.h.b16 %v1248
        %v1329 = vunpack.c.l.b16 %v1249
        %v1330 = vunpack.c.h.b16 %v1249
        %v1331 = vunpack.c.l.b16 %v1250
        %v1332 = vunpack.c.h.b16 %v1250
        %v1333 = vunpack.c.l.b16 %v1251
        %v1334 = vunpack.c.h.b16 %v1251
        %v1335 = vunpack.c.l.b16 %v1252
        %v1336 = vunpack.c.h.b16 %v1252
        %v1337 = vunpack.c.l.b16 %v1253
        %v1338 = vunpack.c.h.b16 %v1253
        %v1339 = vunpack.c.l.b16 %v1254
        %v1340 = vunpack.c.h.b16 %v1254
        %v1341 = vunpack.c.l.b16 %v1255
        %v1342 = vunpack.c.h.b16 %v1255
        %v1343 = vunpack.c.l.b16 %v1256
        %v1344 = vunpack.c.h.b16 %v1256
        %v1345 = vunpack.c.l.b16 %v1257
        %v1346 = vunpack.c.h.b16 %v1257
        %v1347 = vunpack.c.l.b16 %v1258
        %v1348 = vunpack.c.h.b16 %v1258
        %v1349 = vunpack.c.l.b16 %v1259
        %v1350 = vunpack.c.h.b16 %v1259
        %v1351 = vunpack.c.l.b16 %v1260
        %v1352 = vunpack.c.h.b16 %v1260
        %v1353 = vunpack.c.l.b16 %v1261
        %v1354 = vunpack.c.h.b16 %v1261
        %v1355 = vunpack.c.l.b16 %v1262
        %v1356 = vunpack.c.h.b16 %v1262
        %v1357 = vunpack.c.l.b16 %v1263
        %v1358 = vunpack.c.h.b16 %v1263
        %v1359 = vunpack.c.l.b16 %v1264
        %v1360 = vunpack.c.h.b16 %v1264
        %v1361 = vunpack.c.l.b16 %v1265
        %v1362 = vunpack.c.h.b16 %v1265
        %v1363 = vunpack.c.l.b16 %v1266
        %v1364 = vunpack.c.h.b16 %v1266
        %v1365 = vunpack.c.l.b16 %v1267
        %v1366 = vunpack.c.h.b16 %v1267
        %v1367 = vunpack.c.l.b16 %v1268
        %v1368 = vunpack.c.h.b16 %v1268
        %v1369 = vunpack.c.l.b16 %v1269
        %v1370 = vunpack.c.h.b16 %v1269
        %v1371 = vunpack.c.l.b16 %v1270
        %v1372 = vunpack.c.h.b16 %v1270
        %v1373 = vpack.c.b16 %v1311, %v1309
        %v1374 = vpack.c.b16 %v1312, %v1310
        %v1375 = vpack.c.b16 %v1315, %v1313
        %v1376 = vpack.c.b16 %v1316, %v1314
        %v1377 = vpack.c.b16 %v1319, %v1317
        %v1378 = vpack.c.b16 %v1320, %v1318
        %v1379 = vpack.c.b16 %v1323, %v1321
        %v1380 = vpack.c.b16 %v1324, %v1322
        %v1381 = vpack.c.b16 %v1327, %v1325
        %v1382 = vpack.c.b16 %v1328, %v1326
        %v1383 = vpack.c.b16 %v1331, %v1329
        %v1384 = vpack.c.b16 %v1332, %v1330
        %v1385 = vpack.c.b16 %v1335, %v1333
        %v1386 = vpack.c.b16 %v1336, %v1334
        %v1387 = vpack.c.b16 %v1339, %v1337
        %v1388 = vpack.c.b16 %v1340, %v1338
        %v1389 = vpack.c.b16 %v1343, %v1341
        %v1390 = vpack.c.b16 %v1344, %v1342
        %v1391 = vpack.c.b16 %v1347, %v1345
        %v1392 = vpack.c.b16 %v1348, %v1346
        %v1393 = vpack.c.b16 %v1351, %v1349
        %v1394 = vpack.c.b16 %v1352, %v1350
        %v1395 = vpack.c.b16 %v1355, %v1353
        %v1396 = vpack.c.b16 %v1356, %v1354
        %v1397 = vpack.c.b16 %v1359, %v1357
        %v1398 = vpack.c.b16 %v1360, %v1358
        %v1399 = vpack.c.b16 %v1363, %v1361
        %v1400 = vpack.c.b16 %v1364, %v1362
        %v1401 = vpack.c.b16 %v1367, %v1365
        %v1402 = vpack.c.b16 %v1368, %v1366
        %v1403 = vpack.c.b16 %v1371, %v1369
        %v1404 = vpack.c.b16 %v1372, %v1370
        %1437 = vmatprep.subr.bf16.mxu0 %v1388
        %1438 = vmatpush1.bf16.msra.mxu0 %v1387
        %1439 = vmatprep.subr.bf16.mxu0 %v1386
        %1440 = vmatpush1.bf16.msra.mxu0 %v1385
        %1441 = vmatprep.subr.bf16.mxu0 %v1384
        %1442 = vmatpush1.bf16.msra.mxu0 %v1383
        %1443 = vmatprep.subr.bf16.mxu0 %v1382
        %1444 = vmatpush1.bf16.msra.mxu0 %v1381
        %1445 = vmatprep.subr.bf16.mxu0 %v1380
        %1446 = vmatpush1.bf16.msra.mxu0 %v1379
        %1447 = vmatprep.subr.bf16.mxu0 %v1378
        %1448 = vmatpush1.bf16.msra.mxu0 %v1377
        %1449 = vmatprep.subr.bf16.mxu0 %v1376
        %1450 = vmatpush1.bf16.msra.mxu0 %v1375
        %1451 = vmatprep.subr.bf16.mxu0 %v1374
        %1452 = vmatpush1.bf16.msra.mxu0 %v1373
        %1453 = vmatprep.subr.bf16.mxu0 %v1404
        %1454 = vmatpush2.bf16.msra.mxu0 %v1403
        %1455 = vmatprep.subr.bf16.mxu0 %v1402
        %1456 = vmatpush2.bf16.msra.mxu0 %v1401
        %1457 = vmatprep.subr.bf16.mxu0 %v1400
        %1458 = vmatpush2.bf16.msra.mxu0 %v1399
        %1459 = vmatprep.subr.bf16.mxu0 %v1398
        %1460 = vmatpush2.bf16.msra.mxu0 %v1397
        %1461 = vmatprep.subr.bf16.mxu0 %v1396
        %1462 = vmatpush2.bf16.msra.mxu0 %v1395
        %1463 = vmatprep.subr.bf16.mxu0 %v1394
        %1464 = vmatpush2.bf16.msra.mxu0 %v1393
        %1465 = vmatprep.subr.bf16.mxu0 %v1392
        %1466 = vmatpush2.bf16.msra.mxu0 %v1391
        %1467 = vmatprep.subr.bf16.mxu0 %v1390
        %1468 = vmatpush2.bf16.msra.mxu0 %v1389
        %1469 = vmatprep.mubr.bf16.mxu0 %v1274
        %1470 = vmatmul.mubr.bf16.gmra.mxu0 %v1273
        %v1471 = vpop.f32.mrf.mxu0
        %v1472 = vadd.f32 0.0, %v1471
        %v1473 = vpop.f32.mrf.mxu0
        %v1474 = vadd.f32 0.0, %v1473
        %v1475 = vpop.f32.mrf.mxu0
        %v1476 = vpop.f32.mrf.mxu0
        %1477 = vdwg.mxu0
        %v1510 = vunpack.c.l.b16 %v1206
        %v1511 = vunpack.c.h.b16 %v1206
        %v1512 = vunpack.c.l.b16 %v1207
        %v1513 = vunpack.c.h.b16 %v1207
        %v1514 = vunpack.c.l.b16 %v1208
        %v1515 = vunpack.c.h.b16 %v1208
        %v1516 = vunpack.c.l.b16 %v1209
        %v1517 = vunpack.c.h.b16 %v1209
        %v1518 = vunpack.c.l.b16 %v1210
        %v1519 = vunpack.c.h.b16 %v1210
        %v1520 = vunpack.c.l.b16 %v1211
        %v1521 = vunpack.c.h.b16 %v1211
        %v1522 = vunpack.c.l.b16 %v1212
        %v1523 = vunpack.c.h.b16 %v1212
        %v1524 = vunpack.c.l.b16 %v1213
        %v1525 = vunpack.c.h.b16 %v1213
        %v1526 = vunpack.c.l.b16 %v1214
        %v1527 = vunpack.c.h.b16 %v1214
        %v1528 = vunpack.c.l.b16 %v1215
        %v1529 = vunpack.c.h.b16 %v1215
        %v1530 = vunpack.c.l.b16 %v1216
        %v1531 = vunpack.c.h.b16 %v1216
        %v1532 = vunpack.c.l.b16 %v1217
        %v1533 = vunpack.c.h.b16 %v1217
        %v1534 = vunpack.c.l.b16 %v1218
        %v1535 = vunpack.c.h.b16 %v1218
        %v1536 = vunpack.c.l.b16 %v1219
        %v1537 = vunpack.c.h.b16 %v1219
        %v1538 = vunpack.c.l.b16 %v1220
        %v1539 = vunpack.c.h.b16 %v1220
        %v1540 = vunpack.c.l.b16 %v1221
        %v1541 = vunpack.c.h.b16 %v1221
        %v1542 = vunpack.c.l.b16 %v1222
        %v1543 = vunpack.c.h.b16 %v1222
        %v1544 = vunpack.c.l.b16 %v1223
        %v1545 = vunpack.c.h.b16 %v1223
        %v1546 = vunpack.c.l.b16 %v1224
        %v1547 = vunpack.c.h.b16 %v1224
        %v1548 = vunpack.c.l.b16 %v1225
        %v1549 = vunpack.c.h.b16 %v1225
        %v1550 = vunpack.c.l.b16 %v1226
        %v1551 = vunpack.c.h.b16 %v1226
        %v1552 = vunpack.c.l.b16 %v1227
        %v1553 = vunpack.c.h.b16 %v1227
        %v1554 = vunpack.c.l.b16 %v1228
        %v1555 = vunpack.c.h.b16 %v1228
        %v1556 = vunpack.c.l.b16 %v1229
        %v1557 = vunpack.c.h.b16 %v1229
        %v1558 = vunpack.c.l.b16 %v1230
        %v1559 = vunpack.c.h.b16 %v1230
        %v1560 = vunpack.c.l.b16 %v1231
        %v1561 = vunpack.c.h.b16 %v1231
        %v1562 = vunpack.c.l.b16 %v1232
        %v1563 = vunpack.c.h.b16 %v1232
        %v1564 = vunpack.c.l.b16 %v1233
        %v1565 = vunpack.c.h.b16 %v1233
        %v1566 = vunpack.c.l.b16 %v1234
        %v1567 = vunpack.c.h.b16 %v1234
        %v1568 = vunpack.c.l.b16 %v1235
        %v1569 = vunpack.c.h.b16 %v1235
        %v1570 = vunpack.c.l.b16 %v1236
        %v1571 = vunpack.c.h.b16 %v1236
        %v1572 = vunpack.c.l.b16 %v1237
        %v1573 = vunpack.c.h.b16 %v1237
        %v1574 = vpack.c.b16 %v1512, %v1510
        %v1575 = vpack.c.b16 %v1513, %v1511
        %v1576 = vpack.c.b16 %v1516, %v1514
        %v1577 = vpack.c.b16 %v1517, %v1515
        %v1578 = vpack.c.b16 %v1520, %v1518
        %v1579 = vpack.c.b16 %v1521, %v1519
        %v1580 = vpack.c.b16 %v1524, %v1522
        %v1581 = vpack.c.b16 %v1525, %v1523
        %v1582 = vpack.c.b16 %v1528, %v1526
        %v1583 = vpack.c.b16 %v1529, %v1527
        %v1584 = vpack.c.b16 %v1532, %v1530
        %v1585 = vpack.c.b16 %v1533, %v1531
        %v1586 = vpack.c.b16 %v1536, %v1534
        %v1587 = vpack.c.b16 %v1537, %v1535
        %v1588 = vpack.c.b16 %v1540, %v1538
        %v1589 = vpack.c.b16 %v1541, %v1539
        %v1590 = vpack.c.b16 %v1544, %v1542
        %v1591 = vpack.c.b16 %v1545, %v1543
        %v1592 = vpack.c.b16 %v1548, %v1546
        %v1593 = vpack.c.b16 %v1549, %v1547
        %v1594 = vpack.c.b16 %v1552, %v1550
        %v1595 = vpack.c.b16 %v1553, %v1551
        %v1596 = vpack.c.b16 %v1556, %v1554
        %v1597 = vpack.c.b16 %v1557, %v1555
        %v1598 = vpack.c.b16 %v1560, %v1558
        %v1599 = vpack.c.b16 %v1561, %v1559
        %v1600 = vpack.c.b16 %v1564, %v1562
        %v1601 = vpack.c.b16 %v1565, %v1563
        %v1602 = vpack.c.b16 %v1568, %v1566
        %v1603 = vpack.c.b16 %v1569, %v1567
        %v1604 = vpack.c.b16 %v1572, %v1570
        %v1605 = vpack.c.b16 %v1573, %v1571
        %1638 = vmatprep.subr.bf16.mxu0 %v1589
        %1639 = vmatpush1.bf16.msra.mxu0 %v1588
        %1640 = vmatprep.subr.bf16.mxu0 %v1587
        %1641 = vmatpush1.bf16.msra.mxu0 %v1586
        %1642 = vmatprep.subr.bf16.mxu0 %v1585
        %1643 = vmatpush1.bf16.msra.mxu0 %v1584
        %1644 = vmatprep.subr.bf16.mxu0 %v1583
        %1645 = vmatpush1.bf16.msra.mxu0 %v1582
        %1646 = vmatprep.subr.bf16.mxu0 %v1581
        %1647 = vmatpush1.bf16.msra.mxu0 %v1580
        %1648 = vmatprep.subr.bf16.mxu0 %v1579
        %1649 = vmatpush1.bf16.msra.mxu0 %v1578
        %1650 = vmatprep.subr.bf16.mxu0 %v1577
        %1651 = vmatpush1.bf16.msra.mxu0 %v1576
        %1652 = vmatprep.subr.bf16.mxu0 %v1575
        %1653 = vmatpush1.bf16.msra.mxu0 %v1574
        %1654 = vmatprep.subr.bf16.mxu0 %v1605
        %1655 = vmatpush2.bf16.msra.mxu0 %v1604
        %1656 = vmatprep.subr.bf16.mxu0 %v1603
        %1657 = vmatpush2.bf16.msra.mxu0 %v1602
        %1658 = vmatprep.subr.bf16.mxu0 %v1601
        %1659 = vmatpush2.bf16.msra.mxu0 %v1600
        %1660 = vmatprep.subr.bf16.mxu0 %v1599
        %1661 = vmatpush2.bf16.msra.mxu0 %v1598
        %1662 = vmatprep.subr.bf16.mxu0 %v1597
        %1663 = vmatpush2.bf16.msra.mxu0 %v1596
        %1664 = vmatprep.subr.bf16.mxu0 %v1595
        %1665 = vmatpush2.bf16.msra.mxu0 %v1594
        %1666 = vmatprep.subr.bf16.mxu0 %v1593
        %1667 = vmatpush2.bf16.msra.mxu0 %v1592
        %1668 = vmatprep.subr.bf16.mxu0 %v1591
        %1669 = vmatpush2.bf16.msra.mxu0 %v1590
        %1670 = vmatprep.mubr.bf16.mxu0 %v1205
        %1671 = vmatmul.mubr.bf16.gmra.mxu0 %v1204
        %v1672 = vpop.f32.mrf.mxu0
        %v1673 = vadd.f32 %v1472, %v1672
        %v1674 = vpop.f32.mrf.mxu0
        %v1675 = vadd.f32 %v1474, %v1674
        %v1676 = vpop.f32.mrf.mxu0
        %v1677 = vpop.f32.mrf.mxu0
        %1678 = vdwg.mxu0
        %v1679 = vld [vmem:[%s6] sm:$0x3]
        %v1681 = vlaneseq
        %v1682 = vshrl.u32 %v1681, 7
        %v1683 = vsub.s32 0, %v1682
        %v1684 = vrot.slane %v1679, %v1683
        %v1685 = vlaneseq
        %v1686 = vshrl.u32 %v1685, 7
        %v1687 = vsub.s32 1, %v1686
        %v1688 = vrot.slane %v1679, %v1687
        %v1691 = vadd.f32 %v1673, %v1684
        %v1692 = vadd.f32 %v1675, %v1688
        %v1693 = vmax.f32 %v1691, 0.0
        %v1694 = vmax.f32 %v1692, 0.0
        %v1695 = vpack.c.bf16 %v1693, %v1693
        %v1696 = vpack.c.bf16 %v1694, %v1694
        %v1697 = vld [vmem:[%s7] sm:$0xf]
        %v1698 = vld [vmem:[%s7 + $0x4] sm:$0xf]
        %v1699 = vld [vmem:[%s7 + $0x8] sm:$0xf]
        %v1700 = vld [vmem:[%s7 + $0xc] sm:$0xf]
        %v1701 = vld [vmem:[%s7 + $0x10] sm:$0xf]
        %v1702 = vld [vmem:[%s7 + $0x14] sm:$0xf]
        %v1703 = vld [vmem:[%s7 + $0x18] sm:$0xf]
        %v1704 = vld [vmem:[%s7 + $0x1c] sm:$0xf]
        %v1705 = vld [vmem:[%s7 + $0x20] sm:$0xf]
        %v1706 = vld [vmem:[%s7 + $0x24] sm:$0xf]
        %v1707 = vld [vmem:[%s7 + $0x28] sm:$0xf]
        %v1708 = vld [vmem:[%s7 + $0x2c] sm:$0xf]
        %v1709 = vld [vmem:[%s7 + $0x30] sm:$0xf]
        %v1710 = vld [vmem:[%s7 + $0x34] sm:$0xf]
        %v1711 = vld [vmem:[%s7 + $0x38] sm:$0xf]
        %v1712 = vld [vmem:[%s7 + $0x3c] sm:$0xf]
        %v1713 = vld [vmem:[%s7 + $0x40] sm:$0xf]
        %v1714 = vld [vmem:[%s7 + $0x44] sm:$0xf]
        %v1715 = vld [vmem:[%s7 + $0x48] sm:$0xf]
        %v1716 = vld [vmem:[%s7 + $0x4c] sm:$0xf]
        %v1717 = vld [vmem:[%s7 + $0x50] sm:$0xf]
        %v1718 = vld [vmem:[%s7 + $0x54] sm:$0xf]
        %v1719 = vld [vmem:[%s7 + $0x58] sm:$0xf]
        %v1720 = vld [vmem:[%s7 + $0x5c] sm:$0xf]
        %v1721 = vld [vmem:[%s7 + $0x60] sm:$0xf]
        %v1722 = vld [vmem:[%s7 + $0x64] sm:$0xf]
        %v1723 = vld [vmem:[%s7 + $0x68] sm:$0xf]
        %v1724 = vld [vmem:[%s7 + $0x6c] sm:$0xf]
        %v1725 = vld [vmem:[%s7 + $0x70] sm:$0xf]
        %v1726 = vld [vmem:[%s7 + $0x74] sm:$0xf]
        %v1727 = vld [vmem:[%s7 + $0x78] sm:$0xf]
        %v1728 = vld [vmem:[%s7 + $0x7c] sm:$0xf]
        %s1729 = scalar_lea.vmem %s7, 128
        %v1730 = vld [vmem:[%s1729] sm:$0xf]
        %v1731 = vld [vmem:[%s1729 + $0x4] sm:$0xf]
        %v1732 = vld [vmem:[%s1729 + $0x8] sm:$0xf]
        %v1733 = vld [vmem:[%s1729 + $0xc] sm:$0xf]
        %v1734 = vld [vmem:[%s1729 + $0x10] sm:$0xf]
        %v1735 = vld [vmem:[%s1729 + $0x14] sm:$0xf]
        %v1736 = vld [vmem:[%s1729 + $0x18] sm:$0xf]
        %v1737 = vld [vmem:[%s1729 + $0x1c] sm:$0xf]
        %v1738 = vld [vmem:[%s1729 + $0x20] sm:$0xf]
        %v1739 = vld [vmem:[%s1729 + $0x24] sm:$0xf]
        %v1740 = vld [vmem:[%s1729 + $0x28] sm:$0xf]
        %v1741 = vld [vmem:[%s1729 + $0x2c] sm:$0xf]
        %v1742 = vld [vmem:[%s1729 + $0x30] sm:$0xf]
        %v1743 = vld [vmem:[%s1729 + $0x34] sm:$0xf]
        %v1744 = vld [vmem:[%s1729 + $0x38] sm:$0xf]
        %v1745 = vld [vmem:[%s1729 + $0x3c] sm:$0xf]
        %v1746 = vld [vmem:[%s1729 + $0x40] sm:$0xf]
        %v1747 = vld [vmem:[%s1729 + $0x44] sm:$0xf]
        %v1748 = vld [vmem:[%s1729 + $0x48] sm:$0xf]
        %v1749 = vld [vmem:[%s1729 + $0x4c] sm:$0xf]
        %v1750 = vld [vmem:[%s1729 + $0x50] sm:$0xf]
        %v1751 = vld [vmem:[%s1729 + $0x54] sm:$0xf]
        %v1752 = vld [vmem:[%s1729 + $0x58] sm:$0xf]
        %v1753 = vld [vmem:[%s1729 + $0x5c] sm:$0xf]
        %v1754 = vld [vmem:[%s1729 + $0x60] sm:$0xf]
        %v1755 = vld [vmem:[%s1729 + $0x64] sm:$0xf]
        %v1756 = vld [vmem:[%s1729 + $0x68] sm:$0xf]
        %v1757 = vld [vmem:[%s1729 + $0x6c] sm:$0xf]
        %v1758 = vld [vmem:[%s1729 + $0x70] sm:$0xf]
        %v1759 = vld [vmem:[%s1729 + $0x74] sm:$0xf]
        %v1760 = vld [vmem:[%s1729 + $0x78] sm:$0xf]
        %v1761 = vld [vmem:[%s1729 + $0x7c] sm:$0xf]
        %v1763 = vshrl.u32 %v1695, 16
        %v1766 = vshrl.u32 %v1696, 16
        %v1802 = vunpack.c.l.b16 %v1730
        %v1803 = vunpack.c.l.b16 %v1731
        %v1804 = vunpack.c.l.b16 %v1732
        %v1805 = vunpack.c.l.b16 %v1733
        %v1806 = vunpack.c.l.b16 %v1734
        %v1807 = vunpack.c.l.b16 %v1735
        %v1808 = vunpack.c.l.b16 %v1736
        %v1809 = vunpack.c.l.b16 %v1737
        %v1810 = vunpack.c.l.b16 %v1738
        %v1811 = vunpack.c.l.b16 %v1739
        %v1812 = vunpack.c.l.b16 %v1740
        %v1813 = vunpack.c.l.b16 %v1741
        %v1814 = vunpack.c.l.b16 %v1742
        %v1815 = vunpack.c.l.b16 %v1743
        %v1816 = vunpack.c.l.b16 %v1744
        %v1817 = vunpack.c.l.b16 %v1745
        %v1818 = vunpack.c.l.b16 %v1746
        %v1819 = vunpack.c.l.b16 %v1747
        %v1820 = vunpack.c.l.b16 %v1748
        %v1821 = vunpack.c.l.b16 %v1749
        %v1822 = vunpack.c.l.b16 %v1750
        %v1823 = vunpack.c.l.b16 %v1751
        %v1824 = vunpack.c.l.b16 %v1752
        %v1825 = vunpack.c.l.b16 %v1753
        %v1826 = vunpack.c.l.b16 %v1754
        %v1827 = vunpack.c.l.b16 %v1755
        %v1828 = vunpack.c.l.b16 %v1756
        %v1829 = vunpack.c.l.b16 %v1757
        %v1830 = vunpack.c.l.b16 %v1758
        %v1831 = vunpack.c.l.b16 %v1759
        %v1832 = vunpack.c.l.b16 %v1760
        %v1833 = vunpack.c.l.b16 %v1761
        %v1834 = vpack.c.b16 %v1803, %v1802
        %v1835 = vpack.c.b16 %v1805, %v1804
        %v1836 = vpack.c.b16 %v1807, %v1806
        %v1837 = vpack.c.b16 %v1809, %v1808
        %v1838 = vpack.c.b16 %v1811, %v1810
        %v1839 = vpack.c.b16 %v1813, %v1812
        %v1840 = vpack.c.b16 %v1815, %v1814
        %v1841 = vpack.c.b16 %v1817, %v1816
        %v1842 = vpack.c.b16 %v1819, %v1818
        %v1843 = vpack.c.b16 %v1821, %v1820
        %v1844 = vpack.c.b16 %v1823, %v1822
        %v1845 = vpack.c.b16 %v1825, %v1824
        %v1846 = vpack.c.b16 %v1827, %v1826
        %v1847 = vpack.c.b16 %v1829, %v1828
        %v1848 = vpack.c.b16 %v1831, %v1830
        %v1849 = vpack.c.b16 %v1833, %v1832
        %1866 = vmatprep.subr.bf16.mxu0 0
        %1867 = vmatpush1.bf16.msra.mxu0 %v1841
        %1868 = vmatprep.subr.bf16.mxu0 0
        %1869 = vmatpush1.bf16.msra.mxu0 %v1840
        %1870 = vmatprep.subr.bf16.mxu0 0
        %1871 = vmatpush1.bf16.msra.mxu0 %v1839
        %1872 = vmatprep.subr.bf16.mxu0 0
        %1873 = vmatpush1.bf16.msra.mxu0 %v1838
        %1874 = vmatprep.subr.bf16.mxu0 0
        %1875 = vmatpush1.bf16.msra.mxu0 %v1837
        %1876 = vmatprep.subr.bf16.mxu0 0
        %1877 = vmatpush1.bf16.msra.mxu0 %v1836
        %1878 = vmatprep.subr.bf16.mxu0 0
        %1879 = vmatpush1.bf16.msra.mxu0 %v1835
        %1880 = vmatprep.subr.bf16.mxu0 0
        %1881 = vmatpush1.bf16.msra.mxu0 %v1834
        %1882 = vmatprep.subr.bf16.mxu0 0
        %1883 = vmatpush2.bf16.msra.mxu0 %v1849
        %1884 = vmatprep.subr.bf16.mxu0 0
        %1885 = vmatpush2.bf16.msra.mxu0 %v1848
        %1886 = vmatprep.subr.bf16.mxu0 0
        %1887 = vmatpush2.bf16.msra.mxu0 %v1847
        %1888 = vmatprep.subr.bf16.mxu0 0
        %1889 = vmatpush2.bf16.msra.mxu0 %v1846
        %1890 = vmatprep.subr.bf16.mxu0 0
        %1891 = vmatpush2.bf16.msra.mxu0 %v1845
        %1892 = vmatprep.subr.bf16.mxu0 0
        %1893 = vmatpush2.bf16.msra.mxu0 %v1844
        %1894 = vmatprep.subr.bf16.mxu0 0
        %1895 = vmatpush2.bf16.msra.mxu0 %v1843
        %1896 = vmatprep.subr.bf16.mxu0 0
        %1897 = vmatpush2.bf16.msra.mxu0 %v1842
        %1898 = vmatprep.mubr.bf16.mxu0 %v1766
        %1899 = vmatmul.mubr.bf16.gmra.mxu0 %v1763
        %v1900 = vpop.f32.mrf.mxu0
        %v1901 = vadd.f32 0.0, %v1900
        %v1902 = vpop.f32.mrf.mxu0
        %v1903 = vpop.f32.mrf.mxu0
        %v1904 = vpop.f32.mrf.mxu0
        %1905 = vdwg.mxu0
        %v1938 = vunpack.c.l.b16 %v1697
        %v1939 = vunpack.c.l.b16 %v1698
        %v1940 = vunpack.c.l.b16 %v1699
        %v1941 = vunpack.c.l.b16 %v1700
        %v1942 = vunpack.c.l.b16 %v1701
        %v1943 = vunpack.c.l.b16 %v1702
        %v1944 = vunpack.c.l.b16 %v1703
        %v1945 = vunpack.c.l.b16 %v1704
        %v1946 = vunpack.c.l.b16 %v1705
        %v1947 = vunpack.c.l.b16 %v1706
        %v1948 = vunpack.c.l.b16 %v1707
        %v1949 = vunpack.c.l.b16 %v1708
        %v1950 = vunpack.c.l.b16 %v1709
        %v1951 = vunpack.c.l.b16 %v1710
        %v1952 = vunpack.c.l.b16 %v1711
        %v1953 = vunpack.c.l.b16 %v1712
        %v1954 = vunpack.c.l.b16 %v1713
        %v1955 = vunpack.c.l.b16 %v1714
        %v1956 = vunpack.c.l.b16 %v1715
        %v1957 = vunpack.c.l.b16 %v1716
        %v1958 = vunpack.c.l.b16 %v1717
        %v1959 = vunpack.c.l.b16 %v1718
        %v1960 = vunpack.c.l.b16 %v1719
        %v1961 = vunpack.c.l.b16 %v1720
        %v1962 = vunpack.c.l.b16 %v1721
        %v1963 = vunpack.c.l.b16 %v1722
        %v1964 = vunpack.c.l.b16 %v1723
        %v1965 = vunpack.c.l.b16 %v1724
        %v1966 = vunpack.c.l.b16 %v1725
        %v1967 = vunpack.c.l.b16 %v1726
        %v1968 = vunpack.c.l.b16 %v1727
        %v1969 = vunpack.c.l.b16 %v1728
        %v1970 = vpack.c.b16 %v1939, %v1938
        %v1971 = vpack.c.b16 %v1941, %v1940
        %v1972 = vpack.c.b16 %v1943, %v1942
        %v1973 = vpack.c.b16 %v1945, %v1944
        %v1974 = vpack.c.b16 %v1947, %v1946
        %v1975 = vpack.c.b16 %v1949, %v1948
        %v1976 = vpack.c.b16 %v1951, %v1950
        %v1977 = vpack.c.b16 %v1953, %v1952
        %v1978 = vpack.c.b16 %v1955, %v1954
        %v1979 = vpack.c.b16 %v1957, %v1956
        %v1980 = vpack.c.b16 %v1959, %v1958
        %v1981 = vpack.c.b16 %v1961, %v1960
        %v1982 = vpack.c.b16 %v1963, %v1962
        %v1983 = vpack.c.b16 %v1965, %v1964
        %v1984 = vpack.c.b16 %v1967, %v1966
        %v1985 = vpack.c.b16 %v1969, %v1968
        %2002 = vmatprep.subr.bf16.mxu0 0
        %2003 = vmatpush1.bf16.msra.mxu0 %v1977
        %2004 = vmatprep.subr.bf16.mxu0 0
        %2005 = vmatpush1.bf16.msra.mxu0 %v1976
        %2006 = vmatprep.subr.bf16.mxu0 0
        %2007 = vmatpush1.bf16.msra.mxu0 %v1975
        %2008 = vmatprep.subr.bf16.mxu0 0
        %2009 = vmatpush1.bf16.msra.mxu0 %v1974
        %2010 = vmatprep.subr.bf16.mxu0 0
        %2011 = vmatpush1.bf16.msra.mxu0 %v1973
        %2012 = vmatprep.subr.bf16.mxu0 0
        %2013 = vmatpush1.bf16.msra.mxu0 %v1972
        %2014 = vmatprep.subr.bf16.mxu0 0
        %2015 = vmatpush1.bf16.msra.mxu0 %v1971
        %2016 = vmatprep.subr.bf16.mxu0 0
        %2017 = vmatpush1.bf16.msra.mxu0 %v1970
        %2018 = vmatprep.subr.bf16.mxu0 0
        %2019 = vmatpush2.bf16.msra.mxu0 %v1985
        %2020 = vmatprep.subr.bf16.mxu0 0
        %2021 = vmatpush2.bf16.msra.mxu0 %v1984
        %2022 = vmatprep.subr.bf16.mxu0 0
        %2023 = vmatpush2.bf16.msra.mxu0 %v1983
        %2024 = vmatprep.subr.bf16.mxu0 0
        %2025 = vmatpush2.bf16.msra.mxu0 %v1982
        %2026 = vmatprep.subr.bf16.mxu0 0
        %2027 = vmatpush2.bf16.msra.mxu0 %v1981
        %2028 = vmatprep.subr.bf16.mxu0 0
        %2029 = vmatpush2.bf16.msra.mxu0 %v1980
        %2030 = vmatprep.subr.bf16.mxu0 0
        %2031 = vmatpush2.bf16.msra.mxu0 %v1979
        %2032 = vmatprep.subr.bf16.mxu0 0
        %2033 = vmatpush2.bf16.msra.mxu0 %v1978
        %2034 = vmatprep.mubr.bf16.mxu0 %v1696
        %2035 = vmatmul.mubr.bf16.gmra.mxu0 %v1695
        %v2036 = vpop.f32.mrf.mxu0
        %v2037 = vadd.f32 %v1901, %v2036
        %v2038 = vpop.f32.mrf.mxu0
        %v2039 = vpop.f32.mrf.mxu0
        %v2040 = vpop.f32.mrf.mxu0
        %2041 = vdwg.mxu0
        %v2042 = vld [vmem:[%s8] sm:$0x1]
        %v2043 = vadd.f32 %v2037, %v2042
        %v2044 = vpack.c.bf16 %v2043, %v2043
        %v2045 = vld [vmem:[%s9] sm:$0xff]
        %v2046 = vld [vmem:[%s9 + $0x8] sm:$0xff]
        %v2047 = vld [vmem:[%s9 + $0x10] sm:$0xff]
        %v2048 = vld [vmem:[%s9 + $0x18] sm:$0xff]
        %v2049 = vld [vmem:[%s9 + $0x20] sm:$0xff]
        %v2050 = vld [vmem:[%s9 + $0x28] sm:$0xff]
        %v2051 = vld [vmem:[%s9 + $0x30] sm:$0xff]
        %v2052 = vld [vmem:[%s9 + $0x38] sm:$0xff]
        %v2053 = vld [vmem:[%s10] sm:$0xf]
        %v2062 = vunpack.c.l.b16 %v2045
        %v2063 = vunpack.c.h.b16 %v2045
        %v2064 = vunpack.c.l.b16 %v2046
        %v2065 = vunpack.c.h.b16 %v2046
        %v2066 = vunpack.c.l.b16 %v2047
        %v2067 = vunpack.c.h.b16 %v2047
        %v2068 = vunpack.c.l.b16 %v2048
        %v2069 = vunpack.c.h.b16 %v2048
        %v2070 = vunpack.c.l.b16 %v2049
        %v2071 = vunpack.c.h.b16 %v2049
        %v2072 = vunpack.c.l.b16 %v2050
        %v2073 = vunpack.c.h.b16 %v2050
        %v2074 = vunpack.c.l.b16 %v2051
        %v2075 = vunpack.c.h.b16 %v2051
        %v2076 = vunpack.c.l.b16 %v2052
        %v2077 = vunpack.c.h.b16 %v2052
        %v2078 = vpack.c.b16 %v2066, %v2062
        %v2079 = vpack.c.b16 %v2067, %v2063
        %v2080 = vpack.c.b16 %v2068, %v2064
        %v2081 = vpack.c.b16 %v2069, %v2065
        %v2082 = vpack.c.b16 %v2074, %v2070
        %v2083 = vpack.c.b16 %v2075, %v2071
        %v2084 = vpack.c.b16 %v2076, %v2072
        %v2085 = vpack.c.b16 %v2077, %v2073
        %v2095 = vlaneseq
        %v2096 = vshrl.u32 %v2095, 7
        %v2097 = vsub.s32 0, %v2096
        %v2098 = vrot.slane %v2053, %v2097
        %v2099 = vlaneseq
        %v2100 = vshrl.u32 %v2099, 7
        %v2101 = vsub.s32 1, %v2100
        %v2102 = vrot.slane %v2053, %v2101
        %v2103 = vlaneseq
        %v2104 = vshrl.u32 %v2103, 7
        %v2105 = vsub.s32 2, %v2104
        %v2106 = vrot.slane %v2053, %v2105
        %v2107 = vlaneseq
        %v2108 = vshrl.u32 %v2107, 7
        %v2109 = vsub.s32 3, %v2108
        %v2110 = vrot.slane %v2053, %v2109
        %vm2115 = vcmask 261120
        %v2117 = vsel %vm2115, %v2044, 0
        %2119 = vmatprep.subr.bf16.mxu0 0
        %2120 = vmatpush1.bf16.msra.mxu0 0
        %2121 = vmatprep.subr.bf16.mxu0 0
        %2122 = vmatpush1.bf16.msra.mxu0 0
        %2123 = vmatprep.subr.bf16.mxu0 0
        %2124 = vmatpush1.bf16.msra.mxu0 0
        %2125 = vmatprep.subr.bf16.mxu0 0
        %2126 = vmatpush1.bf16.msra.mxu0 0
        %2127 = vmatprep.subr.bf16.mxu0 0
        %2128 = vmatpush1.bf16.msra.mxu0 0
        %2129 = vmatprep.subr.bf16.mxu0 0
        %2130 = vmatpush1.bf16.msra.mxu0 0
        %2131 = vmatprep.subr.bf16.mxu0 %v2083
        %2132 = vmatpush1.bf16.msra.mxu0 %v2082
        %2133 = vmatprep.subr.bf16.mxu0 %v2079
        %2134 = vmatpush1.bf16.msra.mxu0 %v2078
        %2135 = vmatprep.subr.bf16.mxu0 0
        %2136 = vmatpush2.bf16.msra.mxu0 0
        %2137 = vmatprep.subr.bf16.mxu0 0
        %2138 = vmatpush2.bf16.msra.mxu0 0
        %2139 = vmatprep.subr.bf16.mxu0 0
        %2140 = vmatpush2.bf16.msra.mxu0 0
        %2141 = vmatprep.subr.bf16.mxu0 0
        %2142 = vmatpush2.bf16.msra.mxu0 0
        %2143 = vmatprep.subr.bf16.mxu0 0
        %2144 = vmatpush2.bf16.msra.mxu0 0
        %2145 = vmatprep.subr.bf16.mxu0 0
        %2146 = vmatpush2.bf16.msra.mxu0 0
        %2147 = vmatprep.subr.bf16.mxu0 0
        %2148 = vmatpush2.bf16.msra.mxu0 0
        %2149 = vmatprep.subr.bf16.mxu0 0
        %2150 = vmatpush2.bf16.msra.mxu0 0
        %2151 = vmatprep.mubr.bf16.mxu0 0
        %2152 = vmatmul.mubr.bf16.gmra.mxu0 %v2117
        %v2153 = vpop.f32.mrf.mxu0
        %v2154 = vadd.f32 %v2098, %v2153
        %v2155 = vpop.f32.mrf.mxu0
        %v2156 = vadd.f32 %v2102, %v2155
        %v2157 = vpop.f32.mrf.mxu0
        %v2158 = vpop.f32.mrf.mxu0
        %2159 = vdwg.mxu0
        %2160 = vmatprep.subr.bf16.mxu0 0
        %2161 = vmatpush1.bf16.msra.mxu0 0
        %2162 = vmatprep.subr.bf16.mxu0 0
        %2163 = vmatpush1.bf16.msra.mxu0 0
        %2164 = vmatprep.subr.bf16.mxu0 0
        %2165 = vmatpush1.bf16.msra.mxu0 0
        %2166 = vmatprep.subr.bf16.mxu0 0
        %2167 = vmatpush1.bf16.msra.mxu0 0
        %2168 = vmatprep.subr.bf16.mxu0 0
        %2169 = vmatpush1.bf16.msra.mxu0 0
        %2170 = vmatprep.subr.bf16.mxu0 0
        %2171 = vmatpush1.bf16.msra.mxu0 0
        %2172 = vmatprep.subr.bf16.mxu0 %v2085
        %2173 = vmatpush1.bf16.msra.mxu0 %v2084
        %2174 = vmatprep.subr.bf16.mxu0 %v2081
        %2175 = vmatpush1.bf16.msra.mxu0 %v2080
        %2176 = vmatprep.subr.bf16.mxu0 0
        %2177 = vmatpush2.bf16.msra.mxu0 0
        %2178 = vmatprep.subr.bf16.mxu0 0
        %2179 = vmatpush2.bf16.msra.mxu0 0
        %2180 = vmatprep.subr.bf16.mxu0 0
        %2181 = vmatpush2.bf16.msra.mxu0 0
        %2182 = vmatprep.subr.bf16.mxu0 0
        %2183 = vmatpush2.bf16.msra.mxu0 0
        %2184 = vmatprep.subr.bf16.mxu0 0
        %2185 = vmatpush2.bf16.msra.mxu0 0
        %2186 = vmatprep.subr.bf16.mxu0 0
        %2187 = vmatpush2.bf16.msra.mxu0 0
        %2188 = vmatprep.subr.bf16.mxu0 0
        %2189 = vmatpush2.bf16.msra.mxu0 0
        %2190 = vmatprep.subr.bf16.mxu0 0
        %2191 = vmatpush2.bf16.msra.mxu0 0
        %2192 = vmatprep.mubr.bf16.mxu0 0
        %2193 = vmatmul.mubr.bf16.gmra.mxu0 %v2117
        %v2194 = vpop.f32.mrf.mxu0
        %v2195 = vadd.f32 %v2106, %v2194
        %v2196 = vpop.f32.mrf.mxu0
        %v2197 = vadd.f32 %v2110, %v2196
        %v2198 = vpop.f32.mrf.mxu0
        %v2199 = vpop.f32.mrf.mxu0
        %2200 = vdwg.mxu0
        %v2203 = vcombine.low %v2154, %v2156
        %v2205 = vunpack.c.l.s4 1966171168
        %v2206 = vunpack.c.0.s8 %v2205
        %v2207 = vlaneseq
        %v2208 = vshrl.u32 %v2207, 7
        %v2209 = vsub.s32 %v2206, %v2208
        %v2210 = vrot.slane %v2203, %v2209
        %v2212 = vunpack.c.l.s4 1966171168
        %v2213 = vunpack.c.0.s8 %v2212
        %v2214 = vlaneseq
        %v2215 = vshrl.u32 %v2214, 7
        %v2216 = vsub.s32 %v2213, %v2215
        %v2217 = vrot.slane %v2210, %v2216
        %v2219 = vlaneseq
        %vm2220 = vcmp.ge.s32.totalorder %v2219, 0
        %vm2221 = vcmp.lt.s32.totalorder %v2219, 256
        %vm2222 = vmand %vm2220, %vm2221
        %2223 = vst.msk [vmem:[#allocation2] ss:$2 sm:$0x3] %vm2222, %v2217
        %v2226 = vcombine.low %v2195, %v2197
        %v2228 = vunpack.c.l.s4 1966171168
        %v2229 = vunpack.c.0.s8 %v2228
        %v2230 = vlaneseq
        %v2231 = vshrl.u32 %v2230, 7
        %v2232 = vsub.s32 %v2229, %v2231
        %v2233 = vrot.slane %v2226, %v2232
        %v2235 = vunpack.c.l.s4 1966171168
        %v2236 = vunpack.c.0.s8 %v2235
        %v2237 = vlaneseq
        %v2238 = vshrl.u32 %v2237, 7
        %v2239 = vsub.s32 %v2236, %v2238
        %v2240 = vrot.slane %v2233, %v2239
        %s2242 = scalar_lea.vmem [#allocation2], 1
        %2243 = vst.msk [vmem:[%s2242] ss:$2 sm:$0x3] %vm2222, %v2240
        %v2244 = vld [vmem:[#allocation2] sm:$0xf]
        %v2247 = vunpack.c.l.s4 1983009808
        %v2248 = vunpack.c.0.s8 %v2247
        %v2249 = vlaneseq
        %v2250 = vshrl.u32 %v2249, 7
        %v2251 = vsub.s32 %v2248, %v2250
        %v2252 = vrot.slane %v2244, %v2251
        %v2253 = vcombine.high %v2252, %v2252
        %v2256 = vpack.c.bf16 %v2252, %v2252
        %v2257 = vpack.c.bf16 %v2253, %v2253
        %v2258 = vld [vmem:[%s11] sm:$0xff]
        %v2259 = vld [vmem:[%s11 + $0x8] sm:$0xff]
        %v2260 = vld [vmem:[%s11 + $0x10] sm:$0xff]
        %v2261 = vld [vmem:[%s11 + $0x18] sm:$0xff]
        %v2262 = vld [vmem:[%s11 + $0x20] sm:$0xff]
        %v2263 = vld [vmem:[%s11 + $0x28] sm:$0xff]
        %v2264 = vld [vmem:[%s11 + $0x30] sm:$0xff]
        %v2265 = vld [vmem:[%s11 + $0x38] sm:$0xff]
        %v2266 = vld [vmem:[%s11 + $0x40] sm:$0xff]
        %v2267 = vld [vmem:[%s11 + $0x48] sm:$0xff]
        %v2268 = vld [vmem:[%s11 + $0x50] sm:$0xff]
        %v2269 = vld [vmem:[%s11 + $0x58] sm:$0xff]
        %v2270 = vld [vmem:[%s11 + $0x60] sm:$0xff]
        %v2271 = vld [vmem:[%s11 + $0x68] sm:$0xff]
        %v2272 = vld [vmem:[%s11 + $0x70] sm:$0xff]
        %v2273 = vld [vmem:[%s11 + $0x78] sm:$0xff]
        %v2274 = vld [vmem:[%s11 + $0x80] sm:$0xff]
        %v2275 = vld [vmem:[%s11 + $0x88] sm:$0xff]
        %v2276 = vld [vmem:[%s11 + $0x90] sm:$0xff]
        %v2277 = vld [vmem:[%s11 + $0x98] sm:$0xff]
        %v2278 = vld [vmem:[%s11 + $0xa0] sm:$0xff]
        %v2279 = vld [vmem:[%s11 + $0xa8] sm:$0xff]
        %v2280 = vld [vmem:[%s11 + $0xb0] sm:$0xff]
        %v2281 = vld [vmem:[%s11 + $0xb8] sm:$0xff]
        %v2282 = vld [vmem:[%s11 + $0xc0] sm:$0xff]
        %v2283 = vld [vmem:[%s11 + $0xc8] sm:$0xff]
        %v2284 = vld [vmem:[%s11 + $0xd0] sm:$0xff]
        %v2285 = vld [vmem:[%s11 + $0xd8] sm:$0xff]
        %v2286 = vld [vmem:[%s11 + $0xe0] sm:$0xff]
        %v2287 = vld [vmem:[%s11 + $0xe8] sm:$0xff]
        %v2288 = vld [vmem:[%s11 + $0xf0] sm:$0xff]
        %v2289 = vld [vmem:[%s11 + $0xf8] sm:$0xff]
        %v2290 = vld [vmem:[%s12] sm:$0x3]
        %v2292 = vlaneseq
        %v2293 = vshrl.u32 %v2292, 7
        %v2294 = vsub.s32 0, %v2293
        %v2295 = vrot.slane %v2290, %v2294
        %v2296 = vlaneseq
        %v2297 = vshrl.u32 %v2296, 7
        %v2298 = vsub.s32 1, %v2297
        %v2299 = vrot.slane %v2290, %v2298
        %v2334 = vunpack.c.l.b16 %v2258
        %v2335 = vunpack.c.h.b16 %v2258
        %v2336 = vunpack.c.l.b16 %v2259
        %v2337 = vunpack.c.h.b16 %v2259
        %v2338 = vunpack.c.l.b16 %v2260
        %v2339 = vunpack.c.h.b16 %v2260
        %v2340 = vunpack.c.l.b16 %v2261
        %v2341 = vunpack.c.h.b16 %v2261
        %v2342 = vunpack.c.l.b16 %v2262
        %v2343 = vunpack.c.h.b16 %v2262
        %v2344 = vunpack.c.l.b16 %v2263
        %v2345 = vunpack.c.h.b16 %v2263
        %v2346 = vunpack.c.l.b16 %v2264
        %v2347 = vunpack.c.h.b16 %v2264
        %v2348 = vunpack.c.l.b16 %v2265
        %v2349 = vunpack.c.h.b16 %v2265
        %v2350 = vunpack.c.l.b16 %v2266
        %v2351 = vunpack.c.h.b16 %v2266
        %v2352 = vunpack.c.l.b16 %v2267
        %v2353 = vunpack.c.h.b16 %v2267
        %v2354 = vunpack.c.l.b16 %v2268
        %v2355 = vunpack.c.h.b16 %v2268
        %v2356 = vunpack.c.l.b16 %v2269
        %v2357 = vunpack.c.h.b16 %v2269
        %v2358 = vunpack.c.l.b16 %v2270
        %v2359 = vunpack.c.h.b16 %v2270
        %v2360 = vunpack.c.l.b16 %v2271
        %v2361 = vunpack.c.h.b16 %v2271
        %v2362 = vunpack.c.l.b16 %v2272
        %v2363 = vunpack.c.h.b16 %v2272
        %v2364 = vunpack.c.l.b16 %v2273
        %v2365 = vunpack.c.h.b16 %v2273
        %v2366 = vunpack.c.l.b16 %v2274
        %v2367 = vunpack.c.h.b16 %v2274
        %v2368 = vunpack.c.l.b16 %v2275
        %v2369 = vunpack.c.h.b16 %v2275
        %v2370 = vunpack.c.l.b16 %v2276
        %v2371 = vunpack.c.h.b16 %v2276
        %v2372 = vunpack.c.l.b16 %v2277
        %v2373 = vunpack.c.h.b16 %v2277
        %v2374 = vunpack.c.l.b16 %v2278
        %v2375 = vunpack.c.h.b16 %v2278
        %v2376 = vunpack.c.l.b16 %v2279
        %v2377 = vunpack.c.h.b16 %v2279
        %v2378 = vunpack.c.l.b16 %v2280
        %v2379 = vunpack.c.h.b16 %v2280
        %v2380 = vunpack.c.l.b16 %v2281
        %v2381 = vunpack.c.h.b16 %v2281
        %v2382 = vunpack.c.l.b16 %v2282
        %v2383 = vunpack.c.h.b16 %v2282
        %v2384 = vunpack.c.l.b16 %v2283
        %v2385 = vunpack.c.h.b16 %v2283
        %v2386 = vunpack.c.l.b16 %v2284
        %v2387 = vunpack.c.h.b16 %v2284
        %v2388 = vunpack.c.l.b16 %v2285
        %v2389 = vunpack.c.h.b16 %v2285
        %v2390 = vunpack.c.l.b16 %v2286
        %v2391 = vunpack.c.h.b16 %v2286
        %v2392 = vunpack.c.l.b16 %v2287
        %v2393 = vunpack.c.h.b16 %v2287
        %v2394 = vunpack.c.l.b16 %v2288
        %v2395 = vunpack.c.h.b16 %v2288
        %v2396 = vunpack.c.l.b16 %v2289
        %v2397 = vunpack.c.h.b16 %v2289
        %v2398 = vpack.c.b16 %v2336, %v2334
        %v2399 = vpack.c.b16 %v2337, %v2335
        %v2400 = vpack.c.b16 %v2340, %v2338
        %v2401 = vpack.c.b16 %v2341, %v2339
        %v2402 = vpack.c.b16 %v2344, %v2342
        %v2403 = vpack.c.b16 %v2345, %v2343
        %v2404 = vpack.c.b16 %v2348, %v2346
        %v2405 = vpack.c.b16 %v2349, %v2347
        %v2406 = vpack.c.b16 %v2352, %v2350
        %v2407 = vpack.c.b16 %v2353, %v2351
        %v2408 = vpack.c.b16 %v2356, %v2354
        %v2409 = vpack.c.b16 %v2357, %v2355
        %v2410 = vpack.c.b16 %v2360, %v2358
        %v2411 = vpack.c.b16 %v2361, %v2359
        %v2412 = vpack.c.b16 %v2364, %v2362
        %v2413 = vpack.c.b16 %v2365, %v2363
        %v2414 = vpack.c.b16 %v2368, %v2366
        %v2415 = vpack.c.b16 %v2369, %v2367
        %v2416 = vpack.c.b16 %v2372, %v2370
        %v2417 = vpack.c.b16 %v2373, %v2371
        %v2418 = vpack.c.b16 %v2376, %v2374
        %v2419 = vpack.c.b16 %v2377, %v2375
        %v2420 = vpack.c.b16 %v2380, %v2378
        %v2421 = vpack.c.b16 %v2381, %v2379
        %v2422 = vpack.c.b16 %v2384, %v2382
        %v2423 = vpack.c.b16 %v2385, %v2383
        %v2424 = vpack.c.b16 %v2388, %v2386
        %v2425 = vpack.c.b16 %v2389, %v2387
        %v2426 = vpack.c.b16 %v2392, %v2390
        %v2427 = vpack.c.b16 %v2393, %v2391
        %v2428 = vpack.c.b16 %v2396, %v2394
        %v2429 = vpack.c.b16 %v2397, %v2395
        %2462 = vmatprep.subr.bf16.mxu0 %v2413
        %2463 = vmatpush1.bf16.msra.mxu0 %v2412
        %2464 = vmatprep.subr.bf16.mxu0 %v2411
        %2465 = vmatpush1.bf16.msra.mxu0 %v2410
        %2466 = vmatprep.subr.bf16.mxu0 %v2409
        %2467 = vmatpush1.bf16.msra.mxu0 %v2408
        %2468 = vmatprep.subr.bf16.mxu0 %v2407
        %2469 = vmatpush1.bf16.msra.mxu0 %v2406
        %2470 = vmatprep.subr.bf16.mxu0 %v2405
        %2471 = vmatpush1.bf16.msra.mxu0 %v2404
        %2472 = vmatprep.subr.bf16.mxu0 %v2403
        %2473 = vmatpush1.bf16.msra.mxu0 %v2402
        %2474 = vmatprep.subr.bf16.mxu0 %v2401
        %2475 = vmatpush1.bf16.msra.mxu0 %v2400
        %2476 = vmatprep.subr.bf16.mxu0 %v2399
        %2477 = vmatpush1.bf16.msra.mxu0 %v2398
        %2478 = vmatprep.subr.bf16.mxu0 %v2429
        %2479 = vmatpush2.bf16.msra.mxu0 %v2428
        %2480 = vmatprep.subr.bf16.mxu0 %v2427
        %2481 = vmatpush2.bf16.msra.mxu0 %v2426
        %2482 = vmatprep.subr.bf16.mxu0 %v2425
        %2483 = vmatpush2.bf16.msra.mxu0 %v2424
        %2484 = vmatprep.subr.bf16.mxu0 %v2423
        %2485 = vmatpush2.bf16.msra.mxu0 %v2422
        %2486 = vmatprep.subr.bf16.mxu0 %v2421
        %2487 = vmatpush2.bf16.msra.mxu0 %v2420
        %2488 = vmatprep.subr.bf16.mxu0 %v2419
        %2489 = vmatpush2.bf16.msra.mxu0 %v2418
        %2490 = vmatprep.subr.bf16.mxu0 %v2417
        %2491 = vmatpush2.bf16.msra.mxu0 %v2416
        %2492 = vmatprep.subr.bf16.mxu0 %v2415
        %2493 = vmatpush2.bf16.msra.mxu0 %v2414
        %2494 = vmatprep.mubr.bf16.mxu0 %v2257
        %2495 = vmatmul.mubr.bf16.gmra.mxu0 %v2256
        %v2496 = vpop.f32.mrf.mxu0
        %v2497 = vadd.f32 %v2295, %v2496
        %v2498 = vpop.f32.mrf.mxu0
        %v2499 = vadd.f32 %v2299, %v2498
        %v2500 = vpop.f32.mrf.mxu0
        %v2501 = vpop.f32.mrf.mxu0
        %2502 = vdwg.mxu0
        %v2503 = vmax.f32 %v2497, 0.0
        %v2504 = vmax.f32 %v2499, 0.0
        %s2505 = scalar_lea.vmem %s11, 256
        %v2506 = vld [vmem:[%s2505] sm:$0xff]
        %v2507 = vld [vmem:[%s2505 + $0x8] sm:$0xff]
        %v2508 = vld [vmem:[%s2505 + $0x10] sm:$0xff]
        %v2509 = vld [vmem:[%s2505 + $0x18] sm:$0xff]
        %v2510 = vld [vmem:[%s2505 + $0x20] sm:$0xff]
        %v2511 = vld [vmem:[%s2505 + $0x28] sm:$0xff]
        %v2512 = vld [vmem:[%s2505 + $0x30] sm:$0xff]
        %v2513 = vld [vmem:[%s2505 + $0x38] sm:$0xff]
        %v2514 = vld [vmem:[%s2505 + $0x40] sm:$0xff]
        %v2515 = vld [vmem:[%s2505 + $0x48] sm:$0xff]
        %v2516 = vld [vmem:[%s2505 + $0x50] sm:$0xff]
        %v2517 = vld [vmem:[%s2505 + $0x58] sm:$0xff]
        %v2518 = vld [vmem:[%s2505 + $0x60] sm:$0xff]
        %v2519 = vld [vmem:[%s2505 + $0x68] sm:$0xff]
        %v2520 = vld [vmem:[%s2505 + $0x70] sm:$0xff]
        %v2521 = vld [vmem:[%s2505 + $0x78] sm:$0xff]
        %v2522 = vld [vmem:[%s2505 + $0x80] sm:$0xff]
        %v2523 = vld [vmem:[%s2505 + $0x88] sm:$0xff]
        %v2524 = vld [vmem:[%s2505 + $0x90] sm:$0xff]
        %v2525 = vld [vmem:[%s2505 + $0x98] sm:$0xff]
        %v2526 = vld [vmem:[%s2505 + $0xa0] sm:$0xff]
        %v2527 = vld [vmem:[%s2505 + $0xa8] sm:$0xff]
        %v2528 = vld [vmem:[%s2505 + $0xb0] sm:$0xff]
        %v2529 = vld [vmem:[%s2505 + $0xb8] sm:$0xff]
        %v2530 = vld [vmem:[%s2505 + $0xc0] sm:$0xff]
        %v2531 = vld [vmem:[%s2505 + $0xc8] sm:$0xff]
        %v2532 = vld [vmem:[%s2505 + $0xd0] sm:$0xff]
        %v2533 = vld [vmem:[%s2505 + $0xd8] sm:$0xff]
        %v2534 = vld [vmem:[%s2505 + $0xe0] sm:$0xff]
        %v2535 = vld [vmem:[%s2505 + $0xe8] sm:$0xff]
        %v2536 = vld [vmem:[%s2505 + $0xf0] sm:$0xff]
        %v2537 = vld [vmem:[%s2505 + $0xf8] sm:$0xff]
        %v2570 = vunpack.c.l.b16 %v2506
        %v2571 = vunpack.c.h.b16 %v2506
        %v2572 = vunpack.c.l.b16 %v2507
        %v2573 = vunpack.c.h.b16 %v2507
        %v2574 = vunpack.c.l.b16 %v2508
        %v2575 = vunpack.c.h.b16 %v2508
        %v2576 = vunpack.c.l.b16 %v2509
        %v2577 = vunpack.c.h.b16 %v2509
        %v2578 = vunpack.c.l.b16 %v2510
        %v2579 = vunpack.c.h.b16 %v2510
        %v2580 = vunpack.c.l.b16 %v2511
        %v2581 = vunpack.c.h.b16 %v2511
        %v2582 = vunpack.c.l.b16 %v2512
        %v2583 = vunpack.c.h.b16 %v2512
        %v2584 = vunpack.c.l.b16 %v2513
        %v2585 = vunpack.c.h.b16 %v2513
        %v2586 = vunpack.c.l.b16 %v2514
        %v2587 = vunpack.c.h.b16 %v2514
        %v2588 = vunpack.c.l.b16 %v2515
        %v2589 = vunpack.c.h.b16 %v2515
        %v2590 = vunpack.c.l.b16 %v2516
        %v2591 = vunpack.c.h.b16 %v2516
        %v2592 = vunpack.c.l.b16 %v2517
        %v2593 = vunpack.c.h.b16 %v2517
        %v2594 = vunpack.c.l.b16 %v2518
        %v2595 = vunpack.c.h.b16 %v2518
        %v2596 = vunpack.c.l.b16 %v2519
        %v2597 = vunpack.c.h.b16 %v2519
        %v2598 = vunpack.c.l.b16 %v2520
        %v2599 = vunpack.c.h.b16 %v2520
        %v2600 = vunpack.c.l.b16 %v2521
        %v2601 = vunpack.c.h.b16 %v2521
        %v2602 = vunpack.c.l.b16 %v2522
        %v2603 = vunpack.c.h.b16 %v2522
        %v2604 = vunpack.c.l.b16 %v2523
        %v2605 = vunpack.c.h.b16 %v2523
        %v2606 = vunpack.c.l.b16 %v2524
        %v2607 = vunpack.c.h.b16 %v2524
        %v2608 = vunpack.c.l.b16 %v2525
        %v2609 = vunpack.c.h.b16 %v2525
        %v2610 = vunpack.c.l.b16 %v2526
        %v2611 = vunpack.c.h.b16 %v2526
        %v2612 = vunpack.c.l.b16 %v2527
        %v2613 = vunpack.c.h.b16 %v2527
        %v2614 = vunpack.c.l.b16 %v2528
        %v2615 = vunpack.c.h.b16 %v2528
        %v2616 = vunpack.c.l.b16 %v2529
        %v2617 = vunpack.c.h.b16 %v2529
        %v2618 = vunpack.c.l.b16 %v2530
        %v2619 = vunpack.c.h.b16 %v2530
        %v2620 = vunpack.c.l.b16 %v2531
        %v2621 = vunpack.c.h.b16 %v2531
        %v2622 = vunpack.c.l.b16 %v2532
        %v2623 = vunpack.c.h.b16 %v2532
        %v2624 = vunpack.c.l.b16 %v2533
        %v2625 = vunpack.c.h.b16 %v2533
        %v2626 = vunpack.c.l.b16 %v2534
        %v2627 = vunpack.c.h.b16 %v2534
        %v2628 = vunpack.c.l.b16 %v2535
        %v2629 = vunpack.c.h.b16 %v2535
        %v2630 = vunpack.c.l.b16 %v2536
        %v2631 = vunpack.c.h.b16 %v2536
        %v2632 = vunpack.c.l.b16 %v2537
        %v2633 = vunpack.c.h.b16 %v2537
        %v2634 = vpack.c.b16 %v2572, %v2570
        %v2635 = vpack.c.b16 %v2573, %v2571
        %v2636 = vpack.c.b16 %v2576, %v2574
        %v2637 = vpack.c.b16 %v2577, %v2575
        %v2638 = vpack.c.b16 %v2580, %v2578
        %v2639 = vpack.c.b16 %v2581, %v2579
        %v2640 = vpack.c.b16 %v2584, %v2582
        %v2641 = vpack.c.b16 %v2585, %v2583
        %v2642 = vpack.c.b16 %v2588, %v2586
        %v2643 = vpack.c.b16 %v2589, %v2587
        %v2644 = vpack.c.b16 %v2592, %v2590
        %v2645 = vpack.c.b16 %v2593, %v2591
        %v2646 = vpack.c.b16 %v2596, %v2594
        %v2647 = vpack.c.b16 %v2597, %v2595
        %v2648 = vpack.c.b16 %v2600, %v2598
        %v2649 = vpack.c.b16 %v2601, %v2599
        %v2650 = vpack.c.b16 %v2604, %v2602
        %v2651 = vpack.c.b16 %v2605, %v2603
        %v2652 = vpack.c.b16 %v2608, %v2606
        %v2653 = vpack.c.b16 %v2609, %v2607
        %v2654 = vpack.c.b16 %v2612, %v2610
        %v2655 = vpack.c.b16 %v2613, %v2611
        %v2656 = vpack.c.b16 %v2616, %v2614
        %v2657 = vpack.c.b16 %v2617, %v2615
        %v2658 = vpack.c.b16 %v2620, %v2618
        %v2659 = vpack.c.b16 %v2621, %v2619
        %v2660 = vpack.c.b16 %v2624, %v2622
        %v2661 = vpack.c.b16 %v2625, %v2623
        %v2662 = vpack.c.b16 %v2628, %v2626
        %v2663 = vpack.c.b16 %v2629, %v2627
        %v2664 = vpack.c.b16 %v2632, %v2630
        %v2665 = vpack.c.b16 %v2633, %v2631
        %2698 = vmatprep.subr.bf16.mxu0 %v2649
        %2699 = vmatpush1.bf16.msra.mxu0 %v2648
        %2700 = vmatprep.subr.bf16.mxu0 %v2647
        %2701 = vmatpush1.bf16.msra.mxu0 %v2646
        %2702 = vmatprep.subr.bf16.mxu0 %v2645
        %2703 = vmatpush1.bf16.msra.mxu0 %v2644
        %2704 = vmatprep.subr.bf16.mxu0 %v2643
        %2705 = vmatpush1.bf16.msra.mxu0 %v2642
        %2706 = vmatprep.subr.bf16.mxu0 %v2641
        %2707 = vmatpush1.bf16.msra.mxu0 %v2640
        %2708 = vmatprep.subr.bf16.mxu0 %v2639
        %2709 = vmatpush1.bf16.msra.mxu0 %v2638
        %2710 = vmatprep.subr.bf16.mxu0 %v2637
        %2711 = vmatpush1.bf16.msra.mxu0 %v2636
        %2712 = vmatprep.subr.bf16.mxu0 %v2635
        %2713 = vmatpush1.bf16.msra.mxu0 %v2634
        %2714 = vmatprep.subr.bf16.mxu0 %v2665
        %2715 = vmatpush2.bf16.msra.mxu0 %v2664
        %2716 = vmatprep.subr.bf16.mxu0 %v2663
        %2717 = vmatpush2.bf16.msra.mxu0 %v2662
        %2718 = vmatprep.subr.bf16.mxu0 %v2661
        %2719 = vmatpush2.bf16.msra.mxu0 %v2660
        %2720 = vmatprep.subr.bf16.mxu0 %v2659
        %2721 = vmatpush2.bf16.msra.mxu0 %v2658
        %2722 = vmatprep.subr.bf16.mxu0 %v2657
        %2723 = vmatpush2.bf16.msra.mxu0 %v2656
        %2724 = vmatprep.subr.bf16.mxu0 %v2655
        %2725 = vmatpush2.bf16.msra.mxu0 %v2654
        %2726 = vmatprep.subr.bf16.mxu0 %v2653
        %2727 = vmatpush2.bf16.msra.mxu0 %v2652
        %2728 = vmatprep.subr.bf16.mxu0 %v2651
        %2729 = vmatpush2.bf16.msra.mxu0 %v2650
        %2730 = vmatprep.mubr.bf16.mxu0 %v2257
        %2731 = vmatmul.mubr.bf16.gmra.mxu0 %v2256
        %v2732 = vpop.f32.mrf.mxu0
        %v2733 = vadd.f32 %v2295, %v2732
        %v2734 = vpop.f32.mrf.mxu0
        %v2735 = vadd.f32 %v2299, %v2734
        %v2736 = vpop.f32.mrf.mxu0
        %v2737 = vpop.f32.mrf.mxu0
        %2738 = vdwg.mxu0
        %v2739 = vmax.f32 %v2733, 0.0
        %v2740 = vmax.f32 %v2735, 0.0
        %v2743 = vcombine.low %v2503, %v2504
        %2745 = vst [vmem:[#allocation3] sm:$0x33] %v2743
        %v2748 = vcombine.low %v2739, %v2740
        %v2749 = vrot.slane %v2748, 6
        %2751 = vst [vmem:[#allocation3] sm:$0xcc] %v2749
        %v2752 = vld [vmem:[#allocation3] sm:$0xff]
        %v2754 = vcombine.high %v2752, %v2752
        %v2756 = vpack.c.bf16 %v2752, %v2752
        %v2757 = vpack.c.bf16 %v2754, %v2754
        %v2758 = vld [vmem:[#allocation5] sm:$0xff]
        %v2759 = vld [vmem:[#allocation5 + $0x8] sm:$0xff]
        %v2760 = vld [vmem:[#allocation5 + $0x10] sm:$0xff]
        %v2761 = vld [vmem:[#allocation5 + $0x18] sm:$0xff]
        %v2762 = vld [vmem:[#allocation5 + $0x20] sm:$0xff]
        %v2763 = vld [vmem:[#allocation5 + $0x28] sm:$0xff]
        %v2764 = vld [vmem:[#allocation5 + $0x30] sm:$0xff]
        %v2765 = vld [vmem:[#allocation5 + $0x38] sm:$0xff]
        %v2766 = vld [vmem:[#allocation5 + $0x40] sm:$0xff]
        %v2767 = vld [vmem:[#allocation5 + $0x48] sm:$0xff]
        %v2768 = vld [vmem:[#allocation5 + $0x50] sm:$0xff]
        %v2769 = vld [vmem:[#allocation5 + $0x58] sm:$0xff]
        %v2770 = vld [vmem:[#allocation5 + $0x60] sm:$0xff]
        %v2771 = vld [vmem:[#allocation5 + $0x68] sm:$0xff]
        %v2772 = vld [vmem:[#allocation5 + $0x70] sm:$0xff]
        %v2773 = vld [vmem:[#allocation5 + $0x78] sm:$0xff]
        %v2774 = vld [vmem:[#allocation5 + $0x80] sm:$0xff]
        %v2775 = vld [vmem:[#allocation5 + $0x88] sm:$0xff]
        %v2776 = vld [vmem:[#allocation5 + $0x90] sm:$0xff]
        %v2777 = vld [vmem:[#allocation5 + $0x98] sm:$0xff]
        %v2778 = vld [vmem:[#allocation5 + $0xa0] sm:$0xff]
        %v2779 = vld [vmem:[#allocation5 + $0xa8] sm:$0xff]
        %v2780 = vld [vmem:[#allocation5 + $0xb0] sm:$0xff]
        %v2781 = vld [vmem:[#allocation5 + $0xb8] sm:$0xff]
        %v2782 = vld [vmem:[#allocation5 + $0xc0] sm:$0xff]
        %v2783 = vld [vmem:[#allocation5 + $0xc8] sm:$0xff]
        %v2784 = vld [vmem:[#allocation5 + $0xd0] sm:$0xff]
        %v2785 = vld [vmem:[#allocation5 + $0xd8] sm:$0xff]
        %v2786 = vld [vmem:[#allocation5 + $0xe0] sm:$0xff]
        %v2787 = vld [vmem:[#allocation5 + $0xe8] sm:$0xff]
        %v2788 = vld [vmem:[#allocation5 + $0xf0] sm:$0xff]
        %v2789 = vld [vmem:[#allocation5 + $0xf8] sm:$0xff]
        %v2790 = vld [vmem:[%s14] sm:$0x3]
        %v2792 = vlaneseq
        %v2793 = vshrl.u32 %v2792, 7
        %v2794 = vsub.s32 0, %v2793
        %v2795 = vrot.slane %v2790, %v2794
        %v2796 = vlaneseq
        %v2797 = vshrl.u32 %v2796, 7
        %v2798 = vsub.s32 1, %v2797
        %v2799 = vrot.slane %v2790, %v2798
        %v2834 = vunpack.c.l.b16 %v2758
        %v2835 = vunpack.c.h.b16 %v2758
        %v2836 = vunpack.c.l.b16 %v2759
        %v2837 = vunpack.c.h.b16 %v2759
        %v2838 = vunpack.c.l.b16 %v2760
        %v2839 = vunpack.c.h.b16 %v2760
        %v2840 = vunpack.c.l.b16 %v2761
        %v2841 = vunpack.c.h.b16 %v2761
        %v2842 = vunpack.c.l.b16 %v2762
        %v2843 = vunpack.c.h.b16 %v2762
        %v2844 = vunpack.c.l.b16 %v2763
        %v2845 = vunpack.c.h.b16 %v2763
        %v2846 = vunpack.c.l.b16 %v2764
        %v2847 = vunpack.c.h.b16 %v2764
        %v2848 = vunpack.c.l.b16 %v2765
        %v2849 = vunpack.c.h.b16 %v2765
        %v2850 = vunpack.c.l.b16 %v2766
        %v2851 = vunpack.c.h.b16 %v2766
        %v2852 = vunpack.c.l.b16 %v2767
        %v2853 = vunpack.c.h.b16 %v2767
        %v2854 = vunpack.c.l.b16 %v2768
        %v2855 = vunpack.c.h.b16 %v2768
        %v2856 = vunpack.c.l.b16 %v2769
        %v2857 = vunpack.c.h.b16 %v2769
        %v2858 = vunpack.c.l.b16 %v2770
        %v2859 = vunpack.c.h.b16 %v2770
        %v2860 = vunpack.c.l.b16 %v2771
        %v2861 = vunpack.c.h.b16 %v2771
        %v2862 = vunpack.c.l.b16 %v2772
        %v2863 = vunpack.c.h.b16 %v2772
        %v2864 = vunpack.c.l.b16 %v2773
        %v2865 = vunpack.c.h.b16 %v2773
        %v2866 = vunpack.c.l.b16 %v2774
        %v2867 = vunpack.c.h.b16 %v2774
        %v2868 = vunpack.c.l.b16 %v2775
        %v2869 = vunpack.c.h.b16 %v2775
        %v2870 = vunpack.c.l.b16 %v2776
        %v2871 = vunpack.c.h.b16 %v2776
        %v2872 = vunpack.c.l.b16 %v2777
        %v2873 = vunpack.c.h.b16 %v2777
        %v2874 = vunpack.c.l.b16 %v2778
        %v2875 = vunpack.c.h.b16 %v2778
        %v2876 = vunpack.c.l.b16 %v2779
        %v2877 = vunpack.c.h.b16 %v2779
        %v2878 = vunpack.c.l.b16 %v2780
        %v2879 = vunpack.c.h.b16 %v2780
        %v2880 = vunpack.c.l.b16 %v2781
        %v2881 = vunpack.c.h.b16 %v2781
        %v2882 = vunpack.c.l.b16 %v2782
        %v2883 = vunpack.c.h.b16 %v2782
        %v2884 = vunpack.c.l.b16 %v2783
        %v2885 = vunpack.c.h.b16 %v2783
        %v2886 = vunpack.c.l.b16 %v2784
        %v2887 = vunpack.c.h.b16 %v2784
        %v2888 = vunpack.c.l.b16 %v2785
        %v2889 = vunpack.c.h.b16 %v2785
        %v2890 = vunpack.c.l.b16 %v2786
        %v2891 = vunpack.c.h.b16 %v2786
        %v2892 = vunpack.c.l.b16 %v2787
        %v2893 = vunpack.c.h.b16 %v2787
        %v2894 = vunpack.c.l.b16 %v2788
        %v2895 = vunpack.c.h.b16 %v2788
        %v2896 = vunpack.c.l.b16 %v2789
        %v2897 = vunpack.c.h.b16 %v2789
        %v2898 = vpack.c.b16 %v2836, %v2834
        %v2899 = vpack.c.b16 %v2837, %v2835
        %v2900 = vpack.c.b16 %v2840, %v2838
        %v2901 = vpack.c.b16 %v2841, %v2839
        %v2902 = vpack.c.b16 %v2844, %v2842
        %v2903 = vpack.c.b16 %v2845, %v2843
        %v2904 = vpack.c.b16 %v2848, %v2846
        %v2905 = vpack.c.b16 %v2849, %v2847
        %v2906 = vpack.c.b16 %v2852, %v2850
        %v2907 = vpack.c.b16 %v2853, %v2851
        %v2908 = vpack.c.b16 %v2856, %v2854
        %v2909 = vpack.c.b16 %v2857, %v2855
        %v2910 = vpack.c.b16 %v2860, %v2858
        %v2911 = vpack.c.b16 %v2861, %v2859
        %v2912 = vpack.c.b16 %v2864, %v2862
        %v2913 = vpack.c.b16 %v2865, %v2863
        %v2914 = vpack.c.b16 %v2868, %v2866
        %v2915 = vpack.c.b16 %v2869, %v2867
        %v2916 = vpack.c.b16 %v2872, %v2870
        %v2917 = vpack.c.b16 %v2873, %v2871
        %v2918 = vpack.c.b16 %v2876, %v2874
        %v2919 = vpack.c.b16 %v2877, %v2875
        %v2920 = vpack.c.b16 %v2880, %v2878
        %v2921 = vpack.c.b16 %v2881, %v2879
        %v2922 = vpack.c.b16 %v2884, %v2882
        %v2923 = vpack.c.b16 %v2885, %v2883
        %v2924 = vpack.c.b16 %v2888, %v2886
        %v2925 = vpack.c.b16 %v2889, %v2887
        %v2926 = vpack.c.b16 %v2892, %v2890
        %v2927 = vpack.c.b16 %v2893, %v2891
        %v2928 = vpack.c.b16 %v2896, %v2894
        %v2929 = vpack.c.b16 %v2897, %v2895
        %2962 = vmatprep.subr.bf16.mxu0 %v2913
        %2963 = vmatpush1.bf16.msra.mxu0 %v2912
        %2964 = vmatprep.subr.bf16.mxu0 %v2911
        %2965 = vmatpush1.bf16.msra.mxu0 %v2910
        %2966 = vmatprep.subr.bf16.mxu0 %v2909
        %2967 = vmatpush1.bf16.msra.mxu0 %v2908
        %2968 = vmatprep.subr.bf16.mxu0 %v2907
        %2969 = vmatpush1.bf16.msra.mxu0 %v2906
        %2970 = vmatprep.subr.bf16.mxu0 %v2905
        %2971 = vmatpush1.bf16.msra.mxu0 %v2904
        %2972 = vmatprep.subr.bf16.mxu0 %v2903
        %2973 = vmatpush1.bf16.msra.mxu0 %v2902
        %2974 = vmatprep.subr.bf16.mxu0 %v2901
        %2975 = vmatpush1.bf16.msra.mxu0 %v2900
        %2976 = vmatprep.subr.bf16.mxu0 %v2899
        %2977 = vmatpush1.bf16.msra.mxu0 %v2898
        %2978 = vmatprep.subr.bf16.mxu0 %v2929
        %2979 = vmatpush2.bf16.msra.mxu0 %v2928
        %2980 = vmatprep.subr.bf16.mxu0 %v2927
        %2981 = vmatpush2.bf16.msra.mxu0 %v2926
        %2982 = vmatprep.subr.bf16.mxu0 %v2925
        %2983 = vmatpush2.bf16.msra.mxu0 %v2924
        %2984 = vmatprep.subr.bf16.mxu0 %v2923
        %2985 = vmatpush2.bf16.msra.mxu0 %v2922
        %2986 = vmatprep.subr.bf16.mxu0 %v2921
        %2987 = vmatpush2.bf16.msra.mxu0 %v2920
        %2988 = vmatprep.subr.bf16.mxu0 %v2919
        %2989 = vmatpush2.bf16.msra.mxu0 %v2918
        %2990 = vmatprep.subr.bf16.mxu0 %v2917
        %2991 = vmatpush2.bf16.msra.mxu0 %v2916
        %2992 = vmatprep.subr.bf16.mxu0 %v2915
        %2993 = vmatpush2.bf16.msra.mxu0 %v2914
        %2994 = vmatprep.mubr.bf16.mxu0 %v2757
        %2995 = vmatmul.mubr.bf16.gmra.mxu0 %v2756
        %v2996 = vpop.f32.mrf.mxu0
        %v2997 = vadd.f32 %v2795, %v2996
        %v2998 = vpop.f32.mrf.mxu0
        %v2999 = vadd.f32 %v2799, %v2998
        %v3000 = vpop.f32.mrf.mxu0
        %v3001 = vpop.f32.mrf.mxu0
        %3002 = vdwg.mxu0
        %v3003 = vmax.f32 %v2997, 0.0
        %v3004 = vmax.f32 %v2999, 0.0
        %s3005 = scalar_lea.vmem [#allocation5], 256
        %v3006 = vld [vmem:[%s3005] sm:$0xff]
        %v3007 = vld [vmem:[%s3005 + $0x8] sm:$0xff]
        %v3008 = vld [vmem:[%s3005 + $0x10] sm:$0xff]
        %v3009 = vld [vmem:[%s3005 + $0x18] sm:$0xff]
        %v3010 = vld [vmem:[%s3005 + $0x20] sm:$0xff]
        %v3011 = vld [vmem:[%s3005 + $0x28] sm:$0xff]
        %v3012 = vld [vmem:[%s3005 + $0x30] sm:$0xff]
        %v3013 = vld [vmem:[%s3005 + $0x38] sm:$0xff]
        %v3014 = vld [vmem:[%s3005 + $0x40] sm:$0xff]
        %v3015 = vld [vmem:[%s3005 + $0x48] sm:$0xff]
        %v3016 = vld [vmem:[%s3005 + $0x50] sm:$0xff]
        %v3017 = vld [vmem:[%s3005 + $0x58] sm:$0xff]
        %v3018 = vld [vmem:[%s3005 + $0x60] sm:$0xff]
        %v3019 = vld [vmem:[%s3005 + $0x68] sm:$0xff]
        %v3020 = vld [vmem:[%s3005 + $0x70] sm:$0xff]
        %v3021 = vld [vmem:[%s3005 + $0x78] sm:$0xff]
        %v3022 = vld [vmem:[%s3005 + $0x80] sm:$0xff]
        %v3023 = vld [vmem:[%s3005 + $0x88] sm:$0xff]
        %v3024 = vld [vmem:[%s3005 + $0x90] sm:$0xff]
        %v3025 = vld [vmem:[%s3005 + $0x98] sm:$0xff]
        %v3026 = vld [vmem:[%s3005 + $0xa0] sm:$0xff]
        %v3027 = vld [vmem:[%s3005 + $0xa8] sm:$0xff]
        %v3028 = vld [vmem:[%s3005 + $0xb0] sm:$0xff]
        %v3029 = vld [vmem:[%s3005 + $0xb8] sm:$0xff]
        %v3030 = vld [vmem:[%s3005 + $0xc0] sm:$0xff]
        %v3031 = vld [vmem:[%s3005 + $0xc8] sm:$0xff]
        %v3032 = vld [vmem:[%s3005 + $0xd0] sm:$0xff]
        %v3033 = vld [vmem:[%s3005 + $0xd8] sm:$0xff]
        %v3034 = vld [vmem:[%s3005 + $0xe0] sm:$0xff]
        %v3035 = vld [vmem:[%s3005 + $0xe8] sm:$0xff]
        %v3036 = vld [vmem:[%s3005 + $0xf0] sm:$0xff]
        %v3037 = vld [vmem:[%s3005 + $0xf8] sm:$0xff]
        %v3070 = vunpack.c.l.b16 %v3006
        %v3071 = vunpack.c.h.b16 %v3006
        %v3072 = vunpack.c.l.b16 %v3007
        %v3073 = vunpack.c.h.b16 %v3007
        %v3074 = vunpack.c.l.b16 %v3008
        %v3075 = vunpack.c.h.b16 %v3008
        %v3076 = vunpack.c.l.b16 %v3009
        %v3077 = vunpack.c.h.b16 %v3009
        %v3078 = vunpack.c.l.b16 %v3010
        %v3079 = vunpack.c.h.b16 %v3010
        %v3080 = vunpack.c.l.b16 %v3011
        %v3081 = vunpack.c.h.b16 %v3011
        %v3082 = vunpack.c.l.b16 %v3012
        %v3083 = vunpack.c.h.b16 %v3012
        %v3084 = vunpack.c.l.b16 %v3013
        %v3085 = vunpack.c.h.b16 %v3013
        %v3086 = vunpack.c.l.b16 %v3014
        %v3087 = vunpack.c.h.b16 %v3014
        %v3088 = vunpack.c.l.b16 %v3015
        %v3089 = vunpack.c.h.b16 %v3015
        %v3090 = vunpack.c.l.b16 %v3016
        %v3091 = vunpack.c.h.b16 %v3016
        %v3092 = vunpack.c.l.b16 %v3017
        %v3093 = vunpack.c.h.b16 %v3017
        %v3094 = vunpack.c.l.b16 %v3018
        %v3095 = vunpack.c.h.b16 %v3018
        %v3096 = vunpack.c.l.b16 %v3019
        %v3097 = vunpack.c.h.b16 %v3019
        %v3098 = vunpack.c.l.b16 %v3020
        %v3099 = vunpack.c.h.b16 %v3020
        %v3100 = vunpack.c.l.b16 %v3021
        %v3101 = vunpack.c.h.b16 %v3021
        %v3102 = vunpack.c.l.b16 %v3022
        %v3103 = vunpack.c.h.b16 %v3022
        %v3104 = vunpack.c.l.b16 %v3023
        %v3105 = vunpack.c.h.b16 %v3023
        %v3106 = vunpack.c.l.b16 %v3024
        %v3107 = vunpack.c.h.b16 %v3024
        %v3108 = vunpack.c.l.b16 %v3025
        %v3109 = vunpack.c.h.b16 %v3025
        %v3110 = vunpack.c.l.b16 %v3026
        %v3111 = vunpack.c.h.b16 %v3026
        %v3112 = vunpack.c.l.b16 %v3027
        %v3113 = vunpack.c.h.b16 %v3027
        %v3114 = vunpack.c.l.b16 %v3028
        %v3115 = vunpack.c.h.b16 %v3028
        %v3116 = vunpack.c.l.b16 %v3029
        %v3117 = vunpack.c.h.b16 %v3029
        %v3118 = vunpack.c.l.b16 %v3030
        %v3119 = vunpack.c.h.b16 %v3030
        %v3120 = vunpack.c.l.b16 %v3031
        %v3121 = vunpack.c.h.b16 %v3031
        %v3122 = vunpack.c.l.b16 %v3032
        %v3123 = vunpack.c.h.b16 %v3032
        %v3124 = vunpack.c.l.b16 %v3033
        %v3125 = vunpack.c.h.b16 %v3033
        %v3126 = vunpack.c.l.b16 %v3034
        %v3127 = vunpack.c.h.b16 %v3034
        %v3128 = vunpack.c.l.b16 %v3035
        %v3129 = vunpack.c.h.b16 %v3035
        %v3130 = vunpack.c.l.b16 %v3036
        %v3131 = vunpack.c.h.b16 %v3036
        %v3132 = vunpack.c.l.b16 %v3037
        %v3133 = vunpack.c.h.b16 %v3037
        %v3134 = vpack.c.b16 %v3072, %v3070
        %v3135 = vpack.c.b16 %v3073, %v3071
        %v3136 = vpack.c.b16 %v3076, %v3074
        %v3137 = vpack.c.b16 %v3077, %v3075
        %v3138 = vpack.c.b16 %v3080, %v3078
        %v3139 = vpack.c.b16 %v3081, %v3079
        %v3140 = vpack.c.b16 %v3084, %v3082
        %v3141 = vpack.c.b16 %v3085, %v3083
        %v3142 = vpack.c.b16 %v3088, %v3086
        %v3143 = vpack.c.b16 %v3089, %v3087
        %v3144 = vpack.c.b16 %v3092, %v3090
        %v3145 = vpack.c.b16 %v3093, %v3091
        %v3146 = vpack.c.b16 %v3096, %v3094
        %v3147 = vpack.c.b16 %v3097, %v3095
        %v3148 = vpack.c.b16 %v3100, %v3098
        %v3149 = vpack.c.b16 %v3101, %v3099
        %v3150 = vpack.c.b16 %v3104, %v3102
        %v3151 = vpack.c.b16 %v3105, %v3103
        %v3152 = vpack.c.b16 %v3108, %v3106
        %v3153 = vpack.c.b16 %v3109, %v3107
        %v3154 = vpack.c.b16 %v3112, %v3110
        %v3155 = vpack.c.b16 %v3113, %v3111
        %v3156 = vpack.c.b16 %v3116, %v3114
        %v3157 = vpack.c.b16 %v3117, %v3115
        %v3158 = vpack.c.b16 %v3120, %v3118
        %v3159 = vpack.c.b16 %v3121, %v3119
        %v3160 = vpack.c.b16 %v3124, %v3122
        %v3161 = vpack.c.b16 %v3125, %v3123
        %v3162 = vpack.c.b16 %v3128, %v3126
        %v3163 = vpack.c.b16 %v3129, %v3127
        %v3164 = vpack.c.b16 %v3132, %v3130
        %v3165 = vpack.c.b16 %v3133, %v3131
        %3198 = vmatprep.subr.bf16.mxu0 %v3149
        %3199 = vmatpush1.bf16.msra.mxu0 %v3148
        %3200 = vmatprep.subr.bf16.mxu0 %v3147
        %3201 = vmatpush1.bf16.msra.mxu0 %v3146
        %3202 = vmatprep.subr.bf16.mxu0 %v3145
        %3203 = vmatpush1.bf16.msra.mxu0 %v3144
        %3204 = vmatprep.subr.bf16.mxu0 %v3143
        %3205 = vmatpush1.bf16.msra.mxu0 %v3142
        %3206 = vmatprep.subr.bf16.mxu0 %v3141
        %3207 = vmatpush1.bf16.msra.mxu0 %v3140
        %3208 = vmatprep.subr.bf16.mxu0 %v3139
        %3209 = vmatpush1.bf16.msra.mxu0 %v3138
        %3210 = vmatprep.subr.bf16.mxu0 %v3137
        %3211 = vmatpush1.bf16.msra.mxu0 %v3136
        %3212 = vmatprep.subr.bf16.mxu0 %v3135
        %3213 = vmatpush1.bf16.msra.mxu0 %v3134
        %3214 = vmatprep.subr.bf16.mxu0 %v3165
        %3215 = vmatpush2.bf16.msra.mxu0 %v3164
        %3216 = vmatprep.subr.bf16.mxu0 %v3163
        %3217 = vmatpush2.bf16.msra.mxu0 %v3162
        %3218 = vmatprep.subr.bf16.mxu0 %v3161
        %3219 = vmatpush2.bf16.msra.mxu0 %v3160
        %3220 = vmatprep.subr.bf16.mxu0 %v3159
        %3221 = vmatpush2.bf16.msra.mxu0 %v3158
        %3222 = vmatprep.subr.bf16.mxu0 %v3157
        %3223 = vmatpush2.bf16.msra.mxu0 %v3156
        %3224 = vmatprep.subr.bf16.mxu0 %v3155
        %3225 = vmatpush2.bf16.msra.mxu0 %v3154
        %3226 = vmatprep.subr.bf16.mxu0 %v3153
        %3227 = vmatpush2.bf16.msra.mxu0 %v3152
        %3228 = vmatprep.subr.bf16.mxu0 %v3151
        %3229 = vmatpush2.bf16.msra.mxu0 %v3150
        %3230 = vmatprep.mubr.bf16.mxu0 %v2757
        %3231 = vmatmul.mubr.bf16.gmra.mxu0 %v2756
        %v3232 = vpop.f32.mrf.mxu0
        %v3233 = vadd.f32 %v2795, %v3232
        %v3234 = vpop.f32.mrf.mxu0
        %v3235 = vadd.f32 %v2799, %v3234
        %v3236 = vpop.f32.mrf.mxu0
        %v3237 = vpop.f32.mrf.mxu0
        %3238 = vdwg.mxu0
        %v3239 = vmax.f32 %v3233, 0.0
        %v3240 = vmax.f32 %v3235, 0.0
        %3241 = vst [vmem:[#allocation4] sm:$0xf] %v3003
        %3242 = vst [vmem:[#allocation4 + $0x8] sm:$0xf] %v3004
        %v3245 = vrot.slane %v3239, 4
        %v3246 = vrot.slane %v3240, 4
        %3249 = vst [vmem:[#allocation4] sm:$0xf0] %v3245
        %3250 = vst [vmem:[#allocation4 + $0x8] sm:$0xf0] %v3246
        %v3251 = vld [vmem:[#allocation4] sm:$0xff]
        %v3252 = vld [vmem:[#allocation4 + $0x8] sm:$0xff]
        %v3253 = vpack.c.bf16 %v3251, %v3251
        %v3254 = vpack.c.bf16 %v3252, %v3252
        %v3255 = vld [vmem:[%s15] sm:$0xf]
        %v3256 = vld [vmem:[%s15 + $0x4] sm:$0xf]
        %v3257 = vld [vmem:[%s15 + $0x8] sm:$0xf]
        %v3258 = vld [vmem:[%s15 + $0xc] sm:$0xf]
        %v3259 = vld [vmem:[%s15 + $0x10] sm:$0xf]
        %v3260 = vld [vmem:[%s15 + $0x14] sm:$0xf]
        %v3261 = vld [vmem:[%s15 + $0x18] sm:$0xf]
        %v3262 = vld [vmem:[%s15 + $0x1c] sm:$0xf]
        %v3263 = vld [vmem:[%s15 + $0x20] sm:$0xf]
        %v3264 = vld [vmem:[%s15 + $0x24] sm:$0xf]
        %v3265 = vld [vmem:[%s15 + $0x28] sm:$0xf]
        %v3266 = vld [vmem:[%s15 + $0x2c] sm:$0xf]
        %v3267 = vld [vmem:[%s15 + $0x30] sm:$0xf]
        %v3268 = vld [vmem:[%s15 + $0x34] sm:$0xf]
        %v3269 = vld [vmem:[%s15 + $0x38] sm:$0xf]
        %v3270 = vld [vmem:[%s15 + $0x3c] sm:$0xf]
        %v3271 = vld [vmem:[%s15 + $0x40] sm:$0xf]
        %v3272 = vld [vmem:[%s15 + $0x44] sm:$0xf]
        %v3273 = vld [vmem:[%s15 + $0x48] sm:$0xf]
        %v3274 = vld [vmem:[%s15 + $0x4c] sm:$0xf]
        %v3275 = vld [vmem:[%s15 + $0x50] sm:$0xf]
        %v3276 = vld [vmem:[%s15 + $0x54] sm:$0xf]
        %v3277 = vld [vmem:[%s15 + $0x58] sm:$0xf]
        %v3278 = vld [vmem:[%s15 + $0x5c] sm:$0xf]
        %v3279 = vld [vmem:[%s15 + $0x60] sm:$0xf]
        %v3280 = vld [vmem:[%s15 + $0x64] sm:$0xf]
        %v3281 = vld [vmem:[%s15 + $0x68] sm:$0xf]
        %v3282 = vld [vmem:[%s15 + $0x6c] sm:$0xf]
        %v3283 = vld [vmem:[%s15 + $0x70] sm:$0xf]
        %v3284 = vld [vmem:[%s15 + $0x74] sm:$0xf]
        %v3285 = vld [vmem:[%s15 + $0x78] sm:$0xf]
        %v3286 = vld [vmem:[%s15 + $0x7c] sm:$0xf]
        %v3287 = vld [vmem:[%s16] sm:$0x1]
        %v3289 = vlaneseq
        %v3290 = vshrl.u32 %v3289, 7
        %v3291 = vsub.s32 0, %v3290
        %v3292 = vrot.slane %v3287, %v3291
        %v3326 = vunpack.c.l.b16 %v3255
        %v3327 = vunpack.c.l.b16 %v3256
        %v3328 = vunpack.c.l.b16 %v3257
        %v3329 = vunpack.c.l.b16 %v3258
        %v3330 = vunpack.c.l.b16 %v3259
        %v3331 = vunpack.c.l.b16 %v3260
        %v3332 = vunpack.c.l.b16 %v3261
        %v3333 = vunpack.c.l.b16 %v3262
        %v3334 = vunpack.c.l.b16 %v3263
        %v3335 = vunpack.c.l.b16 %v3264
        %v3336 = vunpack.c.l.b16 %v3265
        %v3337 = vunpack.c.l.b16 %v3266
        %v3338 = vunpack.c.l.b16 %v3267
        %v3339 = vunpack.c.l.b16 %v3268
        %v3340 = vunpack.c.l.b16 %v3269
        %v3341 = vunpack.c.l.b16 %v3270
        %v3342 = vunpack.c.l.b16 %v3271
        %v3343 = vunpack.c.l.b16 %v3272
        %v3344 = vunpack.c.l.b16 %v3273
        %v3345 = vunpack.c.l.b16 %v3274
        %v3346 = vunpack.c.l.b16 %v3275
        %v3347 = vunpack.c.l.b16 %v3276
        %v3348 = vunpack.c.l.b16 %v3277
        %v3349 = vunpack.c.l.b16 %v3278
        %v3350 = vunpack.c.l.b16 %v3279
        %v3351 = vunpack.c.l.b16 %v3280
        %v3352 = vunpack.c.l.b16 %v3281
        %v3353 = vunpack.c.l.b16 %v3282
        %v3354 = vunpack.c.l.b16 %v3283
        %v3355 = vunpack.c.l.b16 %v3284
        %v3356 = vunpack.c.l.b16 %v3285
        %v3357 = vunpack.c.l.b16 %v3286
        %v3358 = vpack.c.b16 %v3327, %v3326
        %v3359 = vpack.c.b16 %v3329, %v3328
        %v3360 = vpack.c.b16 %v3331, %v3330
        %v3361 = vpack.c.b16 %v3333, %v3332
        %v3362 = vpack.c.b16 %v3335, %v3334
        %v3363 = vpack.c.b16 %v3337, %v3336
        %v3364 = vpack.c.b16 %v3339, %v3338
        %v3365 = vpack.c.b16 %v3341, %v3340
        %v3366 = vpack.c.b16 %v3343, %v3342
        %v3367 = vpack.c.b16 %v3345, %v3344
        %v3368 = vpack.c.b16 %v3347, %v3346
        %v3369 = vpack.c.b16 %v3349, %v3348
        %v3370 = vpack.c.b16 %v3351, %v3350
        %v3371 = vpack.c.b16 %v3353, %v3352
        %v3372 = vpack.c.b16 %v3355, %v3354
        %v3373 = vpack.c.b16 %v3357, %v3356
        %3390 = vmatprep.subr.bf16.mxu0 0
        %3391 = vmatpush1.bf16.msra.mxu0 %v3365
        %3392 = vmatprep.subr.bf16.mxu0 0
        %3393 = vmatpush1.bf16.msra.mxu0 %v3364
        %3394 = vmatprep.subr.bf16.mxu0 0
        %3395 = vmatpush1.bf16.msra.mxu0 %v3363
        %3396 = vmatprep.subr.bf16.mxu0 0
        %3397 = vmatpush1.bf16.msra.mxu0 %v3362
        %3398 = vmatprep.subr.bf16.mxu0 0
        %3399 = vmatpush1.bf16.msra.mxu0 %v3361
        %3400 = vmatprep.subr.bf16.mxu0 0
        %3401 = vmatpush1.bf16.msra.mxu0 %v3360
        %3402 = vmatprep.subr.bf16.mxu0 0
        %3403 = vmatpush1.bf16.msra.mxu0 %v3359
        %3404 = vmatprep.subr.bf16.mxu0 0
        %3405 = vmatpush1.bf16.msra.mxu0 %v3358
        %3406 = vmatprep.subr.bf16.mxu0 0
        %3407 = vmatpush2.bf16.msra.mxu0 %v3373
        %3408 = vmatprep.subr.bf16.mxu0 0
        %3409 = vmatpush2.bf16.msra.mxu0 %v3372
        %3410 = vmatprep.subr.bf16.mxu0 0
        %3411 = vmatpush2.bf16.msra.mxu0 %v3371
        %3412 = vmatprep.subr.bf16.mxu0 0
        %3413 = vmatpush2.bf16.msra.mxu0 %v3370
        %3414 = vmatprep.subr.bf16.mxu0 0
        %3415 = vmatpush2.bf16.msra.mxu0 %v3369
        %3416 = vmatprep.subr.bf16.mxu0 0
        %3417 = vmatpush2.bf16.msra.mxu0 %v3368
        %3418 = vmatprep.subr.bf16.mxu0 0
        %3419 = vmatpush2.bf16.msra.mxu0 %v3367
        %3420 = vmatprep.subr.bf16.mxu0 0
        %3421 = vmatpush2.bf16.msra.mxu0 %v3366
        %3422 = vmatprep.mubr.bf16.mxu0 %v3254
        %3423 = vmatmul.mubr.bf16.gmra.mxu0 %v3253
        %v3424 = vpop.f32.mrf.mxu0
        %v3425 = vadd.f32 %v3292, %v3424
        %v3426 = vpop.f32.mrf.mxu0
        %v3427 = vpop.f32.mrf.mxu0
        %v3428 = vpop.f32.mrf.mxu0
        %3429 = vdwg.mxu0
        %v3430 = vtanh.pop %v3425
        %s3431 = scalar_lea.vmem %s15, 128
        %v3432 = vld [vmem:[%s3431] sm:$0xf]
        %v3433 = vld [vmem:[%s3431 + $0x4] sm:$0xf]
        %v3434 = vld [vmem:[%s3431 + $0x8] sm:$0xf]
        %v3435 = vld [vmem:[%s3431 + $0xc] sm:$0xf]
        %v3436 = vld [vmem:[%s3431 + $0x10] sm:$0xf]
        %v3437 = vld [vmem:[%s3431 + $0x14] sm:$0xf]
        %v3438 = vld [vmem:[%s3431 + $0x18] sm:$0xf]
        %v3439 = vld [vmem:[%s3431 + $0x1c] sm:$0xf]
        %v3440 = vld [vmem:[%s3431 + $0x20] sm:$0xf]
        %v3441 = vld [vmem:[%s3431 + $0x24] sm:$0xf]
        %v3442 = vld [vmem:[%s3431 + $0x28] sm:$0xf]
        %v3443 = vld [vmem:[%s3431 + $0x2c] sm:$0xf]
        %v3444 = vld [vmem:[%s3431 + $0x30] sm:$0xf]
        %v3445 = vld [vmem:[%s3431 + $0x34] sm:$0xf]
        %v3446 = vld [vmem:[%s3431 + $0x38] sm:$0xf]
        %v3447 = vld [vmem:[%s3431 + $0x3c] sm:$0xf]
        %v3448 = vld [vmem:[%s3431 + $0x40] sm:$0xf]
        %v3449 = vld [vmem:[%s3431 + $0x44] sm:$0xf]
        %v3450 = vld [vmem:[%s3431 + $0x48] sm:$0xf]
        %v3451 = vld [vmem:[%s3431 + $0x4c] sm:$0xf]
        %v3452 = vld [vmem:[%s3431 + $0x50] sm:$0xf]
        %v3453 = vld [vmem:[%s3431 + $0x54] sm:$0xf]
        %v3454 = vld [vmem:[%s3431 + $0x58] sm:$0xf]
        %v3455 = vld [vmem:[%s3431 + $0x5c] sm:$0xf]
        %v3456 = vld [vmem:[%s3431 + $0x60] sm:$0xf]
        %v3457 = vld [vmem:[%s3431 + $0x64] sm:$0xf]
        %v3458 = vld [vmem:[%s3431 + $0x68] sm:$0xf]
        %v3459 = vld [vmem:[%s3431 + $0x6c] sm:$0xf]
        %v3460 = vld [vmem:[%s3431 + $0x70] sm:$0xf]
        %v3461 = vld [vmem:[%s3431 + $0x74] sm:$0xf]
        %v3462 = vld [vmem:[%s3431 + $0x78] sm:$0xf]
        %v3463 = vld [vmem:[%s3431 + $0x7c] sm:$0xf]
        %v3496 = vunpack.c.l.b16 %v3432
        %v3497 = vunpack.c.l.b16 %v3433
        %v3498 = vunpack.c.l.b16 %v3434
        %v3499 = vunpack.c.l.b16 %v3435
        %v3500 = vunpack.c.l.b16 %v3436
        %v3501 = vunpack.c.l.b16 %v3437
        %v3502 = vunpack.c.l.b16 %v3438
        %v3503 = vunpack.c.l.b16 %v3439
        %v3504 = vunpack.c.l.b16 %v3440
        %v3505 = vunpack.c.l.b16 %v3441
        %v3506 = vunpack.c.l.b16 %v3442
        %v3507 = vunpack.c.l.b16 %v3443
        %v3508 = vunpack.c.l.b16 %v3444
        %v3509 = vunpack.c.l.b16 %v3445
        %v3510 = vunpack.c.l.b16 %v3446
        %v3511 = vunpack.c.l.b16 %v3447
        %v3512 = vunpack.c.l.b16 %v3448
        %v3513 = vunpack.c.l.b16 %v3449
        %v3514 = vunpack.c.l.b16 %v3450
        %v3515 = vunpack.c.l.b16 %v3451
        %v3516 = vunpack.c.l.b16 %v3452
        %v3517 = vunpack.c.l.b16 %v3453
        %v3518 = vunpack.c.l.b16 %v3454
        %v3519 = vunpack.c.l.b16 %v3455
        %v3520 = vunpack.c.l.b16 %v3456
        %v3521 = vunpack.c.l.b16 %v3457
        %v3522 = vunpack.c.l.b16 %v3458
        %v3523 = vunpack.c.l.b16 %v3459
        %v3524 = vunpack.c.l.b16 %v3460
        %v3525 = vunpack.c.l.b16 %v3461
        %v3526 = vunpack.c.l.b16 %v3462
        %v3527 = vunpack.c.l.b16 %v3463
        %v3528 = vpack.c.b16 %v3497, %v3496
        %v3529 = vpack.c.b16 %v3499, %v3498
        %v3530 = vpack.c.b16 %v3501, %v3500
        %v3531 = vpack.c.b16 %v3503, %v3502
        %v3532 = vpack.c.b16 %v3505, %v3504
        %v3533 = vpack.c.b16 %v3507, %v3506
        %v3534 = vpack.c.b16 %v3509, %v3508
        %v3535 = vpack.c.b16 %v3511, %v3510
        %v3536 = vpack.c.b16 %v3513, %v3512
        %v3537 = vpack.c.b16 %v3515, %v3514
        %v3538 = vpack.c.b16 %v3517, %v3516
        %v3539 = vpack.c.b16 %v3519, %v3518
        %v3540 = vpack.c.b16 %v3521, %v3520
        %v3541 = vpack.c.b16 %v3523, %v3522
        %v3542 = vpack.c.b16 %v3525, %v3524
        %v3543 = vpack.c.b16 %v3527, %v3526
        %3560 = vmatprep.subr.bf16.mxu0 0
        %3561 = vmatpush1.bf16.msra.mxu0 %v3535
        %3562 = vmatprep.subr.bf16.mxu0 0
        %3563 = vmatpush1.bf16.msra.mxu0 %v3534
        %3564 = vmatprep.subr.bf16.mxu0 0
        %3565 = vmatpush1.bf16.msra.mxu0 %v3533
        %3566 = vmatprep.subr.bf16.mxu0 0
        %3567 = vmatpush1.bf16.msra.mxu0 %v3532
        %3568 = vmatprep.subr.bf16.mxu0 0
        %3569 = vmatpush1.bf16.msra.mxu0 %v3531
        %3570 = vmatprep.subr.bf16.mxu0 0
        %3571 = vmatpush1.bf16.msra.mxu0 %v3530
        %3572 = vmatprep.subr.bf16.mxu0 0
        %3573 = vmatpush1.bf16.msra.mxu0 %v3529
        %3574 = vmatprep.subr.bf16.mxu0 0
        %3575 = vmatpush1.bf16.msra.mxu0 %v3528
        %3576 = vmatprep.subr.bf16.mxu0 0
        %3577 = vmatpush2.bf16.msra.mxu0 %v3543
        %3578 = vmatprep.subr.bf16.mxu0 0
        %3579 = vmatpush2.bf16.msra.mxu0 %v3542
        %3580 = vmatprep.subr.bf16.mxu0 0
        %3581 = vmatpush2.bf16.msra.mxu0 %v3541
        %3582 = vmatprep.subr.bf16.mxu0 0
        %3583 = vmatpush2.bf16.msra.mxu0 %v3540
        %3584 = vmatprep.subr.bf16.mxu0 0
        %3585 = vmatpush2.bf16.msra.mxu0 %v3539
        %3586 = vmatprep.subr.bf16.mxu0 0
        %3587 = vmatpush2.bf16.msra.mxu0 %v3538
        %3588 = vmatprep.subr.bf16.mxu0 0
        %3589 = vmatpush2.bf16.msra.mxu0 %v3537
        %3590 = vmatprep.subr.bf16.mxu0 0
        %3591 = vmatpush2.bf16.msra.mxu0 %v3536
        %3592 = vmatprep.mubr.bf16.mxu0 %v3254
        %3593 = vmatmul.mubr.bf16.gmra.mxu0 %v3253
        %v3594 = vpop.f32.mrf.mxu0
        %v3595 = vadd.f32 %v3292, %v3594
        %v3596 = vpop.f32.mrf.mxu0
        %v3597 = vpop.f32.mrf.mxu0
        %v3598 = vpop.f32.mrf.mxu0
        %3599 = vdwg.mxu0
        %v3600 = vtanh.pop %v3595
        %vm3601 = vcmask 523264
        %3602 = vst.msk [vmem:[%s558] sm:$0xff] %vm3601, %v3430
        %3604 = vrot.lane.b32.xlu0 %v3600, 64
        %v3605 = vpop.permute.xlu0 %3604
        %vm3607 = vcmask 1048064
        %3608 = vst.msk [vmem:[%s558] sm:$0xff] %vm3607, %v3605
        %p3609 = scmp.lt.s32.totalorder %s29, 1
        %s3610 = scalar_select %p3609, %s29, 1
        %s3611 = smul.addr %s3610, 8
        %s3612 = scalar_lea.vmem %s17, %s3611
        // Predicated region
        $region93: #{convnet_forward.1} parent=87 // pred_check
          %p3613 = pneg %p409
        $region94: #{convnet_forward.1} parent=87 // pred_check_branch
          %3615 = sbr.rel (%p3613) target = $region96
        $region95: #{convnet_forward.1} parent=87 // pred_region
          _
        $region96: #{convnet_forward.1} parent=87 // pred_fallthru
          _
      $region88: #{convnet_forward.1} parent=5 // pred_fallthru
        _
      %p3616 = scmp.le.s32.totalorder 2, %s24
      // Predicated region
      $region97: #{convnet_forward.1} parent=5 // pred_check
        %p3617 = pneg %p3616
      $region98: #{convnet_forward.1} parent=5 // pred_check_branch
        %3619 = sbr.rel (%p3617) target = $region100
      $region99: #{convnet_forward.1} parent=5 // pred_region
        %s3620 = ssub.s32 %s24, 2
        // Predicated region
        $region101: #{convnet_forward.1} parent=99 // pred_check
          %p3621 = pneg %p415
        $region102: #{convnet_forward.1} parent=99 // pred_check_branch
          %3623 = sbr.rel (%p3621) target = $region104
        $region103: #{convnet_forward.1} parent=99 // pred_region
          %p3624 = scmp.lt.s32.totalorder %s30, 1
          %s3625 = scalar_select %p3624, %s30, 1
          %s3626 = smul.addr %s3625, 8
          %s3627 = scalar_lea.vmem %s17, %s3626
        $region104: #{convnet_forward.1} parent=99 // pred_fallthru
          _
      $region100: #{convnet_forward.1} parent=5 // pred_fallthru
        _
    $region6: #{convnet_forward.1} parent=1 // loop_footer
      %s28 = sadd.s32 1, %s24
    $region7: #{convnet_forward.1} parent=1 // loop_footer_branch
      %23 = sbr.rel target = $region3
    $region8: #{convnet_forward.1} parent=1 // loop_exit
      _
    %3628 = vsyncpa [#allocation6], 1
    %s3629 = scalar_lea.sflag [#allocation6], 1
    %3630 = vsyncpa %s3629, 1

</llo_original>
